<compile_context>
chip_gen: v7x
topology: tpu7x:2x2x1
jax: 0.10.0
libtpu: 0.0.40
codegen_flags: <defaults>
</compile_context>

<pallas_src>
import numpy as np
import jax
import jax.numpy as jnp
from jax import lax
from jax.experimental import pallas as pl
from jax.experimental.pallas import tpu as pltpu

DILATIONS = (1, 3, 5)      # dilation1/2/3 of MSCSA
KSIZE = 3
GROUPS_CONV = 4            # groups of the quantized convs
SSA_GROUP = 4              # ShuffleAttn group
LN_EPS = 1e-6
BN_EPS = 1e-5
# distinct row (H) offsets used by the three dilated 3x3 convs: [-5,-3,-1,0,1,3,5]
DH_VALUES = tuple(sorted({d * (kh - 1) for d in DILATIONS for kh in range(KSIZE)}))


def _sign(v):
    # torch.sign semantics (sign(0) == 0).
    return jnp.where(v > 0, 1.0, jnp.where(v < 0, -1.0, 0.0))


def quantize_weight_1bit(w):
    """QuantizeConv2d weight path (weight_bits=1, recu=False): scaling * sign(w - mean)."""
    scaling = jnp.mean(jnp.abs(w), axis=(1, 2, 3), keepdims=True)
    rw = w - jnp.mean(w, axis=(1, 2, 3), keepdims=True)
    return scaling * jnp.sign(rw)


def grouped_to_dense(w, groups):
    """(Cout, Cin//groups, kh, kw) grouped weight -> dense (Cout, Cin, kh, kw) (numpy)."""
    w = np.asarray(w, np.float32)
    Cout, Cin_g = w.shape[0], w.shape[1]
    Cin = Cin_g * groups
    out_g = Cout // groups
    dense = np.zeros((Cout, Cin) + w.shape[2:], np.float32)
    for co in range(Cout):
        g = co // out_g
        dense[co, g * Cin_g:(g + 1) * Cin_g] = w[co]
    return dense


# --------------------------------------------------------------------------- #
# Fused forward
# --------------------------------------------------------------------------- #
def mscsa_forward(x_nchw, params):
    B, Cin, H, W = x_nchw.shape
    Cout = params['w_stem'].shape[0]
    BH = B * H
    L1 = W * Cin                    # lane width of stage-1 activations (128)
    L2 = W * Cout                   # lane width of stage-2 activations (256)
    K1 = KSIZE * L1                 # contraction size of the merged conv dots (384)
    n_dh = len(DH_VALUES)

    # lane-dense activation layout: rows = (b, h), lanes = (w, channel)
    x2d = jnp.transpose(x_nchw, (0, 2, 3, 1)).reshape(BH, L1).astype(jnp.float32)

    # ---------------- host-side packing (static layout plumbing) ---------------- #
    # (a) 0/1 row-shift matrices: encode the H offsets, zero padding and batch walls.
    shifts = np.zeros((n_dh, BH, BH), np.float32)
    for k, dh in enumerate(DH_VALUES):
        for b in range(B):
            for h in range(H):
                hs = h + dh
                if 0 <= hs < H:
                    shifts[k, b * H + h, b * H + hs] = 1.0

    # (b) per-branch binary-conv weights: W offset + (block-diag) channel mixing folded
    #     into one (3*W*Cin, W*Cin) lane-dense matrix per dilation (rows ordered kh=0,1,2).
    wq_big = np.zeros((3, K1, L1), np.float32)
    for i, d in enumerate(DILATIONS):
        wdense = grouped_to_dense(quantize_weight_1bit(params[f'w{i + 1}']), GROUPS_CONV)
        for kh in range(KSIZE):
            for kw in range(KSIZE):
                dw = d * (kw - 1)
                tap = wdense[:, :, kh, kw].T            # (ci, co)
                for wo in range(W):
                    wi = wo + dw
                    if 0 <= wi < W:
                        wq_big[i,
                               kh * L1 + wi * Cin: kh * L1 + (wi + 1) * Cin,
                               wo * Cin:(wo + 1) * Cin] = tap

    # (c) stem conv weight -> (3*W*Cin, W*Cout)
    wst = np.asarray(params['w_stem'], np.float32)
    wst_big = np.zeros((K1, L2), np.float32)
    for kh in range(KSIZE):
        for kw in range(KSIZE):
            dw = kw - 1
            tap = wst[:, :, kh, kw].T                    # (ci, co)
            for wo in range(W):
                wi = wo + dw
                if 0 <= wi < W:
                    wst_big[kh * L1 + wi * Cin: kh * L1 + (wi + 1) * Cin,
                            wo * Cout:(wo + 1) * Cout] = tap

    # (d) ShuffleAttn gate: channel shuffle / rearrange permutations folded into the
    #     grouped 1x1 weight, replicated block-diagonally over W so it stays lane-dense.
    g, gcn = SSA_GROUP, Cout // SSA_GROUP
    Wg = np.asarray(params['w_gate'], np.float32)[:, :, 0, 0]      # (Cout, Cout//g)
    Wd = np.zeros((Cout, Cout), np.float32)
    for co in range(Cout):
        grp = co // gcn
        Wd[co, grp * gcn:(grp + 1) * gcn] = Wg[co]
    P = np.array([(c % g) * gcn + c // g for c in range(Cout)])     # shuffle permutation
    wg_eff = Wd[P][:, P].T                                          # [ci, co]
    bg_eff = np.asarray(params['b_gate'], np.float32)[P]
    wg_block = np.zeros((L2, L2), np.float32)
    for wo in range(W):
        wg_block[wo * Cout:(wo + 1) * Cout, wo * Cout:(wo + 1) * Cout] = wg_eff
    bg_lane = np.tile(bg_eff, W).reshape(1, L2)

    # (e) per-channel parameters tiled across W so they broadcast on the lane axis
    def lane1(p):
        return np.tile(np.asarray(p, np.float32), W).reshape(1, -1)

    mb_lane = lane1(params['move_bias'])
    cb_lane = np.concatenate([lane1(params[f'b{i + 1}']) for i in range(3)], axis=0)
    m1_lane = np.concatenate([lane1(np.asarray(params['rp_m1'])[i]) for i in range(3)], axis=0)
    sl_lane = np.concatenate([lane1(np.asarray(params['rp_slope'])[i]) for i in range(3)], axis=0)
    m2_lane = np.concatenate([lane1(np.asarray(params['rp_m2'])[i]) for i in range(3)], axis=0)
    lng_lane = lane1(params['ln_g'])
    lnb_lane = lane1(params['ln_b'])
    bng_lane = lane1(params['bn_g'])
    bnb_lane = lane1(params['bn_b'])

    # (f) group-sum / pooling matrices (keep LN/BN/GAP statistics lane-dense via MXU)
    l1i = np.arange(L1)
    g8_mat = (l1i[:, None] // Cin == l1i[None, :] // Cin).astype(np.float32)   # per-pixel channel group
    l2i = np.arange(L2)
    gc_mat = (l2i[:, None] % Cout == l2i[None, :] % Cout).astype(np.float32)   # sum over W per channel
    ri = np.arange(BH)
    rmat = (ri[:, None] // H == ri[None, :] // H).astype(np.float32) / float(H * W)  # per-batch mean

    inv_cin = 1.0 / float(Cin)
    inv_nb = 1.0 / float(B * H * W)
    idx_m1 = DH_VALUES.index(-1)
    idx_p1 = DH_VALUES.index(1)

    # ---------------------------- fused kernel body ----------------------------- #
    def kernel(x_ref, sh_ref, mb_ref, wq_ref, cb_ref, m1_ref, sl_ref, m2_ref,
               lng_ref, lnb_ref, g8_ref, wst_ref, bng_ref, bnb_ref, gc_ref,
               rm_ref, wgb_ref, bg_ref, out_ref):
        # ---- stage 1: LearnableBias + 1-bit activation ----
        xs = _sign(x_ref[...] + mb_ref[...])                       # (BH, W*Cin), exactly {-1,0,+1}

        # row (H) shifts via tiny 0/1 matmuls on the idle MXU -> no unaligned slices / retiles
        s_of = {}
        for k, dh in enumerate(DH_VALUES):
            if dh == 0:
                s_of[0] = xs
            else:
                s_of[dh] = jnp.dot(sh_ref[k], xs, preferred_element_type=jnp.float32)

        # three dilated grouped binary convs, each merged into ONE (BH, 384) x (384, 128) dot
        cb = cb_ref[...]
        m1 = m1_ref[...]
        sl = sl_ref[...]
        m2 = m2_ref[...]
        total = jnp.zeros_like(xs)
        for i, d in enumerate(DILATIONS):
            a = jnp.concatenate([s_of[-d], s_of[0], s_of[d]], axis=1)          # lane-aligned concat
            pre = jnp.dot(a, wq_ref[i], preferred_element_type=jnp.float32)
            v = pre + cb[i:i + 1, :] - m1[i:i + 1, :]
            v = jnp.where(v >= 0.0, v, v * sl[i:i + 1, :])                     # RPReLU
            total = total + v + m2[i:i + 1, :]

        # ---- LayerNorm over the 8-channel group of each pixel (lane-dense) ----
        g8 = g8_ref[...]
        mean = jnp.dot(total, g8, preferred_element_type=jnp.float32) * inv_cin
        diff = total - mean
        var = jnp.dot(diff * diff, g8, preferred_element_type=jnp.float32) * inv_cin
        y1 = diff * lax.rsqrt(var + LN_EPS) * lng_ref[...] + lnb_ref[...]

        # ---- stage 2: stem 3x3 conv as a single (BH, 384) x (384, 256) dot ----
        ym = jnp.dot(sh_ref[idx_m1], y1, preferred_element_type=jnp.float32)
        yp = jnp.dot(sh_ref[idx_p1], y1, preferred_element_type=jnp.float32)
        a2 = jnp.concatenate([ym, y1, yp], axis=1)
        conv = jnp.dot(a2, wst_ref[...], preferred_element_type=jnp.float32)   # (BH, W*Cout)

        # ---- BatchNorm2d (training-mode batch statistics over N,H,W) + SiLU ----
        gcm = gc_ref[...]
        bmean = jnp.sum(jnp.dot(conv, gcm, preferred_element_type=jnp.float32),
                        axis=0, keepdims=True) * inv_nb
        bdiff = conv - bmean
        bvar = jnp.sum(jnp.dot(bdiff * bdiff, gcm, preferred_element_type=jnp.float32),
                       axis=0, keepdims=True) * inv_nb
        xn = bdiff * lax.rsqrt(bvar + BN_EPS) * bng_ref[...] + bnb_ref[...]
        m = xn * (1.0 / (1.0 + jnp.exp(-xn)))                                  # SiLU

        # ---- ShuffleAttn gate: per-batch GAP -> grouped 1x1 (perms folded) -> sigmoid ----
        mw = jnp.dot(m, gcm, preferred_element_type=jnp.float32)               # sum over W per channel
        pooled = jnp.dot(rm_ref[...], mw, preferred_element_type=jnp.float32)  # per-batch mean, bcast
        z = jnp.dot(pooled, wgb_ref[...], preferred_element_type=jnp.float32) + bg_ref[...]
        gate = 1.0 / (1.0 + jnp.exp(-z))
        out_ref[...] = m * gate                                                # lane-dense store

    inputs = (x2d, jnp.asarray(shifts), jnp.asarray(mb_lane), jnp.asarray(wq_big),
              jnp.asarray(cb_lane), jnp.asarray(m1_lane), jnp.asarray(sl_lane),
              jnp.asarray(m2_lane), jnp.asarray(lng_lane), jnp.asarray(lnb_lane),
              jnp.asarray(g8_mat), jnp.asarray(wst_big), jnp.asarray(bng_lane),
              jnp.asarray(bnb_lane), jnp.asarray(gc_mat), jnp.asarray(rmat),
              jnp.asarray(wg_block), jnp.asarray(bg_lane))

    def full_spec(a):
        zeros = (0,) * a.ndim
        return pl.BlockSpec(a.shape, lambda i, z=zeros: z)

    flops = 2 * ((n_dh - 1) * BH * BH * L1      # stage-1 row shifts
                 + 3 * BH * K1 * L1             # merged branch convs
                 + 2 * BH * L1 * L1             # LayerNorm group sums
                 + 2 * BH * BH * L1             # stage-2 row shifts
                 + BH * K1 * L2                 # stem conv
                 + 3 * BH * L2 * L2             # BN stats + gate pooling over W
                 + BH * BH * L2                 # per-batch pooling
                 + BH * L2 * L2)                # gate matmul
    bytes_accessed = int(sum(int(np.prod(a.shape)) for a in inputs) * 4 + BH * L2 * 4)

    out2d = pl.pallas_call(
        kernel,
        out_shape=jax.ShapeDtypeStruct((BH, L2), jnp.float32),
        grid_spec=pltpu.PrefetchScalarGridSpec(
            num_scalar_prefetch=0,
            grid=(1,),
            in_specs=[full_spec(a) for a in inputs],
            out_specs=pl.BlockSpec((BH, L2), lambda i: (0, 0))),
        compiler_params=pltpu.CompilerParams(
            dimension_semantics=("arbitrary",),
            vmem_limit_bytes=32 * 1024 * 1024),
        cost_estimate=pl.CostEstimate(flops=flops,
                                      transcendentals=2 * BH * L2,
                                      bytes_accessed=bytes_accessed),
    )(*inputs)

    out_nhwc = out2d.reshape(B, H, W, Cout)
    return jnp.transpose(out_nhwc, (0, 3, 1, 2))                   # back to NCHW


# --------------------------------------------------------------------------- #
# Pure-JAX reference of the PyTorch forward (for self-validation)
# --------------------------------------------------------------------------- #
def reference_forward(x, params):
    B, Cin, H, W = x.shape
    Cout = params['w_stem'].shape[0]
    xm = x + params['move_bias'].reshape(1, Cin, 1, 1)
    xs = jnp.sign(xm)
    branches = []
    for i, d in enumerate(DILATIONS):
        wq = quantize_weight_1bit(params[f'w{i + 1}'])
        y = lax.conv_general_dilated(
            xs, wq, window_strides=(1, 1), padding=[(d, d), (d, d)],
            rhs_dilation=(d, d), dimension_numbers=('NCHW', 'OIHW', 'NCHW'),
            feature_group_count=GROUPS_CONV, precision=lax.Precision.HIGHEST)
        y = y + params[f'b{i + 1}'].reshape(1, Cin, 1, 1)
        y = jnp.transpose(y, (0, 2, 3, 1)).reshape(B, H * W, Cin)
        v = y - params['rp_m1'][i]
        v = jnp.where(v >= 0, v, v * params['rp_slope'][i])
        branches.append(v + params['rp_m2'][i])
    s = branches[0] + branches[1] + branches[2]
    mean = s.mean(-1, keepdims=True)
    var = ((s - mean) ** 2).mean(-1, keepdims=True)
    s = (s - mean) / jnp.sqrt(var + LN_EPS) * params['ln_g'] + params['ln_b']
    xh = jnp.transpose(s, (0, 2, 1)).reshape(B, Cin, H, W)
    y = lax.conv_general_dilated(
        xh, params['w_stem'], (1, 1), [(1, 1), (1, 1)],
        dimension_numbers=('NCHW', 'OIHW', 'NCHW'), precision=lax.Precision.HIGHEST)
    mean = y.mean(axis=(0, 2, 3), keepdims=True)
    var = ((y - mean) ** 2).mean(axis=(0, 2, 3), keepdims=True)
    y = (y - mean) / jnp.sqrt(var + BN_EPS) * params['bn_g'].reshape(1, Cout, 1, 1) \
        + params['bn_b'].reshape(1, Cout, 1, 1)
    m = y * jax.nn.sigmoid(y)
    g, gc = SSA_GROUP, Cout // SSA_GROUP
    xsh = m.reshape(B, gc, g, H, W).transpose(0, 2, 1, 3, 4).reshape(B, Cout, H, W)
    pooled = xsh.mean(axis=(2, 3), keepdims=True)
    z = lax.conv_general_dilated(
        pooled, params['w_gate'], (1, 1), [(0, 0), (0, 0)],
        dimension_numbers=('NCHW', 'OIHW', 'NCHW'),
        feature_group_count=SSA_GROUP, precision=lax.Precision.HIGHEST)
    z = z + params['b_gate'].reshape(1, Cout, 1, 1)
    gate = jax.nn.sigmoid(z)
    gate = gate.reshape(B, g, gc, 1, 1).transpose(0, 2, 1, 3, 4).reshape(B, Cout, 1, 1)
    return m * gate


if __name__ == "__main__":
    B, Cin, Cout, H, W = 2, 8, 16, 16, 16
    key = jax.random.PRNGKey(0)
    ks = jax.random.split(key, 20)
    f32 = jnp.float32
    params = {
        'move_bias': (0.1 * jax.random.normal(ks[0], (Cin,))).astype(f32),
        'w1': (0.2 * jax.random.normal(ks[1], (Cin, Cin // GROUPS_CONV, 3, 3))).astype(f32),
        'w2': (0.2 * jax.random.normal(ks[2], (Cin, Cin // GROUPS_CONV, 3, 3))).astype(f32),
        'w3': (0.2 * jax.random.normal(ks[3], (Cin, Cin // GROUPS_CONV, 3, 3))).astype(f32),
        'b1': (0.1 * jax.random.normal(ks[4], (Cin,))).astype(f32),
        'b2': (0.1 * jax.random.normal(ks[5], (Cin,))).astype(f32),
        'b3': (0.1 * jax.random.normal(ks[6], (Cin,))).astype(f32),
        'rp_m1': (0.1 * jax.random.normal(ks[7], (3, Cin))).astype(f32),
        'rp_slope': (0.25 + 0.05 * jax.random.normal(ks[8], (3, Cin))).astype(f32),
        'rp_m2': (0.1 * jax.random.normal(ks[9], (3, Cin))).astype(f32),
        'ln_g': (1.0 + 0.1 * jax.random.normal(ks[10], (Cin,))).astype(f32),
        'ln_b': (0.1 * jax.random.normal(ks[11], (Cin,))).astype(f32),
        'w_stem': (0.2 * jax.random.normal(ks[12], (Cout, Cin, 3, 3))).astype(f32),
        'bn_g': (1.0 + 0.1 * jax.random.normal(ks[13], (Cout,))).astype(f32),
        'bn_b': (0.1 * jax.random.normal(ks[14], (Cout,))).astype(f32),
        'w_gate': (0.2 * jax.random.normal(ks[15], (Cout, Cout // SSA_GROUP, 1, 1))).astype(f32),
        'b_gate': (0.1 * jax.random.normal(ks[16], (Cout,))).astype(f32),
    }
    x = jax.random.normal(ks[19], (B, Cin, H, W), f32)

    out = jax.block_until_ready(mscsa_forward(x, params))
    assert out.shape == (B, Cout, H, W), out.shape

    ref = jax.block_until_ready(reference_forward(x, params))
    np.testing.assert_allclose(np.asarray(out), np.asarray(ref), rtol=2e-3, atol=2e-3)
    print("KERNEL_OK")
</pallas_src>

<mosaic_0001>
module attributes {stable_mosaic.version = 11 : i64} {
  func.func @kernel(%arg0: i32, %arg1: memref<32x128xf32, #tpu.memory_space<vmem>>, %arg2: memref<7x32x32xf32, #tpu.memory_space<vmem>>, %arg3: memref<1x128xf32, #tpu.memory_space<vmem>>, %arg4: memref<3x384x128xf32, #tpu.memory_space<vmem>>, %arg5: memref<3x128xf32, #tpu.memory_space<vmem>>, %arg6: memref<3x128xf32, #tpu.memory_space<vmem>>, %arg7: memref<3x128xf32, #tpu.memory_space<vmem>>, %arg8: memref<3x128xf32, #tpu.memory_space<vmem>>, %arg9: memref<1x128xf32, #tpu.memory_space<vmem>>, %arg10: memref<1x128xf32, #tpu.memory_space<vmem>>, %arg11: memref<128x128xf32, #tpu.memory_space<vmem>>, %arg12: memref<384x256xf32, #tpu.memory_space<vmem>>, %arg13: memref<1x256xf32, #tpu.memory_space<vmem>>, %arg14: memref<1x256xf32, #tpu.memory_space<vmem>>, %arg15: memref<256x256xf32, #tpu.memory_space<vmem>>, %arg16: memref<32x32xf32, #tpu.memory_space<vmem>>, %arg17: memref<256x256xf32, #tpu.memory_space<vmem>>, %arg18: memref<1x256xf32, #tpu.memory_space<vmem>>, %arg19: memref<32x256xf32, #tpu.memory_space<vmem>>) attributes {dimension_semantics = [#tpu.dimension_semantics<arbitrary>], iteration_bounds = array<i64: 1>, scalar_prefetch = 0 : i64, scratch_operands = 0 : i64, tpu.core_type = #tpu.core_type<tc>, window_params = [{pipeline_mode = #tpu.pipeline_mode<synchronous>, transform_indices = @transform_0, window_bounds = array<i64: 32, 128>}, {pipeline_mode = #tpu.pipeline_mode<synchronous>, transform_indices = @transform_1, window_bounds = array<i64: 7, 32, 32>}, {pipeline_mode = #tpu.pipeline_mode<synchronous>, transform_indices = @transform_2, window_bounds = array<i64: 1, 128>}, {pipeline_mode = #tpu.pipeline_mode<synchronous>, transform_indices = @transform_3, window_bounds = array<i64: 3, 384, 128>}, {pipeline_mode = #tpu.pipeline_mode<synchronous>, transform_indices = @transform_4, window_bounds = array<i64: 3, 128>}, {pipeline_mode = #tpu.pipeline_mode<synchronous>, transform_indices = @transform_5, window_bounds = array<i64: 3, 128>}, {pipeline_mode = #tpu.pipeline_mode<synchronous>, transform_indices = @transform_6, window_bounds = array<i64: 3, 128>}, {pipeline_mode = #tpu.pipeline_mode<synchronous>, transform_indices = @transform_7, window_bounds = array<i64: 3, 128>}, {pipeline_mode = #tpu.pipeline_mode<synchronous>, transform_indices = @transform_8, window_bounds = array<i64: 1, 128>}, {pipeline_mode = #tpu.pipeline_mode<synchronous>, transform_indices = @transform_9, window_bounds = array<i64: 1, 128>}, {pipeline_mode = #tpu.pipeline_mode<synchronous>, transform_indices = @transform_10, window_bounds = array<i64: 128, 128>}, {pipeline_mode = #tpu.pipeline_mode<synchronous>, transform_indices = @transform_11, window_bounds = array<i64: 384, 256>}, {pipeline_mode = #tpu.pipeline_mode<synchronous>, transform_indices = @transform_12, window_bounds = array<i64: 1, 256>}, {pipeline_mode = #tpu.pipeline_mode<synchronous>, transform_indices = @transform_13, window_bounds = array<i64: 1, 256>}, {pipeline_mode = #tpu.pipeline_mode<synchronous>, transform_indices = @transform_14, window_bounds = array<i64: 256, 256>}, {pipeline_mode = #tpu.pipeline_mode<synchronous>, transform_indices = @transform_15, window_bounds = array<i64: 32, 32>}, {pipeline_mode = #tpu.pipeline_mode<synchronous>, transform_indices = @transform_16, window_bounds = array<i64: 256, 256>}, {pipeline_mode = #tpu.pipeline_mode<synchronous>, transform_indices = @transform_17, window_bounds = array<i64: 1, 256>}, {pipeline_mode = #tpu.pipeline_mode<synchronous>, transform_indices = @transform_18, window_bounds = array<i64: 32, 256>}]} {
    %c0 = arith.constant 0 : index
    %c0_0 = arith.constant 0 : index
    %0 = vector.load %arg1[%c0, %c0_0] : memref<32x128xf32, #tpu.memory_space<vmem>>, vector<32x128xf32>
    %c0_1 = arith.constant 0 : index
    %c0_2 = arith.constant 0 : index
    %1 = vector.load %arg3[%c0_1, %c0_2] : memref<1x128xf32, #tpu.memory_space<vmem>>, vector<1x128xf32>
    %2 = vector.broadcast %1 : vector<1x128xf32> to vector<32x128xf32>
    %3 = arith.addf %0, %2 : vector<32x128xf32>
    %cst = arith.constant 0.000000e+00 : f32
    %4 = vector.broadcast %cst : f32 to vector<32x128xf32>
    %5 = arith.cmpf ogt, %3, %4 : vector<32x128xf32>
    %cst_3 = arith.constant 0.000000e+00 : f32
    %6 = vector.broadcast %cst_3 : f32 to vector<32x128xf32>
    %7 = arith.cmpf olt, %3, %6 : vector<32x128xf32>
    %cst_4 = arith.constant -1.000000e+00 : f32
    %cst_5 = arith.constant 0.000000e+00 : f32
    %8 = vector.broadcast %cst_4 : f32 to vector<32x128xf32>
    %9 = vector.broadcast %cst_5 : f32 to vector<32x128xf32>
    %10 = arith.select %7, %8, %9 : vector<32x128xi1>, vector<32x128xf32>
    %cst_6 = arith.constant 1.000000e+00 : f32
    %11 = vector.broadcast %cst_6 : f32 to vector<32x128xf32>
    %12 = arith.select %5, %11, %10 : vector<32x128xi1>, vector<32x128xf32>
    %c0_7 = arith.constant 0 : index
    %c0_8 = arith.constant 0 : index
    %c0_9 = arith.constant 0 : index
    %13 = vector.load %arg2[%c0_7, %c0_8, %c0_9] : memref<7x32x32xf32, #tpu.memory_space<vmem>>, vector<1x32x32xf32>
    %14 = vector.shape_cast %13 : vector<1x32x32xf32> to vector<32x32xf32>
    %cst_10 = arith.constant dense<0.000000e+00> : vector<32x128xf32>
    %15 = tpu.matmul %14, %12, %cst_10 {dimension_numbers = #tpu.dot_dimension_numbers<[1], [0], [0], [1], [0, 0, 1, 1], [], []>} : vector<32x32xf32>, vector<32x128xf32>, vector<32x128xf32> -> vector<32x128xf32>
    %c1 = arith.constant 1 : index
    %c0_11 = arith.constant 0 : index
    %c0_12 = arith.constant 0 : index
    %16 = vector.load %arg2[%c1, %c0_11, %c0_12] : memref<7x32x32xf32, #tpu.memory_space<vmem>>, vector<1x32x32xf32>
    %17 = vector.shape_cast %16 : vector<1x32x32xf32> to vector<32x32xf32>
    %cst_13 = arith.constant dense<0.000000e+00> : vector<32x128xf32>
    %18 = tpu.matmul %17, %12, %cst_13 {dimension_numbers = #tpu.dot_dimension_numbers<[1], [0], [0], [1], [0, 0, 1, 1], [], []>} : vector<32x32xf32>, vector<32x128xf32>, vector<32x128xf32> -> vector<32x128xf32>
    %c2 = arith.constant 2 : index
    %c0_14 = arith.constant 0 : index
    %c0_15 = arith.constant 0 : index
    %19 = vector.load %arg2[%c2, %c0_14, %c0_15] : memref<7x32x32xf32, #tpu.memory_space<vmem>>, vector<1x32x32xf32>
    %20 = vector.shape_cast %19 : vector<1x32x32xf32> to vector<32x32xf32>
    %cst_16 = arith.constant dense<0.000000e+00> : vector<32x128xf32>
    %21 = tpu.matmul %20, %12, %cst_16 {dimension_numbers = #tpu.dot_dimension_numbers<[1], [0], [0], [1], [0, 0, 1, 1], [], []>} : vector<32x32xf32>, vector<32x128xf32>, vector<32x128xf32> -> vector<32x128xf32>
    %c4 = arith.constant 4 : index
    %c0_17 = arith.constant 0 : index
    %c0_18 = arith.constant 0 : index
    %22 = vector.load %arg2[%c4, %c0_17, %c0_18] : memref<7x32x32xf32, #tpu.memory_space<vmem>>, vector<1x32x32xf32>
    %23 = vector.shape_cast %22 : vector<1x32x32xf32> to vector<32x32xf32>
    %cst_19 = arith.constant dense<0.000000e+00> : vector<32x128xf32>
    %24 = tpu.matmul %23, %12, %cst_19 {dimension_numbers = #tpu.dot_dimension_numbers<[1], [0], [0], [1], [0, 0, 1, 1], [], []>} : vector<32x32xf32>, vector<32x128xf32>, vector<32x128xf32> -> vector<32x128xf32>
    %c5 = arith.constant 5 : index
    %c0_20 = arith.constant 0 : index
    %c0_21 = arith.constant 0 : index
    %25 = vector.load %arg2[%c5, %c0_20, %c0_21] : memref<7x32x32xf32, #tpu.memory_space<vmem>>, vector<1x32x32xf32>
    %26 = vector.shape_cast %25 : vector<1x32x32xf32> to vector<32x32xf32>
    %cst_22 = arith.constant dense<0.000000e+00> : vector<32x128xf32>
    %27 = tpu.matmul %26, %12, %cst_22 {dimension_numbers = #tpu.dot_dimension_numbers<[1], [0], [0], [1], [0, 0, 1, 1], [], []>} : vector<32x32xf32>, vector<32x128xf32>, vector<32x128xf32> -> vector<32x128xf32>
    %c6 = arith.constant 6 : index
    %c0_23 = arith.constant 0 : index
    %c0_24 = arith.constant 0 : index
    %28 = vector.load %arg2[%c6, %c0_23, %c0_24] : memref<7x32x32xf32, #tpu.memory_space<vmem>>, vector<1x32x32xf32>
    %29 = vector.shape_cast %28 : vector<1x32x32xf32> to vector<32x32xf32>
    %cst_25 = arith.constant dense<0.000000e+00> : vector<32x128xf32>
    %30 = tpu.matmul %29, %12, %cst_25 {dimension_numbers = #tpu.dot_dimension_numbers<[1], [0], [0], [1], [0, 0, 1, 1], [], []>} : vector<32x32xf32>, vector<32x128xf32>, vector<32x128xf32> -> vector<32x128xf32>
    %c0_26 = arith.constant 0 : index
    %c0_27 = arith.constant 0 : index
    %31 = vector.load %arg5[%c0_26, %c0_27] : memref<3x128xf32, #tpu.memory_space<vmem>>, vector<3x128xf32>
    %c0_28 = arith.constant 0 : index
    %c0_29 = arith.constant 0 : index
    %32 = vector.load %arg6[%c0_28, %c0_29] : memref<3x128xf32, #tpu.memory_space<vmem>>, vector<3x128xf32>
    %c0_30 = arith.constant 0 : index
    %c0_31 = arith.constant 0 : index
    %33 = vector.load %arg7[%c0_30, %c0_31] : memref<3x128xf32, #tpu.memory_space<vmem>>, vector<3x128xf32>
    %c0_32 = arith.constant 0 : index
    %c0_33 = arith.constant 0 : index
    %34 = vector.load %arg8[%c0_32, %c0_33] : memref<3x128xf32, #tpu.memory_space<vmem>>, vector<3x128xf32>
    %cst_34 = arith.constant 0.000000e+00 : f32
    %35 = vector.broadcast %cst_34 : f32 to vector<32x128xf32>
    %36 = tpu.concatenate %21, %12, %24 in 1 : vector<32x128xf32>, vector<32x128xf32>, vector<32x128xf32> -> vector<32x384xf32>
    %c0_35 = arith.constant 0 : index
    %c0_36 = arith.constant 0 : index
    %c0_37 = arith.constant 0 : index
    %37 = vector.load %arg4[%c0_35, %c0_36, %c0_37] : memref<3x384x128xf32, #tpu.memory_space<vmem>>, vector<1x384x128xf32>
    %38 = vector.shape_cast %37 : vector<1x384x128xf32> to vector<384x128xf32>
    %cst_38 = arith.constant dense<0.000000e+00> : vector<32x128xf32>
    %39 = tpu.matmul %36, %38, %cst_38 {dimension_numbers = #tpu.dot_dimension_numbers<[1], [0], [0], [1], [0, 0, 1, 1], [], []>} : vector<32x384xf32>, vector<384x128xf32>, vector<32x128xf32> -> vector<32x128xf32>
    %40 = vector.extract_strided_slice %31 {offsets = [0, 0], sizes = [1, 128], strides = [1, 1]} : vector<3x128xf32> to vector<1x128xf32>
    %41 = vector.broadcast %40 : vector<1x128xf32> to vector<32x128xf32>
    %42 = arith.addf %39, %41 : vector<32x128xf32>
    %43 = vector.extract_strided_slice %32 {offsets = [0, 0], sizes = [1, 128], strides = [1, 1]} : vector<3x128xf32> to vector<1x128xf32>
    %44 = vector.broadcast %43 : vector<1x128xf32> to vector<32x128xf32>
    %45 = arith.subf %42, %44 : vector<32x128xf32>
    %cst_39 = arith.constant 0.000000e+00 : f32
    %46 = vector.broadcast %cst_39 : f32 to vector<32x128xf32>
    %47 = arith.cmpf oge, %45, %46 : vector<32x128xf32>
    %48 = vector.extract_strided_slice %33 {offsets = [0, 0], sizes = [1, 128], strides = [1, 1]} : vector<3x128xf32> to vector<1x128xf32>
    %49 = vector.broadcast %48 : vector<1x128xf32> to vector<32x128xf32>
    %50 = arith.mulf %45, %49 : vector<32x128xf32>
    %51 = arith.select %47, %45, %50 : vector<32x128xi1>, vector<32x128xf32>
    %52 = arith.addf %35, %51 : vector<32x128xf32>
    %53 = vector.extract_strided_slice %34 {offsets = [0, 0], sizes = [1, 128], strides = [1, 1]} : vector<3x128xf32> to vector<1x128xf32>
    %54 = vector.broadcast %53 : vector<1x128xf32> to vector<32x128xf32>
    %55 = arith.addf %52, %54 : vector<32x128xf32>
    %56 = tpu.concatenate %18, %12, %27 in 1 : vector<32x128xf32>, vector<32x128xf32>, vector<32x128xf32> -> vector<32x384xf32>
    %c1_40 = arith.constant 1 : index
    %c0_41 = arith.constant 0 : index
    %c0_42 = arith.constant 0 : index
    %57 = vector.load %arg4[%c1_40, %c0_41, %c0_42] : memref<3x384x128xf32, #tpu.memory_space<vmem>>, vector<1x384x128xf32>
    %58 = vector.shape_cast %57 : vector<1x384x128xf32> to vector<384x128xf32>
    %cst_43 = arith.constant dense<0.000000e+00> : vector<32x128xf32>
    %59 = tpu.matmul %56, %58, %cst_43 {dimension_numbers = #tpu.dot_dimension_numbers<[1], [0], [0], [1], [0, 0, 1, 1], [], []>} : vector<32x384xf32>, vector<384x128xf32>, vector<32x128xf32> -> vector<32x128xf32>
    %60 = vector.extract_strided_slice %31 {offsets = [1, 0], sizes = [1, 128], strides = [1, 1]} : vector<3x128xf32> to vector<1x128xf32>
    %61 = vector.broadcast %60 : vector<1x128xf32> to vector<32x128xf32>
    %62 = arith.addf %59, %61 : vector<32x128xf32>
    %63 = vector.extract_strided_slice %32 {offsets = [1, 0], sizes = [1, 128], strides = [1, 1]} : vector<3x128xf32> to vector<1x128xf32>
    %64 = vector.broadcast %63 : vector<1x128xf32> to vector<32x128xf32>
    %65 = arith.subf %62, %64 : vector<32x128xf32>
    %cst_44 = arith.constant 0.000000e+00 : f32
    %66 = vector.broadcast %cst_44 : f32 to vector<32x128xf32>
    %67 = arith.cmpf oge, %65, %66 : vector<32x128xf32>
    %68 = vector.extract_strided_slice %33 {offsets = [1, 0], sizes = [1, 128], strides = [1, 1]} : vector<3x128xf32> to vector<1x128xf32>
    %69 = vector.broadcast %68 : vector<1x128xf32> to vector<32x128xf32>
    %70 = arith.mulf %65, %69 : vector<32x128xf32>
    %71 = arith.select %67, %65, %70 : vector<32x128xi1>, vector<32x128xf32>
    %72 = arith.addf %55, %71 : vector<32x128xf32>
    %73 = vector.extract_strided_slice %34 {offsets = [1, 0], sizes = [1, 128], strides = [1, 1]} : vector<3x128xf32> to vector<1x128xf32>
    %74 = vector.broadcast %73 : vector<1x128xf32> to vector<32x128xf32>
    %75 = arith.addf %72, %74 : vector<32x128xf32>
    %76 = tpu.concatenate %15, %12, %30 in 1 : vector<32x128xf32>, vector<32x128xf32>, vector<32x128xf32> -> vector<32x384xf32>
    %c2_45 = arith.constant 2 : index
    %c0_46 = arith.constant 0 : index
    %c0_47 = arith.constant 0 : index
    %77 = vector.load %arg4[%c2_45, %c0_46, %c0_47] : memref<3x384x128xf32, #tpu.memory_space<vmem>>, vector<1x384x128xf32>
    %78 = vector.shape_cast %77 : vector<1x384x128xf32> to vector<384x128xf32>
    %cst_48 = arith.constant dense<0.000000e+00> : vector<32x128xf32>
    %79 = tpu.matmul %76, %78, %cst_48 {dimension_numbers = #tpu.dot_dimension_numbers<[1], [0], [0], [1], [0, 0, 1, 1], [], []>} : vector<32x384xf32>, vector<384x128xf32>, vector<32x128xf32> -> vector<32x128xf32>
    %80 = vector.extract_strided_slice %31 {offsets = [2, 0], sizes = [1, 128], strides = [1, 1]} : vector<3x128xf32> to vector<1x128xf32>
    %81 = vector.broadcast %80 : vector<1x128xf32> to vector<32x128xf32>
    %82 = arith.addf %79, %81 : vector<32x128xf32>
    %83 = vector.extract_strided_slice %32 {offsets = [2, 0], sizes = [1, 128], strides = [1, 1]} : vector<3x128xf32> to vector<1x128xf32>
    %84 = vector.broadcast %83 : vector<1x128xf32> to vector<32x128xf32>
    %85 = arith.subf %82, %84 : vector<32x128xf32>
    %cst_49 = arith.constant 0.000000e+00 : f32
    %86 = vector.broadcast %cst_49 : f32 to vector<32x128xf32>
    %87 = arith.cmpf oge, %85, %86 : vector<32x128xf32>
    %88 = vector.extract_strided_slice %33 {offsets = [2, 0], sizes = [1, 128], strides = [1, 1]} : vector<3x128xf32> to vector<1x128xf32>
    %89 = vector.broadcast %88 : vector<1x128xf32> to vector<32x128xf32>
    %90 = arith.mulf %85, %89 : vector<32x128xf32>
    %91 = arith.select %87, %85, %90 : vector<32x128xi1>, vector<32x128xf32>
    %92 = arith.addf %75, %91 : vector<32x128xf32>
    %93 = vector.extract_strided_slice %34 {offsets = [2, 0], sizes = [1, 128], strides = [1, 1]} : vector<3x128xf32> to vector<1x128xf32>
    %94 = vector.broadcast %93 : vector<1x128xf32> to vector<32x128xf32>
    %95 = arith.addf %92, %94 : vector<32x128xf32>
    %c0_50 = arith.constant 0 : index
    %c0_51 = arith.constant 0 : index
    %96 = vector.load %arg11[%c0_50, %c0_51] : memref<128x128xf32, #tpu.memory_space<vmem>>, vector<128x128xf32>
    %cst_52 = arith.constant dense<0.000000e+00> : vector<32x128xf32>
    %97 = tpu.matmul %95, %96, %cst_52 {dimension_numbers = #tpu.dot_dimension_numbers<[1], [0], [0], [1], [0, 0, 1, 1], [], []>} : vector<32x128xf32>, vector<128x128xf32>, vector<32x128xf32> -> vector<32x128xf32>
    %cst_53 = arith.constant 1.250000e-01 : f32
    %98 = vector.broadcast %cst_53 : f32 to vector<32x128xf32>
    %99 = arith.mulf %97, %98 : vector<32x128xf32>
    %100 = arith.subf %95, %99 : vector<32x128xf32>
    %101 = arith.mulf %100, %100 : vector<32x128xf32>
    %cst_54 = arith.constant dense<0.000000e+00> : vector<32x128xf32>
    %102 = tpu.matmul %101, %96, %cst_54 {dimension_numbers = #tpu.dot_dimension_numbers<[1], [0], [0], [1], [0, 0, 1, 1], [], []>} : vector<32x128xf32>, vector<128x128xf32>, vector<32x128xf32> -> vector<32x128xf32>
    %cst_55 = arith.constant 1.250000e-01 : f32
    %103 = vector.broadcast %cst_55 : f32 to vector<32x128xf32>
    %104 = arith.mulf %102, %103 : vector<32x128xf32>
    %cst_56 = arith.constant 9.99999997E-7 : f32
    %105 = vector.broadcast %cst_56 : f32 to vector<32x128xf32>
    %106 = arith.addf %104, %105 : vector<32x128xf32>
    %107 = math.rsqrt %106 : vector<32x128xf32>
    %108 = arith.mulf %100, %107 : vector<32x128xf32>
    %c0_57 = arith.constant 0 : index
    %c0_58 = arith.constant 0 : index
    %109 = vector.load %arg9[%c0_57, %c0_58] : memref<1x128xf32, #tpu.memory_space<vmem>>, vector<1x128xf32>
    %110 = vector.broadcast %109 : vector<1x128xf32> to vector<32x128xf32>
    %111 = arith.mulf %108, %110 : vector<32x128xf32>
    %c0_59 = arith.constant 0 : index
    %c0_60 = arith.constant 0 : index
    %112 = vector.load %arg10[%c0_59, %c0_60] : memref<1x128xf32, #tpu.memory_space<vmem>>, vector<1x128xf32>
    %113 = vector.broadcast %112 : vector<1x128xf32> to vector<32x128xf32>
    %114 = arith.addf %111, %113 : vector<32x128xf32>
    %c2_61 = arith.constant 2 : index
    %c0_62 = arith.constant 0 : index
    %c0_63 = arith.constant 0 : index
    %115 = vector.load %arg2[%c2_61, %c0_62, %c0_63] : memref<7x32x32xf32, #tpu.memory_space<vmem>>, vector<1x32x32xf32>
    %116 = vector.shape_cast %115 : vector<1x32x32xf32> to vector<32x32xf32>
    %cst_64 = arith.constant dense<0.000000e+00> : vector<32x128xf32>
    %117 = tpu.matmul %116, %114, %cst_64 {dimension_numbers = #tpu.dot_dimension_numbers<[1], [0], [0], [1], [0, 0, 1, 1], [], []>} : vector<32x32xf32>, vector<32x128xf32>, vector<32x128xf32> -> vector<32x128xf32>
    %c4_65 = arith.constant 4 : index
    %c0_66 = arith.constant 0 : index
    %c0_67 = arith.constant 0 : index
    %118 = vector.load %arg2[%c4_65, %c0_66, %c0_67] : memref<7x32x32xf32, #tpu.memory_space<vmem>>, vector<1x32x32xf32>
    %119 = vector.shape_cast %118 : vector<1x32x32xf32> to vector<32x32xf32>
    %cst_68 = arith.constant dense<0.000000e+00> : vector<32x128xf32>
    %120 = tpu.matmul %119, %114, %cst_68 {dimension_numbers = #tpu.dot_dimension_numbers<[1], [0], [0], [1], [0, 0, 1, 1], [], []>} : vector<32x32xf32>, vector<32x128xf32>, vector<32x128xf32> -> vector<32x128xf32>
    %121 = tpu.concatenate %117, %114, %120 in 1 : vector<32x128xf32>, vector<32x128xf32>, vector<32x128xf32> -> vector<32x384xf32>
    %c0_69 = arith.constant 0 : index
    %c0_70 = arith.constant 0 : index
    %122 = vector.load %arg12[%c0_69, %c0_70] : memref<384x256xf32, #tpu.memory_space<vmem>>, vector<384x256xf32>
    %cst_71 = arith.constant dense<0.000000e+00> : vector<32x256xf32>
    %123 = tpu.matmul %121, %122, %cst_71 {dimension_numbers = #tpu.dot_dimension_numbers<[1], [0], [0], [1], [0, 0, 1, 1], [], []>} : vector<32x384xf32>, vector<384x256xf32>, vector<32x256xf32> -> vector<32x256xf32>
    %c0_72 = arith.constant 0 : index
    %c0_73 = arith.constant 0 : index
    %124 = vector.load %arg15[%c0_72, %c0_73] : memref<256x256xf32, #tpu.memory_space<vmem>>, vector<256x256xf32>
    %cst_74 = arith.constant dense<0.000000e+00> : vector<32x256xf32>
    %125 = tpu.matmul %123, %124, %cst_74 {dimension_numbers = #tpu.dot_dimension_numbers<[1], [0], [0], [1], [0, 0, 1, 1], [], []>} : vector<32x256xf32>, vector<256x256xf32>, vector<32x256xf32> -> vector<32x256xf32>
    %cst_75 = arith.constant dense<0.000000e+00> : vector<256xf32>
    %126 = vector.multi_reduction <add>, %125, %cst_75 [0] : vector<32x256xf32> to vector<256xf32>
    %127 = vector.shape_cast %126 : vector<256xf32> to vector<1x256xf32>
    %cst_76 = arith.constant 0.001953125 : f32
    %128 = vector.broadcast %cst_76 : f32 to vector<1x256xf32>
    %129 = arith.mulf %127, %128 : vector<1x256xf32>
    %130 = vector.broadcast %129 : vector<1x256xf32> to vector<32x256xf32>
    %131 = arith.subf %123, %130 : vector<32x256xf32>
    %132 = arith.mulf %131, %131 : vector<32x256xf32>
    %cst_77 = arith.constant dense<0.000000e+00> : vector<32x256xf32>
    %133 = tpu.matmul %132, %124, %cst_77 {dimension_numbers = #tpu.dot_dimension_numbers<[1], [0], [0], [1], [0, 0, 1, 1], [], []>} : vector<32x256xf32>, vector<256x256xf32>, vector<32x256xf32> -> vector<32x256xf32>
    %cst_78 = arith.constant dense<0.000000e+00> : vector<256xf32>
    %134 = vector.multi_reduction <add>, %133, %cst_78 [0] : vector<32x256xf32> to vector<256xf32>
    %135 = vector.shape_cast %134 : vector<256xf32> to vector<1x256xf32>
    %cst_79 = arith.constant 0.001953125 : f32
    %136 = vector.broadcast %cst_79 : f32 to vector<1x256xf32>
    %137 = arith.mulf %135, %136 : vector<1x256xf32>
    %cst_80 = arith.constant 9.99999974E-6 : f32
    %138 = vector.broadcast %cst_80 : f32 to vector<1x256xf32>
    %139 = arith.addf %137, %138 : vector<1x256xf32>
    %140 = math.rsqrt %139 : vector<1x256xf32>
    %141 = vector.broadcast %140 : vector<1x256xf32> to vector<32x256xf32>
    %142 = arith.mulf %131, %141 : vector<32x256xf32>
    %c0_81 = arith.constant 0 : index
    %c0_82 = arith.constant 0 : index
    %143 = vector.load %arg13[%c0_81, %c0_82] : memref<1x256xf32, #tpu.memory_space<vmem>>, vector<1x256xf32>
    %144 = vector.broadcast %143 : vector<1x256xf32> to vector<32x256xf32>
    %145 = arith.mulf %142, %144 : vector<32x256xf32>
    %c0_83 = arith.constant 0 : index
    %c0_84 = arith.constant 0 : index
    %146 = vector.load %arg14[%c0_83, %c0_84] : memref<1x256xf32, #tpu.memory_space<vmem>>, vector<1x256xf32>
    %147 = vector.broadcast %146 : vector<1x256xf32> to vector<32x256xf32>
    %148 = arith.addf %145, %147 : vector<32x256xf32>
    %cst_85 = arith.constant 0.000000e+00 : f32
    %149 = vector.broadcast %cst_85 : f32 to vector<32x256xf32>
    %150 = arith.subf %149, %148 : vector<32x256xf32>
    %151 = math.exp %150 : vector<32x256xf32>
    %cst_86 = arith.constant 1.000000e+00 : f32
    %152 = vector.broadcast %cst_86 : f32 to vector<32x256xf32>
    %153 = arith.addf %152, %151 : vector<32x256xf32>
    %cst_87 = arith.constant 1.000000e+00 : f32
    %154 = vector.broadcast %cst_87 : f32 to vector<32x256xf32>
    %155 = arith.divf %154, %153 : vector<32x256xf32>
    %156 = arith.mulf %148, %155 : vector<32x256xf32>
    %cst_88 = arith.constant dense<0.000000e+00> : vector<32x256xf32>
    %157 = tpu.matmul %156, %124, %cst_88 {dimension_numbers = #tpu.dot_dimension_numbers<[1], [0], [0], [1], [0, 0, 1, 1], [], []>} : vector<32x256xf32>, vector<256x256xf32>, vector<32x256xf32> -> vector<32x256xf32>
    %c0_89 = arith.constant 0 : index
    %c0_90 = arith.constant 0 : index
    %158 = vector.load %arg16[%c0_89, %c0_90] : memref<32x32xf32, #tpu.memory_space<vmem>>, vector<32x32xf32>
    %cst_91 = arith.constant dense<0.000000e+00> : vector<32x256xf32>
    %159 = tpu.matmul %158, %157, %cst_91 {dimension_numbers = #tpu.dot_dimension_numbers<[1], [0], [0], [1], [0, 0, 1, 1], [], []>} : vector<32x32xf32>, vector<32x256xf32>, vector<32x256xf32> -> vector<32x256xf32>
    %c0_92 = arith.constant 0 : index
    %c0_93 = arith.constant 0 : index
    %160 = vector.load %arg17[%c0_92, %c0_93] : memref<256x256xf32, #tpu.memory_space<vmem>>, vector<256x256xf32>
    %cst_94 = arith.constant dense<0.000000e+00> : vector<32x256xf32>
    %161 = tpu.matmul %159, %160, %cst_94 {dimension_numbers = #tpu.dot_dimension_numbers<[1], [0], [0], [1], [0, 0, 1, 1], [], []>} : vector<32x256xf32>, vector<256x256xf32>, vector<32x256xf32> -> vector<32x256xf32>
    %c0_95 = arith.constant 0 : index
    %c0_96 = arith.constant 0 : index
    %162 = vector.load %arg18[%c0_95, %c0_96] : memref<1x256xf32, #tpu.memory_space<vmem>>, vector<1x256xf32>
    %163 = vector.broadcast %162 : vector<1x256xf32> to vector<32x256xf32>
    %164 = arith.addf %161, %163 : vector<32x256xf32>
    %cst_97 = arith.constant 0.000000e+00 : f32
    %165 = vector.broadcast %cst_97 : f32 to vector<32x256xf32>
    %166 = arith.subf %165, %164 : vector<32x256xf32>
    %167 = math.exp %166 : vector<32x256xf32>
    %cst_98 = arith.constant 1.000000e+00 : f32
    %168 = vector.broadcast %cst_98 : f32 to vector<32x256xf32>
    %169 = arith.addf %168, %167 : vector<32x256xf32>
    %cst_99 = arith.constant 1.000000e+00 : f32
    %170 = vector.broadcast %cst_99 : f32 to vector<32x256xf32>
    %171 = arith.divf %170, %169 : vector<32x256xf32>
    %172 = arith.mulf %156, %171 : vector<32x256xf32>
    %c0_100 = arith.constant 0 : index
    %c0_101 = arith.constant 0 : index
    %173 = vector.load %arg19[%c0_100, %c0_101] : memref<32x256xf32, #tpu.memory_space<vmem>>, vector<32x256xf32>
    tpu.vector_store %arg19[%c0_100, %c0_101], %172 {strides = array<i32>} : memref<32x256xf32, #tpu.memory_space<vmem>>, vector<32x256xf32>,
    return
  }
  func.func @transform_0(%arg0: i32) -> (i32, i32) {
    %c0_i32 = arith.constant 0 : i32
    %c0_i32_0 = arith.constant 0 : i32
    %c0_i32_1 = arith.constant 0 : i32
    return %c0_i32, %c0_i32_0 : i32, i32
  }
  func.func @transform_1(%arg0: i32) -> (i32, i32, i32) {
    %c0_i32 = arith.constant 0 : i32
    %c0_i32_0 = arith.constant 0 : i32
    %c0_i32_1 = arith.constant 0 : i32
    %c0_i32_2 = arith.constant 0 : i32
    return %c0_i32, %c0_i32_0, %c0_i32_1 : i32, i32, i32
  }
  func.func @transform_2(%arg0: i32) -> (i32, i32) {
    %c0_i32 = arith.constant 0 : i32
    %c0_i32_0 = arith.constant 0 : i32
    %c0_i32_1 = arith.constant 0 : i32
    return %c0_i32, %c0_i32_0 : i32, i32
  }
  func.func @transform_3(%arg0: i32) -> (i32, i32, i32) {
    %c0_i32 = arith.constant 0 : i32
    %c0_i32_0 = arith.constant 0 : i32
    %c0_i32_1 = arith.constant 0 : i32
    %c0_i32_2 = arith.constant 0 : i32
    return %c0_i32, %c0_i32_0, %c0_i32_1 : i32, i32, i32
  }
  func.func @transform_4(%arg0: i32) -> (i32, i32) {
    %c0_i32 = arith.constant 0 : i32
    %c0_i32_0 = arith.constant 0 : i32
    %c0_i32_1 = arith.constant 0 : i32
    return %c0_i32, %c0_i32_0 : i32, i32
  }
  func.func @transform_5(%arg0: i32) -> (i32, i32) {
    %c0_i32 = arith.constant 0 : i32
    %c0_i32_0 = arith.constant 0 : i32
    %c0_i32_1 = arith.constant 0 : i32
    return %c0_i32, %c0_i32_0 : i32, i32
  }
  func.func @transform_6(%arg0: i32) -> (i32, i32) {
    %c0_i32 = arith.constant 0 : i32
    %c0_i32_0 = arith.constant 0 : i32
    %c0_i32_1 = arith.constant 0 : i32
    return %c0_i32, %c0_i32_0 : i32, i32
  }
  func.func @transform_7(%arg0: i32) -> (i32, i32) {
    %c0_i32 = arith.constant 0 : i32
    %c0_i32_0 = arith.constant 0 : i32
    %c0_i32_1 = arith.constant 0 : i32
    return %c0_i32, %c0_i32_0 : i32, i32
  }
  func.func @transform_8(%arg0: i32) -> (i32, i32) {
    %c0_i32 = arith.constant 0 : i32
    %c0_i32_0 = arith.constant 0 : i32
    %c0_i32_1 = arith.constant 0 : i32
    return %c0_i32, %c0_i32_0 : i32, i32
  }
  func.func @transform_9(%arg0: i32) -> (i32, i32) {
    %c0_i32 = arith.constant 0 : i32
    %c0_i32_0 = arith.constant 0 : i32
    %c0_i32_1 = arith.constant 0 : i32
    return %c0_i32, %c0_i32_0 : i32, i32
  }
  func.func @transform_10(%arg0: i32) -> (i32, i32) {
    %c0_i32 = arith.constant 0 : i32
    %c0_i32_0 = arith.constant 0 : i32
    %c0_i32_1 = arith.constant 0 : i32
    return %c0_i32, %c0_i32_0 : i32, i32
  }
  func.func @transform_11(%arg0: i32) -> (i32, i32) {
    %c0_i32 = arith.constant 0 : i32
    %c0_i32_0 = arith.constant 0 : i32
    %c0_i32_1 = arith.constant 0 : i32
    return %c0_i32, %c0_i32_0 : i32, i32
  }
  func.func @transform_12(%arg0: i32) -> (i32, i32) {
    %c0_i32 = arith.constant 0 : i32
    %c0_i32_0 = arith.constant 0 : i32
    %c0_i32_1 = arith.constant 0 : i32
    return %c0_i32, %c0_i32_0 : i32, i32
  }
  func.func @transform_13(%arg0: i32) -> (i32, i32) {
    %c0_i32 = arith.constant 0 : i32
    %c0_i32_0 = arith.constant 0 : i32
    %c0_i32_1 = arith.constant 0 : i32
    return %c0_i32, %c0_i32_0 : i32, i32
  }
  func.func @transform_14(%arg0: i32) -> (i32, i32) {
    %c0_i32 = arith.constant 0 : i32
    %c0_i32_0 = arith.constant 0 : i32
    %c0_i32_1 = arith.constant 0 : i32
    return %c0_i32, %c0_i32_0 : i32, i32
  }
  func.func @transform_15(%arg0: i32) -> (i32, i32) {
    %c0_i32 = arith.constant 0 : i32
    %c0_i32_0 = arith.constant 0 : i32
    %c0_i32_1 = arith.constant 0 : i32
    return %c0_i32, %c0_i32_0 : i32, i32
  }
  func.func @transform_16(%arg0: i32) -> (i32, i32) {
    %c0_i32 = arith.constant 0 : i32
    %c0_i32_0 = arith.constant 0 : i32
    %c0_i32_1 = arith.constant 0 : i32
    return %c0_i32, %c0_i32_0 : i32, i32
  }
  func.func @transform_17(%arg0: i32) -> (i32, i32) {
    %c0_i32 = arith.constant 0 : i32
    %c0_i32_0 = arith.constant 0 : i32
    %c0_i32_1 = arith.constant 0 : i32
    return %c0_i32, %c0_i32_0 : i32, i32
  }
  func.func @transform_18(%arg0: i32) -> (i32, i32) {
    %c0_i32 = arith.constant 0 : i32
    %c0_i32_0 = arith.constant 0 : i32
    %c0_i32_1 = arith.constant 0 : i32
    return %c0_i32, %c0_i32_0 : i32, i32
  }
}

</mosaic_0001>

<llo_original>
// kernel: tpu_custom_call.1
$region0: #{tpu_custom_call.1}
  #allocation0 [shape = 'u32[]', space=smem, size = 0x4, offset = 0x4, fixed_abs, tag = 'smem constant byte address 0x4 - core index']
  #allocation1 [shape = 'u32[144,128]{1,0:T(1,128)}', space=vmem, size = 0x12000, scoped, tag = 'internal scratch']
  %s0 = inlined_call_operand.hbm [shape: f32[32,128], index: 0, kind: input, shape index: {}]
  %s1 = inlined_call_operand.hbm [shape: f32[7,32,32], index: 1, kind: input, shape index: {}]
  %s2 = inlined_call_operand.hbm [shape: f32[1,128], index: 2, kind: input, shape index: {}]
  %s3 = inlined_call_operand.hbm [shape: f32[3,384,128], index: 3, kind: input, shape index: {}]
  %s4 = inlined_call_operand.vmem [shape: f32[3,128], index: 4, kind: input, shape index: {}]
  %s5 = inlined_call_operand.vmem [shape: f32[3,128], index: 5, kind: input, shape index: {}]
  %s6 = inlined_call_operand.vmem [shape: f32[3,128], index: 6, kind: input, shape index: {}]
  %s7 = inlined_call_operand.vmem [shape: f32[3,128], index: 7, kind: input, shape index: {}]
  %s8 = inlined_call_operand.vmem [shape: f32[1,128], index: 8, kind: input, shape index: {}]
  %s9 = inlined_call_operand.vmem [shape: f32[1,128], index: 9, kind: input, shape index: {}]
  %s10 = inlined_call_operand.hbm [shape: f32[128,128], index: 10, kind: input, shape index: {}]
  %s11 = inlined_call_operand.hbm [shape: f32[384,256], index: 11, kind: input, shape index: {}]
  %s12 = inlined_call_operand.vmem [shape: f32[1,256], index: 12, kind: input, shape index: {}]
  %s13 = inlined_call_operand.vmem [shape: f32[1,256], index: 13, kind: input, shape index: {}]
  %s14 = inlined_call_operand.hbm [shape: f32[256,256], index: 14, kind: input, shape index: {}]
  %s15 = inlined_call_operand.vmem [shape: f32[32,32], index: 15, kind: input, shape index: {}]
  %s16 = inlined_call_operand.hbm [shape: f32[256,256], index: 16, kind: input, shape index: {}]
  %s17 = inlined_call_operand.vmem [shape: f32[1,256], index: 17, kind: input, shape index: {}]
  %s18 = inlined_call_operand.hbm [shape: f32[32,256], index: 18, kind: output, shape index: {}]
  %s19 = sld [smem:[#allocation0]]
  $region114: #{tpu_custom_call.1} parent=0
    _
  %s21 = ssub.s32 1, %s19
  %s22 = scalar_select 0, %s21, %s19
  $region1: #{tpu_custom_call.1} parent=0
    #allocation2 [shape = 'u8[16384]{0}', space=vmem, size = 0x4000, scoped, tag = 'input window, operand 0, single buffered']
    #allocation3 [shape = 's32[1]{0}', space=sflag, size = 0x4, scoped, tag = 'scoped memory for tpu_custom_call.1']
    #allocation4 [shape = 's32[1]{0}', space=sflag, size = 0x4, scoped, tag = 'scoped memory for tpu_custom_call.1']
    #allocation5 [shape = 'u8[114688]{0}', space=vmem, size = 0x1c000, scoped, tag = 'input window, operand 1, single buffered']
    #allocation6 [shape = 's32[1]{0}', space=sflag, size = 0x4, scoped, tag = 'scoped memory for tpu_custom_call.1']
    #allocation7 [shape = 'u8[512]{0}', space=vmem, size = 0x400, scoped, tag = 'input window, operand 2, single buffered']
    #allocation8 [shape = 'u8[589824]{0}', space=vmem, size = 0x90000, scoped, tag = 'input window, operand 3, single buffered']
    #allocation9 [shape = 's32[1]{0}', space=sflag, size = 0x4, scoped, tag = 'scoped memory for tpu_custom_call.1']
    #allocation10 [shape = 'u8[65536]{0}', space=vmem, size = 0x10000, scoped, tag = 'input window, operand 10, single buffered']
    #allocation11 [shape = 'u8[393216]{0}', space=vmem, size = 0x60000, scoped, tag = 'input window, operand 11, single buffered']
    #allocation12 [shape = 's32[1]{0}', space=sflag, size = 0x4, scoped, tag = 'scoped memory for tpu_custom_call.1']
    #allocation13 [shape = 'u8[262144]{0}', space=vmem, size = 0x40000, scoped, tag = 'input window, operand 14, single buffered']
    #allocation14 [shape = 'u8[262144]{0}', space=vmem, size = 0x40000, scoped, tag = 'input window, operand 16, single buffered']
    #allocation15 [shape = 's32[1]{0}', space=sflag, size = 0x4, scoped, tag = 'scoped memory for tpu_custom_call.1']
    #allocation16 [shape = 'u8[32768]{0}', space=vmem, size = 0x8000, scoped, tag = 'output window, operand 0, single buffered']
    %23 = vsyncpa [#allocation3], 0
    %24 = vsyncpa [#allocation6], 0
    %25 = vsyncpa [#allocation9], 0
    %26 = vsyncpa [#allocation12], 0
    %27 = vsyncpa [#allocation15], 0
    %28 = vsyncpa [#allocation4], 0
    // Predicated region
    $region2: #{tpu_custom_call.1} parent=1 // pred_check
      _
    $region3: #{tpu_custom_call.1} parent=1 // pred_check_branch
      %30 = sbr.rel (0) target = $region5
    $region4: #{tpu_custom_call.1} parent=1 // pred_region
      %s32 = ssub.s32 512, 512
      %33 = vsyncadd [#allocation3], %s32
      %s34 = sshll.u32 [#allocation2], 4
      %s35 = int_to_ptr.vmem [resolvable:$true] %s34
      %40 = dma.hbm_to_vmem [thread:$0]  %s0, 512, %s35, [#allocation3], 128, 128, 8
    $region5: #{tpu_custom_call.1} parent=1 // pred_fallthru
      _
    // Predicated region
    $region6: #{tpu_custom_call.1} parent=1 // pred_check
      _
    $region7: #{tpu_custom_call.1} parent=1 // pred_check_branch
      %42 = sbr.rel (0) target = $region9
    $region8: #{tpu_custom_call.1} parent=1 // pred_region
      %s44 = ssub.s32 3584, 3584
      %45 = vsyncadd [#allocation6], %s44
      %s46 = sshll.u32 [#allocation5], 4
      %s47 = int_to_ptr.vmem [resolvable:$true] %s46
      %52 = dma.hbm_to_vmem [thread:$0]  %s1, 3584, %s47, [#allocation6], 128, 128, 8
    $region9: #{tpu_custom_call.1} parent=1 // pred_fallthru
      _
    // Predicated region
    $region10: #{tpu_custom_call.1} parent=1 // pred_check
      _
    $region11: #{tpu_custom_call.1} parent=1 // pred_check_branch
      %54 = sbr.rel (0) target = $region13
    $region12: #{tpu_custom_call.1} parent=1 // pred_region
      %s56 = ssub.s32 16, 16
      %57 = vsyncadd [#allocation6], %s56
      %s59 = sshll.u32 [#allocation7], 4
      %s60 = int_to_ptr.vmem [resolvable:$true] %s59
      %62 = dma.hbm_to_vmem [thread:$0]  %s2, 16, %s60, [#allocation6]
    $region13: #{tpu_custom_call.1} parent=1 // pred_fallthru
      _
    // Predicated region
    $region14: #{tpu_custom_call.1} parent=1 // pred_check
      _
    $region15: #{tpu_custom_call.1} parent=1 // pred_check_branch
      %64 = sbr.rel (0) target = $region17
    $region16: #{tpu_custom_call.1} parent=1 // pred_region
      %s66 = ssub.s32 18432, 18432
      %67 = vsyncadd [#allocation9], %s66
      %s68 = sshll.u32 [#allocation8], 4
      %s69 = int_to_ptr.vmem [resolvable:$true] %s68
      %74 = dma.hbm_to_vmem [thread:$0]  %s3, 18432, %s69, [#allocation9], 128, 128, 8
    $region17: #{tpu_custom_call.1} parent=1 // pred_fallthru
      _
    // Predicated region
    $region18: #{tpu_custom_call.1} parent=1 // pred_check
      _
    $region19: #{tpu_custom_call.1} parent=1 // pred_check_branch
      %76 = sbr.rel (0) target = $region21
    $region20: #{tpu_custom_call.1} parent=1 // pred_region
      _
    $region21: #{tpu_custom_call.1} parent=1 // pred_fallthru
      _
    // Predicated region
    $region22: #{tpu_custom_call.1} parent=1 // pred_check
      _
    $region23: #{tpu_custom_call.1} parent=1 // pred_check_branch
      %78 = sbr.rel (0) target = $region25
    $region24: #{tpu_custom_call.1} parent=1 // pred_region
      _
    $region25: #{tpu_custom_call.1} parent=1 // pred_fallthru
      _
    // Predicated region
    $region26: #{tpu_custom_call.1} parent=1 // pred_check
      _
    $region27: #{tpu_custom_call.1} parent=1 // pred_check_branch
      %80 = sbr.rel (0) target = $region29
    $region28: #{tpu_custom_call.1} parent=1 // pred_region
      _
    $region29: #{tpu_custom_call.1} parent=1 // pred_fallthru
      _
    // Predicated region
    $region30: #{tpu_custom_call.1} parent=1 // pred_check
      _
    $region31: #{tpu_custom_call.1} parent=1 // pred_check_branch
      %82 = sbr.rel (0) target = $region33
    $region32: #{tpu_custom_call.1} parent=1 // pred_region
      _
    $region33: #{tpu_custom_call.1} parent=1 // pred_fallthru
      _
    // Predicated region
    $region34: #{tpu_custom_call.1} parent=1 // pred_check
      _
    $region35: #{tpu_custom_call.1} parent=1 // pred_check_branch
      %84 = sbr.rel (0) target = $region37
    $region36: #{tpu_custom_call.1} parent=1 // pred_region
      _
    $region37: #{tpu_custom_call.1} parent=1 // pred_fallthru
      _
    // Predicated region
    $region38: #{tpu_custom_call.1} parent=1 // pred_check
      _
    $region39: #{tpu_custom_call.1} parent=1 // pred_check_branch
      %86 = sbr.rel (0) target = $region41
    $region40: #{tpu_custom_call.1} parent=1 // pred_region
      _
    $region41: #{tpu_custom_call.1} parent=1 // pred_fallthru
      _
    // Predicated region
    $region42: #{tpu_custom_call.1} parent=1 // pred_check
      _
    $region43: #{tpu_custom_call.1} parent=1 // pred_check_branch
      %88 = sbr.rel (0) target = $region45
    $region44: #{tpu_custom_call.1} parent=1 // pred_region
      %s90 = ssub.s32 2048, 2048
      %91 = vsyncadd [#allocation9], %s90
      %s92 = sshll.u32 [#allocation10], 4
      %s93 = int_to_ptr.vmem [resolvable:$true] %s92
      %98 = dma.hbm_to_vmem [thread:$0]  %s10, 2048, %s93, [#allocation9], 128, 128, 8
    $region45: #{tpu_custom_call.1} parent=1 // pred_fallthru
      _
    // Predicated region
    $region46: #{tpu_custom_call.1} parent=1 // pred_check
      _
    $region47: #{tpu_custom_call.1} parent=1 // pred_check_branch
      %100 = sbr.rel (0) target = $region49
    $region48: #{tpu_custom_call.1} parent=1 // pred_region
      %s102 = ssub.s32 12288, 12288
      %103 = vsyncadd [#allocation12], %s102
      %s104 = sshll.u32 [#allocation11], 4
      %s105 = int_to_ptr.vmem [resolvable:$true] %s104
      %110 = dma.hbm_to_vmem [thread:$0]  %s11, 12288, %s105, [#allocation12], 256, 256, 16
    $region49: #{tpu_custom_call.1} parent=1 // pred_fallthru
      _
    // Predicated region
    $region50: #{tpu_custom_call.1} parent=1 // pred_check
      _
    $region51: #{tpu_custom_call.1} parent=1 // pred_check_branch
      %112 = sbr.rel (0) target = $region53
    $region52: #{tpu_custom_call.1} parent=1 // pred_region
      _
    $region53: #{tpu_custom_call.1} parent=1 // pred_fallthru
      _
    // Predicated region
    $region54: #{tpu_custom_call.1} parent=1 // pred_check
      _
    $region55: #{tpu_custom_call.1} parent=1 // pred_check_branch
      %114 = sbr.rel (0) target = $region57
    $region56: #{tpu_custom_call.1} parent=1 // pred_region
      _
    $region57: #{tpu_custom_call.1} parent=1 // pred_fallthru
      _
    // Predicated region
    $region58: #{tpu_custom_call.1} parent=1 // pred_check
      _
    $region59: #{tpu_custom_call.1} parent=1 // pred_check_branch
      %116 = sbr.rel (0) target = $region61
    $region60: #{tpu_custom_call.1} parent=1 // pred_region
      %s118 = ssub.s32 8192, 8192
      %119 = vsyncadd [#allocation12], %s118
      %s120 = sshll.u32 [#allocation13], 4
      %s121 = int_to_ptr.vmem [resolvable:$true] %s120
      %126 = dma.hbm_to_vmem [thread:$0]  %s14, 8192, %s121, [#allocation12], 256, 256, 16
    $region61: #{tpu_custom_call.1} parent=1 // pred_fallthru
      _
    // Predicated region
    $region62: #{tpu_custom_call.1} parent=1 // pred_check
      _
    $region63: #{tpu_custom_call.1} parent=1 // pred_check_branch
      %128 = sbr.rel (0) target = $region65
    $region64: #{tpu_custom_call.1} parent=1 // pred_region
      _
    $region65: #{tpu_custom_call.1} parent=1 // pred_fallthru
      _
    // Predicated region
    $region66: #{tpu_custom_call.1} parent=1 // pred_check
      _
    $region67: #{tpu_custom_call.1} parent=1 // pred_check_branch
      %130 = sbr.rel (0) target = $region69
    $region68: #{tpu_custom_call.1} parent=1 // pred_region
      %s132 = ssub.s32 8192, 8192
      %133 = vsyncadd [#allocation15], %s132
      %s134 = sshll.u32 [#allocation14], 4
      %s135 = int_to_ptr.vmem [resolvable:$true] %s134
      %140 = dma.hbm_to_vmem [thread:$0]  %s16, 8192, %s135, [#allocation15], 256, 256, 16
    $region69: #{tpu_custom_call.1} parent=1 // pred_fallthru
      _
    // Predicated region
    $region70: #{tpu_custom_call.1} parent=1 // pred_check
      _
    $region71: #{tpu_custom_call.1} parent=1 // pred_check_branch
      %142 = sbr.rel (0) target = $region73
    $region72: #{tpu_custom_call.1} parent=1 // pred_region
      _
    $region73: #{tpu_custom_call.1} parent=1 // pred_fallthru
      _
    // Predicated region
    $region74: #{tpu_custom_call.1} parent=1 // pred_check
      _
    $region75: #{tpu_custom_call.1} parent=1 // pred_check_branch
      %144 = sbr.rel (0) target = $region77
    $region76: #{tpu_custom_call.1} parent=1 // pred_region
      %145 = dma.done [#allocation3], 512
    $region77: #{tpu_custom_call.1} parent=1 // pred_fallthru
      _
    // Predicated region
    $region78: #{tpu_custom_call.1} parent=1 // pred_check
      _
    $region79: #{tpu_custom_call.1} parent=1 // pred_check_branch
      %147 = sbr.rel (0) target = $region81
    $region80: #{tpu_custom_call.1} parent=1 // pred_region
      %148 = dma.done [#allocation6], 3584
    $region81: #{tpu_custom_call.1} parent=1 // pred_fallthru
      _
    // Predicated region
    $region82: #{tpu_custom_call.1} parent=1 // pred_check
      _
    $region83: #{tpu_custom_call.1} parent=1 // pred_check_branch
      %150 = sbr.rel (0) target = $region85
    $region84: #{tpu_custom_call.1} parent=1 // pred_region
      %151 = dma.done [#allocation6], 16
    $region85: #{tpu_custom_call.1} parent=1 // pred_fallthru
      _
    // Predicated region
    $region86: #{tpu_custom_call.1} parent=1 // pred_check
      _
    $region87: #{tpu_custom_call.1} parent=1 // pred_check_branch
      %153 = sbr.rel (0) target = $region89
    $region88: #{tpu_custom_call.1} parent=1 // pred_region
      %154 = dma.done [#allocation9], 18432
    $region89: #{tpu_custom_call.1} parent=1 // pred_fallthru
      _
    // Predicated region
    $region90: #{tpu_custom_call.1} parent=1 // pred_check
      _
    $region91: #{tpu_custom_call.1} parent=1 // pred_check_branch
      %156 = sbr.rel (0) target = $region93
    $region92: #{tpu_custom_call.1} parent=1 // pred_region
      %157 = dma.done [#allocation9], 2048
    $region93: #{tpu_custom_call.1} parent=1 // pred_fallthru
      _
    // Predicated region
    $region94: #{tpu_custom_call.1} parent=1 // pred_check
      _
    $region95: #{tpu_custom_call.1} parent=1 // pred_check_branch
      %159 = sbr.rel (0) target = $region97
    $region96: #{tpu_custom_call.1} parent=1 // pred_region
      %160 = dma.done [#allocation12], 12288
    $region97: #{tpu_custom_call.1} parent=1 // pred_fallthru
      _
    // Predicated region
    $region98: #{tpu_custom_call.1} parent=1 // pred_check
      _
    $region99: #{tpu_custom_call.1} parent=1 // pred_check_branch
      %162 = sbr.rel (0) target = $region101
    $region100: #{tpu_custom_call.1} parent=1 // pred_region
      %163 = dma.done [#allocation12], 8192
    $region101: #{tpu_custom_call.1} parent=1 // pred_fallthru
      _
    // Predicated region
    $region102: #{tpu_custom_call.1} parent=1 // pred_check
      _
    $region103: #{tpu_custom_call.1} parent=1 // pred_check_branch
      %165 = sbr.rel (0) target = $region105
    $region104: #{tpu_custom_call.1} parent=1 // pred_region
      %166 = dma.done [#allocation15], 8192
    $region105: #{tpu_custom_call.1} parent=1 // pred_fallthru
      _
    %v167 = vld [vmem:[#allocation2] sm:$0xff]
    %v168 = vld [vmem:[#allocation2 + $0x8] sm:$0xff]
    %v169 = vld [vmem:[#allocation2 + $0x10] sm:$0xff]
    %v170 = vld [vmem:[#allocation2 + $0x18] sm:$0xff]
    %v171 = vld [vmem:[#allocation7] sm:$0x1]
    %v173 = vlaneseq
    %v174 = vshrl.u32 %v173, 7
    %v175 = vsub.s32 0, %v174
    %v176 = vrot.slane %v171, %v175
    %v178 = vadd.f32 %v167, %v176
    %v179 = vadd.f32 %v168, %v176
    %v180 = vadd.f32 %v169, %v176
    %v181 = vadd.f32 %v170, %v176
    %vm182 = vcmp.gt.f32.partialorder %v178, 0.0
    %vm183 = vcmp.gt.f32.partialorder %v179, 0.0
    %vm184 = vcmp.gt.f32.partialorder %v180, 0.0
    %vm185 = vcmp.gt.f32.partialorder %v181, 0.0
    %vm186 = vcmp.lt.f32.partialorder %v178, 0.0
    %vm187 = vcmp.lt.f32.partialorder %v179, 0.0
    %vm188 = vcmp.lt.f32.partialorder %v180, 0.0
    %vm189 = vcmp.lt.f32.partialorder %v181, 0.0
    %v190 = vsel %vm186, -1.0, 0.0
    %v191 = vsel %vm187, -1.0, 0.0
    %v192 = vsel %vm188, -1.0, 0.0
    %v193 = vsel %vm189, -1.0, 0.0
    %v194 = vsel %vm182, 1.0, %v190
    %v195 = vsel %vm183, 1.0, %v191
    %v196 = vsel %vm184, 1.0, %v192
    %v197 = vsel %vm185, 1.0, %v193
    %v198 = vld [vmem:[#allocation5] sm:$0xff]
    %v199 = vld [vmem:[#allocation5 + $0x8] sm:$0xff]
    %v200 = vld [vmem:[#allocation5 + $0x10] sm:$0xff]
    %v201 = vld [vmem:[#allocation5 + $0x18] sm:$0xff]
    %vm202 = vcmask 261120
    %v204 = vsel %vm202, %v198, 0
    %v207 = vsel %vm202, %v199, 0
    %v210 = vsel %vm202, %v200, 0
    %v213 = vsel %vm202, %v201, 0
    %215 = vmatprep.subr.mxu0 0.0
    %216 = vmatpush1.msra.mxu0 %v194
    %217 = vmatprep.subr.mxu0 0.0
    %218 = vmatpush1.msra.mxu0 %v195
    %219 = vmatprep.subr.mxu0 0.0
    %220 = vmatpush1.msra.mxu0 %v196
    %221 = vmatprep.subr.mxu0 0.0
    %222 = vmatpush1.msra.mxu0 %v197
    %223 = vmatprep.subr.mxu0 0.0
    %224 = vmatpush1.msra.mxu0 0.0
    %225 = vmatprep.subr.mxu0 0.0
    %226 = vmatpush1.msra.mxu0 0.0
    %227 = vmatprep.subr.mxu0 0.0
    %228 = vmatpush1.msra.mxu0 0.0
    %229 = vmatprep.subr.mxu0 0.0
    %230 = vmatpush1.msra.mxu0 0.0
    %231 = vmatprep.subr.mxu0 0.0
    %232 = vmatpush1.msra.mxu0 0.0
    %233 = vmatprep.subr.mxu0 0.0
    %234 = vmatpush1.msra.mxu0 0.0
    %235 = vmatprep.subr.mxu0 0.0
    %236 = vmatpush1.msra.mxu0 0.0
    %237 = vmatprep.subr.mxu0 0.0
    %238 = vmatpush1.msra.mxu0 0.0
    %239 = vmatprep.subr.mxu0 0.0
    %240 = vmatpush1.msra.mxu0 0.0
    %241 = vmatprep.subr.mxu0 0.0
    %242 = vmatpush1.msra.mxu0 0.0
    %243 = vmatprep.subr.mxu0 0.0
    %244 = vmatpush1.msra.mxu0 0.0
    %245 = vmatprep.subr.mxu0 0.0
    %246 = vmatpush1.msra.mxu0 0.0
    %247 = vmatprep.subr.mxu0 0.0
    %248 = vmatpush1.msra.mxu0 0.0
    %249 = vmatprep.subr.mxu0 0.0
    %250 = vmatpush1.msra.mxu0 0.0
    %251 = vmatprep.subr.mxu0 0.0
    %252 = vmatpush1.msra.mxu0 0.0
    %253 = vmatprep.subr.mxu0 0.0
    %254 = vmatpush1.msra.mxu0 0.0
    %255 = vmatprep.subr.mxu0 0.0
    %256 = vmatpush1.msra.mxu0 0.0
    %257 = vmatprep.subr.mxu0 0.0
    %258 = vmatpush1.msra.mxu0 0.0
    %259 = vmatprep.subr.mxu0 0.0
    %260 = vmatpush1.msra.mxu0 0.0
    %261 = vmatprep.subr.mxu0 0.0
    %262 = vmatpush1.msra.mxu0 0.0
    %263 = vmatprep.subr.mxu0 0.0
    %264 = vmatpush1.msra.mxu0 0.0
    %265 = vmatprep.subr.mxu0 0.0
    %266 = vmatpush1.msra.mxu0 0.0
    %267 = vmatprep.subr.mxu0 0.0
    %268 = vmatpush1.msra.mxu0 0.0
    %269 = vmatprep.subr.mxu0 0.0
    %270 = vmatpush1.msra.mxu0 0.0
    %271 = vmatprep.subr.mxu0 0.0
    %272 = vmatpush1.msra.mxu0 0.0
    %273 = vmatprep.subr.mxu0 0.0
    %274 = vmatpush1.msra.mxu0 0.0
    %275 = vmatprep.subr.mxu0 0.0
    %276 = vmatpush1.msra.mxu0 0.0
    %277 = vmatprep.subr.mxu0 0.0
    %278 = vmatpush1.msra.mxu0 0.0
    %279 = vmatprep.mubr.f32.mxu0 0.0
    %280 = vmatmul.mubr.f32.gmra.mrb[0].mxu0 %v204
    %v281 = vpop.f32.mrb[0].mxu0
    %v282 = vadd.f32 0.0, %v281
    %v283 = vpop.f32.mrb[0].mxu0
    %284 = vmatprep.mubr.f32.mxu0 0.0
    %285 = vmatmul.mubr.f32.gmra.mrb[0].mxu0 %v207
    %v286 = vpop.f32.mrb[0].mxu0
    %v287 = vadd.f32 0.0, %v286
    %v288 = vpop.f32.mrb[0].mxu0
    %289 = vmatprep.mubr.f32.mxu0 0.0
    %290 = vmatmul.mubr.f32.gmra.mrb[0].mxu0 %v210
    %v291 = vpop.f32.mrb[0].mxu0
    %v292 = vadd.f32 0.0, %v291
    %v293 = vpop.f32.mrb[0].mxu0
    %294 = vmatprep.mubr.f32.mxu0 0.0
    %295 = vmatmul.mubr.f32.gmra.mrb[0].mxu0 %v213
    %v296 = vpop.f32.mrb[0].mxu0
    %v297 = vadd.f32 0.0, %v296
    %v298 = vpop.f32.mrb[0].mxu0
    %299 = vdwg.mxu0
    %s300 = scalar_lea.vmem [#allocation5], 32
    %v301 = vld [vmem:[%s300] sm:$0xff]
    %v302 = vld [vmem:[%s300 + $0x8] sm:$0xff]
    %v303 = vld [vmem:[%s300 + $0x10] sm:$0xff]
    %v304 = vld [vmem:[%s300 + $0x18] sm:$0xff]
    %v306 = vsel %vm202, %v301, 0
    %v309 = vsel %vm202, %v302, 0
    %v312 = vsel %vm202, %v303, 0
    %v315 = vsel %vm202, %v304, 0
    %317 = vmatprep.subr.mxu0 0.0
    %318 = vmatpush1.msra.mxu0 %v194
    %319 = vmatprep.subr.mxu0 0.0
    %320 = vmatpush1.msra.mxu0 %v195
    %321 = vmatprep.subr.mxu0 0.0
    %322 = vmatpush1.msra.mxu0 %v196
    %323 = vmatprep.subr.mxu0 0.0
    %324 = vmatpush1.msra.mxu0 %v197
    %325 = vmatprep.subr.mxu0 0.0
    %326 = vmatpush1.msra.mxu0 0.0
    %327 = vmatprep.subr.mxu0 0.0
    %328 = vmatpush1.msra.mxu0 0.0
    %329 = vmatprep.subr.mxu0 0.0
    %330 = vmatpush1.msra.mxu0 0.0
    %331 = vmatprep.subr.mxu0 0.0
    %332 = vmatpush1.msra.mxu0 0.0
    %333 = vmatprep.subr.mxu0 0.0
    %334 = vmatpush1.msra.mxu0 0.0
    %335 = vmatprep.subr.mxu0 0.0
    %336 = vmatpush1.msra.mxu0 0.0
    %337 = vmatprep.subr.mxu0 0.0
    %338 = vmatpush1.msra.mxu0 0.0
    %339 = vmatprep.subr.mxu0 0.0
    %340 = vmatpush1.msra.mxu0 0.0
    %341 = vmatprep.subr.mxu0 0.0
    %342 = vmatpush1.msra.mxu0 0.0
    %343 = vmatprep.subr.mxu0 0.0
    %344 = vmatpush1.msra.mxu0 0.0
    %345 = vmatprep.subr.mxu0 0.0
    %346 = vmatpush1.msra.mxu0 0.0
    %347 = vmatprep.subr.mxu0 0.0
    %348 = vmatpush1.msra.mxu0 0.0
    %349 = vmatprep.subr.mxu0 0.0
    %350 = vmatpush1.msra.mxu0 0.0
    %351 = vmatprep.subr.mxu0 0.0
    %352 = vmatpush1.msra.mxu0 0.0
    %353 = vmatprep.subr.mxu0 0.0
    %354 = vmatpush1.msra.mxu0 0.0
    %355 = vmatprep.subr.mxu0 0.0
    %356 = vmatpush1.msra.mxu0 0.0
    %357 = vmatprep.subr.mxu0 0.0
    %358 = vmatpush1.msra.mxu0 0.0
    %359 = vmatprep.subr.mxu0 0.0
    %360 = vmatpush1.msra.mxu0 0.0
    %361 = vmatprep.subr.mxu0 0.0
    %362 = vmatpush1.msra.mxu0 0.0
    %363 = vmatprep.subr.mxu0 0.0
    %364 = vmatpush1.msra.mxu0 0.0
    %365 = vmatprep.subr.mxu0 0.0
    %366 = vmatpush1.msra.mxu0 0.0
    %367 = vmatprep.subr.mxu0 0.0
    %368 = vmatpush1.msra.mxu0 0.0
    %369 = vmatprep.subr.mxu0 0.0
    %370 = vmatpush1.msra.mxu0 0.0
    %371 = vmatprep.subr.mxu0 0.0
    %372 = vmatpush1.msra.mxu0 0.0
    %373 = vmatprep.subr.mxu0 0.0
    %374 = vmatpush1.msra.mxu0 0.0
    %375 = vmatprep.subr.mxu0 0.0
    %376 = vmatpush1.msra.mxu0 0.0
    %377 = vmatprep.subr.mxu0 0.0
    %378 = vmatpush1.msra.mxu0 0.0
    %379 = vmatprep.subr.mxu0 0.0
    %380 = vmatpush1.msra.mxu0 0.0
    %381 = vmatprep.mubr.f32.mxu0 0.0
    %382 = vmatmul.mubr.f32.gmra.mrb[0].mxu0 %v306
    %v383 = vpop.f32.mrb[0].mxu0
    %v384 = vadd.f32 0.0, %v383
    %v385 = vpop.f32.mrb[0].mxu0
    %386 = vmatprep.mubr.f32.mxu0 0.0
    %387 = vmatmul.mubr.f32.gmra.mrb[0].mxu0 %v309
    %v388 = vpop.f32.mrb[0].mxu0
    %v389 = vadd.f32 0.0, %v388
    %v390 = vpop.f32.mrb[0].mxu0
    %391 = vmatprep.mubr.f32.mxu0 0.0
    %392 = vmatmul.mubr.f32.gmra.mrb[0].mxu0 %v312
    %v393 = vpop.f32.mrb[0].mxu0
    %v394 = vadd.f32 0.0, %v393
    %v395 = vpop.f32.mrb[0].mxu0
    %396 = vmatprep.mubr.f32.mxu0 0.0
    %397 = vmatmul.mubr.f32.gmra.mrb[0].mxu0 %v315
    %v398 = vpop.f32.mrb[0].mxu0
    %v399 = vadd.f32 0.0, %v398
    %v400 = vpop.f32.mrb[0].mxu0
    %401 = vdwg.mxu0
    %s402 = scalar_lea.vmem [#allocation5], 64
    %v403 = vld [vmem:[%s402] sm:$0xff]
    %v404 = vld [vmem:[%s402 + $0x8] sm:$0xff]
    %v405 = vld [vmem:[%s402 + $0x10] sm:$0xff]
    %v406 = vld [vmem:[%s402 + $0x18] sm:$0xff]
    %v408 = vsel %vm202, %v403, 0
    %v411 = vsel %vm202, %v404, 0
    %v414 = vsel %vm202, %v405, 0
    %v417 = vsel %vm202, %v406, 0
    %419 = vmatprep.subr.mxu0 0.0
    %420 = vmatpush1.msra.mxu0 %v194
    %421 = vmatprep.subr.mxu0 0.0
    %422 = vmatpush1.msra.mxu0 %v195
    %423 = vmatprep.subr.mxu0 0.0
    %424 = vmatpush1.msra.mxu0 %v196
    %425 = vmatprep.subr.mxu0 0.0
    %426 = vmatpush1.msra.mxu0 %v197
    %427 = vmatprep.subr.mxu0 0.0
    %428 = vmatpush1.msra.mxu0 0.0
    %429 = vmatprep.subr.mxu0 0.0
    %430 = vmatpush1.msra.mxu0 0.0
    %431 = vmatprep.subr.mxu0 0.0
    %432 = vmatpush1.msra.mxu0 0.0
    %433 = vmatprep.subr.mxu0 0.0
    %434 = vmatpush1.msra.mxu0 0.0
    %435 = vmatprep.subr.mxu0 0.0
    %436 = vmatpush1.msra.mxu0 0.0
    %437 = vmatprep.subr.mxu0 0.0
    %438 = vmatpush1.msra.mxu0 0.0
    %439 = vmatprep.subr.mxu0 0.0
    %440 = vmatpush1.msra.mxu0 0.0
    %441 = vmatprep.subr.mxu0 0.0
    %442 = vmatpush1.msra.mxu0 0.0
    %443 = vmatprep.subr.mxu0 0.0
    %444 = vmatpush1.msra.mxu0 0.0
    %445 = vmatprep.subr.mxu0 0.0
    %446 = vmatpush1.msra.mxu0 0.0
    %447 = vmatprep.subr.mxu0 0.0
    %448 = vmatpush1.msra.mxu0 0.0
    %449 = vmatprep.subr.mxu0 0.0
    %450 = vmatpush1.msra.mxu0 0.0
    %451 = vmatprep.subr.mxu0 0.0
    %452 = vmatpush1.msra.mxu0 0.0
    %453 = vmatprep.subr.mxu0 0.0
    %454 = vmatpush1.msra.mxu0 0.0
    %455 = vmatprep.subr.mxu0 0.0
    %456 = vmatpush1.msra.mxu0 0.0
    %457 = vmatprep.subr.mxu0 0.0
    %458 = vmatpush1.msra.mxu0 0.0
    %459 = vmatprep.subr.mxu0 0.0
    %460 = vmatpush1.msra.mxu0 0.0
    %461 = vmatprep.subr.mxu0 0.0
    %462 = vmatpush1.msra.mxu0 0.0
    %463 = vmatprep.subr.mxu0 0.0
    %464 = vmatpush1.msra.mxu0 0.0
    %465 = vmatprep.subr.mxu0 0.0
    %466 = vmatpush1.msra.mxu0 0.0
    %467 = vmatprep.subr.mxu0 0.0
    %468 = vmatpush1.msra.mxu0 0.0
    %469 = vmatprep.subr.mxu0 0.0
    %470 = vmatpush1.msra.mxu0 0.0
    %471 = vmatprep.subr.mxu0 0.0
    %472 = vmatpush1.msra.mxu0 0.0
    %473 = vmatprep.subr.mxu0 0.0
    %474 = vmatpush1.msra.mxu0 0.0
    %475 = vmatprep.subr.mxu0 0.0
    %476 = vmatpush1.msra.mxu0 0.0
    %477 = vmatprep.subr.mxu0 0.0
    %478 = vmatpush1.msra.mxu0 0.0
    %479 = vmatprep.subr.mxu0 0.0
    %480 = vmatpush1.msra.mxu0 0.0
    %481 = vmatprep.subr.mxu0 0.0
    %482 = vmatpush1.msra.mxu0 0.0
    %483 = vmatprep.mubr.f32.mxu0 0.0
    %484 = vmatmul.mubr.f32.gmra.mrb[0].mxu0 %v408
    %v485 = vpop.f32.mrb[0].mxu0
    %v486 = vadd.f32 0.0, %v485
    %v487 = vpop.f32.mrb[0].mxu0
    %488 = vmatprep.mubr.f32.mxu0 0.0
    %489 = vmatmul.mubr.f32.gmra.mrb[0].mxu0 %v411
    %v490 = vpop.f32.mrb[0].mxu0
    %v491 = vadd.f32 0.0, %v490
    %v492 = vpop.f32.mrb[0].mxu0
    %493 = vmatprep.mubr.f32.mxu0 0.0
    %494 = vmatmul.mubr.f32.gmra.mrb[0].mxu0 %v414
    %v495 = vpop.f32.mrb[0].mxu0
    %v496 = vadd.f32 0.0, %v495
    %v497 = vpop.f32.mrb[0].mxu0
    %498 = vmatprep.mubr.f32.mxu0 0.0
    %499 = vmatmul.mubr.f32.gmra.mrb[0].mxu0 %v417
    %v500 = vpop.f32.mrb[0].mxu0
    %v501 = vadd.f32 0.0, %v500
    %v502 = vpop.f32.mrb[0].mxu0
    %503 = vdwg.mxu0
    %s504 = scalar_lea.vmem [#allocation5], 128
    %v505 = vld [vmem:[%s504] sm:$0xff]
    %v506 = vld [vmem:[%s504 + $0x8] sm:$0xff]
    %v507 = vld [vmem:[%s504 + $0x10] sm:$0xff]
    %v508 = vld [vmem:[%s504 + $0x18] sm:$0xff]
    %v510 = vsel %vm202, %v505, 0
    %v513 = vsel %vm202, %v506, 0
    %v516 = vsel %vm202, %v507, 0
    %v519 = vsel %vm202, %v508, 0
    %521 = vmatprep.subr.mxu0 0.0
    %522 = vmatpush1.msra.mxu0 %v194
    %523 = vmatprep.subr.mxu0 0.0
    %524 = vmatpush1.msra.mxu0 %v195
    %525 = vmatprep.subr.mxu0 0.0
    %526 = vmatpush1.msra.mxu0 %v196
    %527 = vmatprep.subr.mxu0 0.0
    %528 = vmatpush1.msra.mxu0 %v197
    %529 = vmatprep.subr.mxu0 0.0
    %530 = vmatpush1.msra.mxu0 0.0
    %531 = vmatprep.subr.mxu0 0.0
    %532 = vmatpush1.msra.mxu0 0.0
    %533 = vmatprep.subr.mxu0 0.0
    %534 = vmatpush1.msra.mxu0 0.0
    %535 = vmatprep.subr.mxu0 0.0
    %536 = vmatpush1.msra.mxu0 0.0
    %537 = vmatprep.subr.mxu0 0.0
    %538 = vmatpush1.msra.mxu0 0.0
    %539 = vmatprep.subr.mxu0 0.0
    %540 = vmatpush1.msra.mxu0 0.0
    %541 = vmatprep.subr.mxu0 0.0
    %542 = vmatpush1.msra.mxu0 0.0
    %543 = vmatprep.subr.mxu0 0.0
    %544 = vmatpush1.msra.mxu0 0.0
    %545 = vmatprep.subr.mxu0 0.0
    %546 = vmatpush1.msra.mxu0 0.0
    %547 = vmatprep.subr.mxu0 0.0
    %548 = vmatpush1.msra.mxu0 0.0
    %549 = vmatprep.subr.mxu0 0.0
    %550 = vmatpush1.msra.mxu0 0.0
    %551 = vmatprep.subr.mxu0 0.0
    %552 = vmatpush1.msra.mxu0 0.0
    %553 = vmatprep.subr.mxu0 0.0
    %554 = vmatpush1.msra.mxu0 0.0
    %555 = vmatprep.subr.mxu0 0.0
    %556 = vmatpush1.msra.mxu0 0.0
    %557 = vmatprep.subr.mxu0 0.0
    %558 = vmatpush1.msra.mxu0 0.0
    %559 = vmatprep.subr.mxu0 0.0
    %560 = vmatpush1.msra.mxu0 0.0
    %561 = vmatprep.subr.mxu0 0.0
    %562 = vmatpush1.msra.mxu0 0.0
    %563 = vmatprep.subr.mxu0 0.0
    %564 = vmatpush1.msra.mxu0 0.0
    %565 = vmatprep.subr.mxu0 0.0
    %566 = vmatpush1.msra.mxu0 0.0
    %567 = vmatprep.subr.mxu0 0.0
    %568 = vmatpush1.msra.mxu0 0.0
    %569 = vmatprep.subr.mxu0 0.0
    %570 = vmatpush1.msra.mxu0 0.0
    %571 = vmatprep.subr.mxu0 0.0
    %572 = vmatpush1.msra.mxu0 0.0
    %573 = vmatprep.subr.mxu0 0.0
    %574 = vmatpush1.msra.mxu0 0.0
    %575 = vmatprep.subr.mxu0 0.0
    %576 = vmatpush1.msra.mxu0 0.0
    %577 = vmatprep.subr.mxu0 0.0
    %578 = vmatpush1.msra.mxu0 0.0
    %579 = vmatprep.subr.mxu0 0.0
    %580 = vmatpush1.msra.mxu0 0.0
    %581 = vmatprep.subr.mxu0 0.0
    %582 = vmatpush1.msra.mxu0 0.0
    %583 = vmatprep.subr.mxu0 0.0
    %584 = vmatpush1.msra.mxu0 0.0
    %585 = vmatprep.mubr.f32.mxu0 0.0
    %586 = vmatmul.mubr.f32.gmra.mrb[0].mxu0 %v510
    %v587 = vpop.f32.mrb[0].mxu0
    %v588 = vadd.f32 0.0, %v587
    %v589 = vpop.f32.mrb[0].mxu0
    %590 = vmatprep.mubr.f32.mxu0 0.0
    %591 = vmatmul.mubr.f32.gmra.mrb[0].mxu0 %v513
    %v592 = vpop.f32.mrb[0].mxu0
    %v593 = vadd.f32 0.0, %v592
    %v594 = vpop.f32.mrb[0].mxu0
    %595 = vmatprep.mubr.f32.mxu0 0.0
    %596 = vmatmul.mubr.f32.gmra.mrb[0].mxu0 %v516
    %v597 = vpop.f32.mrb[0].mxu0
    %v598 = vadd.f32 0.0, %v597
    %v599 = vpop.f32.mrb[0].mxu0
    %600 = vmatprep.mubr.f32.mxu0 0.0
    %601 = vmatmul.mubr.f32.gmra.mrb[0].mxu0 %v519
    %v602 = vpop.f32.mrb[0].mxu0
    %v603 = vadd.f32 0.0, %v602
    %v604 = vpop.f32.mrb[0].mxu0
    %605 = vdwg.mxu0
    %s606 = scalar_lea.vmem [#allocation5], 160
    %v607 = vld [vmem:[%s606] sm:$0xff]
    %v608 = vld [vmem:[%s606 + $0x8] sm:$0xff]
    %v609 = vld [vmem:[%s606 + $0x10] sm:$0xff]
    %v610 = vld [vmem:[%s606 + $0x18] sm:$0xff]
    %v612 = vsel %vm202, %v607, 0
    %v615 = vsel %vm202, %v608, 0
    %v618 = vsel %vm202, %v609, 0
    %v621 = vsel %vm202, %v610, 0
    %623 = vmatprep.subr.mxu0 0.0
    %624 = vmatpush1.msra.mxu0 %v194
    %625 = vmatprep.subr.mxu0 0.0
    %626 = vmatpush1.msra.mxu0 %v195
    %627 = vmatprep.subr.mxu0 0.0
    %628 = vmatpush1.msra.mxu0 %v196
    %629 = vmatprep.subr.mxu0 0.0
    %630 = vmatpush1.msra.mxu0 %v197
    %631 = vmatprep.subr.mxu0 0.0
    %632 = vmatpush1.msra.mxu0 0.0
    %633 = vmatprep.subr.mxu0 0.0
    %634 = vmatpush1.msra.mxu0 0.0
    %635 = vmatprep.subr.mxu0 0.0
    %636 = vmatpush1.msra.mxu0 0.0
    %637 = vmatprep.subr.mxu0 0.0
    %638 = vmatpush1.msra.mxu0 0.0
    %639 = vmatprep.subr.mxu0 0.0
    %640 = vmatpush1.msra.mxu0 0.0
    %641 = vmatprep.subr.mxu0 0.0
    %642 = vmatpush1.msra.mxu0 0.0
    %643 = vmatprep.subr.mxu0 0.0
    %644 = vmatpush1.msra.mxu0 0.0
    %645 = vmatprep.subr.mxu0 0.0
    %646 = vmatpush1.msra.mxu0 0.0
    %647 = vmatprep.subr.mxu0 0.0
    %648 = vmatpush1.msra.mxu0 0.0
    %649 = vmatprep.subr.mxu0 0.0
    %650 = vmatpush1.msra.mxu0 0.0
    %651 = vmatprep.subr.mxu0 0.0
    %652 = vmatpush1.msra.mxu0 0.0
    %653 = vmatprep.subr.mxu0 0.0
    %654 = vmatpush1.msra.mxu0 0.0
    %655 = vmatprep.subr.mxu0 0.0
    %656 = vmatpush1.msra.mxu0 0.0
    %657 = vmatprep.subr.mxu0 0.0
    %658 = vmatpush1.msra.mxu0 0.0
    %659 = vmatprep.subr.mxu0 0.0
    %660 = vmatpush1.msra.mxu0 0.0
    %661 = vmatprep.subr.mxu0 0.0
    %662 = vmatpush1.msra.mxu0 0.0
    %663 = vmatprep.subr.mxu0 0.0
    %664 = vmatpush1.msra.mxu0 0.0
    %665 = vmatprep.subr.mxu0 0.0
    %666 = vmatpush1.msra.mxu0 0.0
    %667 = vmatprep.subr.mxu0 0.0
    %668 = vmatpush1.msra.mxu0 0.0
    %669 = vmatprep.subr.mxu0 0.0
    %670 = vmatpush1.msra.mxu0 0.0
    %671 = vmatprep.subr.mxu0 0.0
    %672 = vmatpush1.msra.mxu0 0.0
    %673 = vmatprep.subr.mxu0 0.0
    %674 = vmatpush1.msra.mxu0 0.0
    %675 = vmatprep.subr.mxu0 0.0
    %676 = vmatpush1.msra.mxu0 0.0
    %677 = vmatprep.subr.mxu0 0.0
    %678 = vmatpush1.msra.mxu0 0.0
    %679 = vmatprep.subr.mxu0 0.0
    %680 = vmatpush1.msra.mxu0 0.0
    %681 = vmatprep.subr.mxu0 0.0
    %682 = vmatpush1.msra.mxu0 0.0
    %683 = vmatprep.subr.mxu0 0.0
    %684 = vmatpush1.msra.mxu0 0.0
    %685 = vmatprep.subr.mxu0 0.0
    %686 = vmatpush1.msra.mxu0 0.0
    %687 = vmatprep.mubr.f32.mxu0 0.0
    %688 = vmatmul.mubr.f32.gmra.mrb[0].mxu0 %v612
    %v689 = vpop.f32.mrb[0].mxu0
    %v690 = vadd.f32 0.0, %v689
    %v691 = vpop.f32.mrb[0].mxu0
    %692 = vmatprep.mubr.f32.mxu0 0.0
    %693 = vmatmul.mubr.f32.gmra.mrb[0].mxu0 %v615
    %v694 = vpop.f32.mrb[0].mxu0
    %v695 = vadd.f32 0.0, %v694
    %v696 = vpop.f32.mrb[0].mxu0
    %697 = vmatprep.mubr.f32.mxu0 0.0
    %698 = vmatmul.mubr.f32.gmra.mrb[0].mxu0 %v618
    %v699 = vpop.f32.mrb[0].mxu0
    %v700 = vadd.f32 0.0, %v699
    %v701 = vpop.f32.mrb[0].mxu0
    %702 = vmatprep.mubr.f32.mxu0 0.0
    %703 = vmatmul.mubr.f32.gmra.mrb[0].mxu0 %v621
    %v704 = vpop.f32.mrb[0].mxu0
    %v705 = vadd.f32 0.0, %v704
    %v706 = vpop.f32.mrb[0].mxu0
    %707 = vdwg.mxu0
    %s708 = scalar_lea.vmem [#allocation5], 192
    %v709 = vld [vmem:[%s708] sm:$0xff]
    %v710 = vld [vmem:[%s708 + $0x8] sm:$0xff]
    %v711 = vld [vmem:[%s708 + $0x10] sm:$0xff]
    %v712 = vld [vmem:[%s708 + $0x18] sm:$0xff]
    %v714 = vsel %vm202, %v709, 0
    %v717 = vsel %vm202, %v710, 0
    %v720 = vsel %vm202, %v711, 0
    %v723 = vsel %vm202, %v712, 0
    %725 = vmatprep.subr.mxu0 0.0
    %726 = vmatpush1.msra.mxu0 %v194
    %727 = vmatprep.subr.mxu0 0.0
    %728 = vmatpush1.msra.mxu0 %v195
    %729 = vmatprep.subr.mxu0 0.0
    %730 = vmatpush1.msra.mxu0 %v196
    %731 = vmatprep.subr.mxu0 0.0
    %732 = vmatpush1.msra.mxu0 %v197
    %733 = vmatprep.subr.mxu0 0.0
    %734 = vmatpush1.msra.mxu0 0.0
    %735 = vmatprep.subr.mxu0 0.0
    %736 = vmatpush1.msra.mxu0 0.0
    %737 = vmatprep.subr.mxu0 0.0
    %738 = vmatpush1.msra.mxu0 0.0
    %739 = vmatprep.subr.mxu0 0.0
    %740 = vmatpush1.msra.mxu0 0.0
    %741 = vmatprep.subr.mxu0 0.0
    %742 = vmatpush1.msra.mxu0 0.0
    %743 = vmatprep.subr.mxu0 0.0
    %744 = vmatpush1.msra.mxu0 0.0
    %745 = vmatprep.subr.mxu0 0.0
    %746 = vmatpush1.msra.mxu0 0.0
    %747 = vmatprep.subr.mxu0 0.0
    %748 = vmatpush1.msra.mxu0 0.0
    %749 = vmatprep.subr.mxu0 0.0
    %750 = vmatpush1.msra.mxu0 0.0
    %751 = vmatprep.subr.mxu0 0.0
    %752 = vmatpush1.msra.mxu0 0.0
    %753 = vmatprep.subr.mxu0 0.0
    %754 = vmatpush1.msra.mxu0 0.0
    %755 = vmatprep.subr.mxu0 0.0
    %756 = vmatpush1.msra.mxu0 0.0
    %757 = vmatprep.subr.mxu0 0.0
    %758 = vmatpush1.msra.mxu0 0.0
    %759 = vmatprep.subr.mxu0 0.0
    %760 = vmatpush1.msra.mxu0 0.0
    %761 = vmatprep.subr.mxu0 0.0
    %762 = vmatpush1.msra.mxu0 0.0
    %763 = vmatprep.subr.mxu0 0.0
    %764 = vmatpush1.msra.mxu0 0.0
    %765 = vmatprep.subr.mxu0 0.0
    %766 = vmatpush1.msra.mxu0 0.0
    %767 = vmatprep.subr.mxu0 0.0
    %768 = vmatpush1.msra.mxu0 0.0
    %769 = vmatprep.subr.mxu0 0.0
    %770 = vmatpush1.msra.mxu0 0.0
    %771 = vmatprep.subr.mxu0 0.0
    %772 = vmatpush1.msra.mxu0 0.0
    %773 = vmatprep.subr.mxu0 0.0
    %774 = vmatpush1.msra.mxu0 0.0
    %775 = vmatprep.subr.mxu0 0.0
    %776 = vmatpush1.msra.mxu0 0.0
    %777 = vmatprep.subr.mxu0 0.0
    %778 = vmatpush1.msra.mxu0 0.0
    %779 = vmatprep.subr.mxu0 0.0
    %780 = vmatpush1.msra.mxu0 0.0
    %781 = vmatprep.subr.mxu0 0.0
    %782 = vmatpush1.msra.mxu0 0.0
    %783 = vmatprep.subr.mxu0 0.0
    %784 = vmatpush1.msra.mxu0 0.0
    %785 = vmatprep.subr.mxu0 0.0
    %786 = vmatpush1.msra.mxu0 0.0
    %787 = vmatprep.subr.mxu0 0.0
    %788 = vmatpush1.msra.mxu0 0.0
    %789 = vmatprep.mubr.f32.mxu0 0.0
    %790 = vmatmul.mubr.f32.gmra.mrb[0].mxu0 %v714
    %v791 = vpop.f32.mrb[0].mxu0
    %v792 = vadd.f32 0.0, %v791
    %v793 = vpop.f32.mrb[0].mxu0
    %794 = vmatprep.mubr.f32.mxu0 0.0
    %795 = vmatmul.mubr.f32.gmra.mrb[0].mxu0 %v717
    %v796 = vpop.f32.mrb[0].mxu0
    %v797 = vadd.f32 0.0, %v796
    %v798 = vpop.f32.mrb[0].mxu0
    %799 = vmatprep.mubr.f32.mxu0 0.0
    %800 = vmatmul.mubr.f32.gmra.mrb[0].mxu0 %v720
    %v801 = vpop.f32.mrb[0].mxu0
    %v802 = vadd.f32 0.0, %v801
    %v803 = vpop.f32.mrb[0].mxu0
    %804 = vmatprep.mubr.f32.mxu0 0.0
    %805 = vmatmul.mubr.f32.gmra.mrb[0].mxu0 %v723
    %v806 = vpop.f32.mrb[0].mxu0
    %v807 = vadd.f32 0.0, %v806
    %v808 = vpop.f32.mrb[0].mxu0
    %809 = vdwg.mxu0
    %v810 = vld [vmem:[%s4] sm:$0x7]
    %v811 = vld [vmem:[%s5] sm:$0x7]
    %v812 = vld [vmem:[%s6] sm:$0x7]
    %v813 = vld [vmem:[%s7] sm:$0x7]
    %v814 = vld [vmem:[#allocation8] sm:$0xff]
    %v815 = vld [vmem:[#allocation8 + $0x8] sm:$0xff]
    %v816 = vld [vmem:[#allocation8 + $0x10] sm:$0xff]
    %v817 = vld [vmem:[#allocation8 + $0x18] sm:$0xff]
    %v818 = vld [vmem:[#allocation8 + $0x20] sm:$0xff]
    %v819 = vld [vmem:[#allocation8 + $0x28] sm:$0xff]
    %v820 = vld [vmem:[#allocation8 + $0x30] sm:$0xff]
    %v821 = vld [vmem:[#allocation8 + $0x38] sm:$0xff]
    %v822 = vld [vmem:[#allocation8 + $0x40] sm:$0xff]
    %v823 = vld [vmem:[#allocation8 + $0x48] sm:$0xff]
    %v824 = vld [vmem:[#allocation8 + $0x50] sm:$0xff]
    %v825 = vld [vmem:[#allocation8 + $0x58] sm:$0xff]
    %v826 = vld [vmem:[#allocation8 + $0x60] sm:$0xff]
    %v827 = vld [vmem:[#allocation8 + $0x68] sm:$0xff]
    %v828 = vld [vmem:[#allocation8 + $0x70] sm:$0xff]
    %v829 = vld [vmem:[#allocation8 + $0x78] sm:$0xff]
    %v830 = vld [vmem:[#allocation8 + $0x80] sm:$0xff]
    %v831 = vld [vmem:[#allocation8 + $0x88] sm:$0xff]
    %v832 = vld [vmem:[#allocation8 + $0x90] sm:$0xff]
    %v833 = vld [vmem:[#allocation8 + $0x98] sm:$0xff]
    %v834 = vld [vmem:[#allocation8 + $0xa0] sm:$0xff]
    %v835 = vld [vmem:[#allocation8 + $0xa8] sm:$0xff]
    %v836 = vld [vmem:[#allocation8 + $0xb0] sm:$0xff]
    %v837 = vld [vmem:[#allocation8 + $0xb8] sm:$0xff]
    %v838 = vld [vmem:[#allocation8 + $0xc0] sm:$0xff]
    %v839 = vld [vmem:[#allocation8 + $0xc8] sm:$0xff]
    %v840 = vld [vmem:[#allocation8 + $0xd0] sm:$0xff]
    %v841 = vld [vmem:[#allocation8 + $0xd8] sm:$0xff]
    %v842 = vld [vmem:[#allocation8 + $0xe0] sm:$0xff]
    %v843 = vld [vmem:[#allocation8 + $0xe8] sm:$0xff]
    %v844 = vld [vmem:[#allocation8 + $0xf0] sm:$0xff]
    %v845 = vld [vmem:[#allocation8 + $0xf8] sm:$0xff]
    %v846 = vld [vmem:[#allocation8 + $0x100] sm:$0xff]
    %v847 = vld [vmem:[#allocation8 + $0x108] sm:$0xff]
    %v848 = vld [vmem:[#allocation8 + $0x110] sm:$0xff]
    %v849 = vld [vmem:[#allocation8 + $0x118] sm:$0xff]
    %v850 = vld [vmem:[#allocation8 + $0x120] sm:$0xff]
    %v851 = vld [vmem:[#allocation8 + $0x128] sm:$0xff]
    %v852 = vld [vmem:[#allocation8 + $0x130] sm:$0xff]
    %v853 = vld [vmem:[#allocation8 + $0x138] sm:$0xff]
    %v854 = vld [vmem:[#allocation8 + $0x140] sm:$0xff]
    %v855 = vld [vmem:[#allocation8 + $0x148] sm:$0xff]
    %v856 = vld [vmem:[#allocation8 + $0x150] sm:$0xff]
    %v857 = vld [vmem:[#allocation8 + $0x158] sm:$0xff]
    %v858 = vld [vmem:[#allocation8 + $0x160] sm:$0xff]
    %v859 = vld [vmem:[#allocation8 + $0x168] sm:$0xff]
    %v860 = vld [vmem:[#allocation8 + $0x170] sm:$0xff]
    %v861 = vld [vmem:[#allocation8 + $0x178] sm:$0xff]
    %v862 = vlaneseq
    %v863 = vshrl.u32 %v862, 7
    %v864 = vsub.s32 0, %v863
    %v865 = vrot.slane %v810, %v864
    %866 = vmatprep.subr.mxu0 0.0
    %867 = vmatpush1.msra.mxu0 %v814
    %868 = vmatprep.subr.mxu0 0.0
    %869 = vmatpush1.msra.mxu0 %v815
    %870 = vmatprep.subr.mxu0 0.0
    %871 = vmatpush1.msra.mxu0 %v816
    %872 = vmatprep.subr.mxu0 0.0
    %873 = vmatpush1.msra.mxu0 %v817
    %874 = vmatprep.subr.mxu0 0.0
    %875 = vmatpush1.msra.mxu0 %v818
    %876 = vmatprep.subr.mxu0 0.0
    %877 = vmatpush1.msra.mxu0 %v819
    %878 = vmatprep.subr.mxu0 0.0
    %879 = vmatpush1.msra.mxu0 %v820
    %880 = vmatprep.subr.mxu0 0.0
    %881 = vmatpush1.msra.mxu0 %v821
    %882 = vmatprep.subr.mxu0 0.0
    %883 = vmatpush1.msra.mxu0 %v822
    %884 = vmatprep.subr.mxu0 0.0
    %885 = vmatpush1.msra.mxu0 %v823
    %886 = vmatprep.subr.mxu0 0.0
    %887 = vmatpush1.msra.mxu0 %v824
    %888 = vmatprep.subr.mxu0 0.0
    %889 = vmatpush1.msra.mxu0 %v825
    %890 = vmatprep.subr.mxu0 0.0
    %891 = vmatpush1.msra.mxu0 %v826
    %892 = vmatprep.subr.mxu0 0.0
    %893 = vmatpush1.msra.mxu0 %v827
    %894 = vmatprep.subr.mxu0 0.0
    %895 = vmatpush1.msra.mxu0 %v828
    %896 = vmatprep.subr.mxu0 0.0
    %897 = vmatpush1.msra.mxu0 %v829
    %898 = vmatprep.subr.mxu0 0.0
    %899 = vmatpush1.msra.mxu0 %v830
    %900 = vmatprep.subr.mxu0 0.0
    %901 = vmatpush1.msra.mxu0 %v831
    %902 = vmatprep.subr.mxu0 0.0
    %903 = vmatpush1.msra.mxu0 %v832
    %904 = vmatprep.subr.mxu0 0.0
    %905 = vmatpush1.msra.mxu0 %v833
    %906 = vmatprep.subr.mxu0 0.0
    %907 = vmatpush1.msra.mxu0 %v834
    %908 = vmatprep.subr.mxu0 0.0
    %909 = vmatpush1.msra.mxu0 %v835
    %910 = vmatprep.subr.mxu0 0.0
    %911 = vmatpush1.msra.mxu0 %v836
    %912 = vmatprep.subr.mxu0 0.0
    %913 = vmatpush1.msra.mxu0 %v837
    %914 = vmatprep.subr.mxu0 0.0
    %915 = vmatpush1.msra.mxu0 %v838
    %916 = vmatprep.subr.mxu0 0.0
    %917 = vmatpush1.msra.mxu0 %v839
    %918 = vmatprep.subr.mxu0 0.0
    %919 = vmatpush1.msra.mxu0 %v840
    %920 = vmatprep.subr.mxu0 0.0
    %921 = vmatpush1.msra.mxu0 %v841
    %922 = vmatprep.subr.mxu0 0.0
    %923 = vmatpush1.msra.mxu0 %v842
    %924 = vmatprep.subr.mxu0 0.0
    %925 = vmatpush1.msra.mxu0 %v843
    %926 = vmatprep.subr.mxu0 0.0
    %927 = vmatpush1.msra.mxu0 %v844
    %928 = vmatprep.subr.mxu0 0.0
    %929 = vmatpush1.msra.mxu0 %v845
    %930 = vmatprep.mubr.f32.mxu0 %v194
    %931 = vmatmul.mubr.f32.gmra.mrb[0].mxu0 %v486
    %v932 = vpop.f32.mrb[0].mxu0
    %v933 = vadd.f32 %v865, %v932
    %v934 = vpop.f32.mrb[0].mxu0
    %935 = vmatprep.mubr.f32.mxu0 %v195
    %936 = vmatmul.mubr.f32.gmra.mrb[0].mxu0 %v491
    %v937 = vpop.f32.mrb[0].mxu0
    %v938 = vadd.f32 %v865, %v937
    %v939 = vpop.f32.mrb[0].mxu0
    %940 = vmatprep.mubr.f32.mxu0 %v196
    %941 = vmatmul.mubr.f32.gmra.mrb[0].mxu0 %v496
    %v942 = vpop.f32.mrb[0].mxu0
    %v943 = vadd.f32 %v865, %v942
    %v944 = vpop.f32.mrb[0].mxu0
    %945 = vmatprep.mubr.f32.mxu0 %v197
    %946 = vmatmul.mubr.f32.gmra.mrb[0].mxu0 %v501
    %v947 = vpop.f32.mrb[0].mxu0
    %v948 = vadd.f32 %v865, %v947
    %v949 = vpop.f32.mrb[0].mxu0
    %950 = vdwg.mxu0
    %951 = vmatprep.subr.mxu0 0.0
    %952 = vmatpush1.msra.mxu0 %v846
    %953 = vmatprep.subr.mxu0 0.0
    %954 = vmatpush1.msra.mxu0 %v847
    %955 = vmatprep.subr.mxu0 0.0
    %956 = vmatpush1.msra.mxu0 %v848
    %957 = vmatprep.subr.mxu0 0.0
    %958 = vmatpush1.msra.mxu0 %v849
    %959 = vmatprep.subr.mxu0 0.0
    %960 = vmatpush1.msra.mxu0 %v850
    %961 = vmatprep.subr.mxu0 0.0
    %962 = vmatpush1.msra.mxu0 %v851
    %963 = vmatprep.subr.mxu0 0.0
    %964 = vmatpush1.msra.mxu0 %v852
    %965 = vmatprep.subr.mxu0 0.0
    %966 = vmatpush1.msra.mxu0 %v853
    %967 = vmatprep.subr.mxu0 0.0
    %968 = vmatpush1.msra.mxu0 %v854
    %969 = vmatprep.subr.mxu0 0.0
    %970 = vmatpush1.msra.mxu0 %v855
    %971 = vmatprep.subr.mxu0 0.0
    %972 = vmatpush1.msra.mxu0 %v856
    %973 = vmatprep.subr.mxu0 0.0
    %974 = vmatpush1.msra.mxu0 %v857
    %975 = vmatprep.subr.mxu0 0.0
    %976 = vmatpush1.msra.mxu0 %v858
    %977 = vmatprep.subr.mxu0 0.0
    %978 = vmatpush1.msra.mxu0 %v859
    %979 = vmatprep.subr.mxu0 0.0
    %980 = vmatpush1.msra.mxu0 %v860
    %981 = vmatprep.subr.mxu0 0.0
    %982 = vmatpush1.msra.mxu0 %v861
    %983 = vmatprep.subr.mxu0 0.0
    %984 = vmatpush1.msra.mxu0 0.0
    %985 = vmatprep.subr.mxu0 0.0
    %986 = vmatpush1.msra.mxu0 0.0
    %987 = vmatprep.subr.mxu0 0.0
    %988 = vmatpush1.msra.mxu0 0.0
    %989 = vmatprep.subr.mxu0 0.0
    %990 = vmatpush1.msra.mxu0 0.0
    %991 = vmatprep.subr.mxu0 0.0
    %992 = vmatpush1.msra.mxu0 0.0
    %993 = vmatprep.subr.mxu0 0.0
    %994 = vmatpush1.msra.mxu0 0.0
    %995 = vmatprep.subr.mxu0 0.0
    %996 = vmatpush1.msra.mxu0 0.0
    %997 = vmatprep.subr.mxu0 0.0
    %998 = vmatpush1.msra.mxu0 0.0
    %999 = vmatprep.subr.mxu0 0.0
    %1000 = vmatpush1.msra.mxu0 0.0
    %1001 = vmatprep.subr.mxu0 0.0
    %1002 = vmatpush1.msra.mxu0 0.0
    %1003 = vmatprep.subr.mxu0 0.0
    %1004 = vmatpush1.msra.mxu0 0.0
    %1005 = vmatprep.subr.mxu0 0.0
    %1006 = vmatpush1.msra.mxu0 0.0
    %1007 = vmatprep.subr.mxu0 0.0
    %1008 = vmatpush1.msra.mxu0 0.0
    %1009 = vmatprep.subr.mxu0 0.0
    %1010 = vmatpush1.msra.mxu0 0.0
    %1011 = vmatprep.subr.mxu0 0.0
    %1012 = vmatpush1.msra.mxu0 0.0
    %1013 = vmatprep.subr.mxu0 0.0
    %1014 = vmatpush1.msra.mxu0 0.0
    %1015 = vmatprep.mubr.f32.mxu0 0.0
    %1016 = vmatmul.mubr.f32.gmra.mrb[0].mxu0 %v588
    %v1017 = vpop.f32.mrb[0].mxu0
    %v1018 = vadd.f32 %v933, %v1017
    %v1019 = vpop.f32.mrb[0].mxu0
    %1020 = vmatprep.mubr.f32.mxu0 0.0
    %1021 = vmatmul.mubr.f32.gmra.mrb[0].mxu0 %v593
    %v1022 = vpop.f32.mrb[0].mxu0
    %v1023 = vadd.f32 %v938, %v1022
    %v1024 = vpop.f32.mrb[0].mxu0
    %1025 = vmatprep.mubr.f32.mxu0 0.0
    %1026 = vmatmul.mubr.f32.gmra.mrb[0].mxu0 %v598
    %v1027 = vpop.f32.mrb[0].mxu0
    %v1028 = vadd.f32 %v943, %v1027
    %v1029 = vpop.f32.mrb[0].mxu0
    %1030 = vmatprep.mubr.f32.mxu0 0.0
    %1031 = vmatmul.mubr.f32.gmra.mrb[0].mxu0 %v603
    %v1032 = vpop.f32.mrb[0].mxu0
    %v1033 = vadd.f32 %v948, %v1032
    %v1034 = vpop.f32.mrb[0].mxu0
    %1035 = vdwg.mxu0
    %v1036 = vlaneseq
    %v1037 = vshrl.u32 %v1036, 7
    %v1038 = vsub.s32 0, %v1037
    %v1039 = vrot.slane %v811, %v1038
    %v1040 = vsub.f32 %v1018, %v1039
    %v1041 = vsub.f32 %v1023, %v1039
    %v1042 = vsub.f32 %v1028, %v1039
    %v1043 = vsub.f32 %v1033, %v1039
    %vm1044 = vcmp.ge.f32.partialorder %v1040, 0.0
    %vm1045 = vcmp.ge.f32.partialorder %v1041, 0.0
    %vm1046 = vcmp.ge.f32.partialorder %v1042, 0.0
    %vm1047 = vcmp.ge.f32.partialorder %v1043, 0.0
    %v1048 = vlaneseq
    %v1049 = vshrl.u32 %v1048, 7
    %v1050 = vsub.s32 0, %v1049
    %v1051 = vrot.slane %v812, %v1050
    %v1052 = vmul.f32 %v1040, %v1051
    %v1053 = vmul.f32 %v1041, %v1051
    %v1054 = vmul.f32 %v1042, %v1051
    %v1055 = vmul.f32 %v1043, %v1051
    %v1056 = vsel %vm1044, %v1040, %v1052
    %v1057 = vsel %vm1045, %v1041, %v1053
    %v1058 = vsel %vm1046, %v1042, %v1054
    %v1059 = vsel %vm1047, %v1043, %v1055
    %v1060 = vadd.f32 %v1056, 0.0
    %v1061 = vadd.f32 %v1057, 0.0
    %v1062 = vadd.f32 %v1058, 0.0
    %v1063 = vadd.f32 %v1059, 0.0
    %v1064 = vlaneseq
    %v1065 = vshrl.u32 %v1064, 7
    %v1066 = vsub.s32 0, %v1065
    %v1067 = vrot.slane %v813, %v1066
    %v1068 = vadd.f32 %v1060, %v1067
    %v1069 = vadd.f32 %v1061, %v1067
    %v1070 = vadd.f32 %v1062, %v1067
    %v1071 = vadd.f32 %v1063, %v1067
    %s1072 = scalar_lea.vmem [#allocation8], 384
    %v1073 = vld [vmem:[%s1072] sm:$0xff]
    %v1074 = vld [vmem:[%s1072 + $0x8] sm:$0xff]
    %v1075 = vld [vmem:[%s1072 + $0x10] sm:$0xff]
    %v1076 = vld [vmem:[%s1072 + $0x18] sm:$0xff]
    %v1077 = vld [vmem:[%s1072 + $0x20] sm:$0xff]
    %v1078 = vld [vmem:[%s1072 + $0x28] sm:$0xff]
    %v1079 = vld [vmem:[%s1072 + $0x30] sm:$0xff]
    %v1080 = vld [vmem:[%s1072 + $0x38] sm:$0xff]
    %v1081 = vld [vmem:[%s1072 + $0x40] sm:$0xff]
    %v1082 = vld [vmem:[%s1072 + $0x48] sm:$0xff]
    %v1083 = vld [vmem:[%s1072 + $0x50] sm:$0xff]
    %v1084 = vld [vmem:[%s1072 + $0x58] sm:$0xff]
    %v1085 = vld [vmem:[%s1072 + $0x60] sm:$0xff]
    %v1086 = vld [vmem:[%s1072 + $0x68] sm:$0xff]
    %v1087 = vld [vmem:[%s1072 + $0x70] sm:$0xff]
    %v1088 = vld [vmem:[%s1072 + $0x78] sm:$0xff]
    %v1089 = vld [vmem:[%s1072 + $0x80] sm:$0xff]
    %v1090 = vld [vmem:[%s1072 + $0x88] sm:$0xff]
    %v1091 = vld [vmem:[%s1072 + $0x90] sm:$0xff]
    %v1092 = vld [vmem:[%s1072 + $0x98] sm:$0xff]
    %v1093 = vld [vmem:[%s1072 + $0xa0] sm:$0xff]
    %v1094 = vld [vmem:[%s1072 + $0xa8] sm:$0xff]
    %v1095 = vld [vmem:[%s1072 + $0xb0] sm:$0xff]
    %v1096 = vld [vmem:[%s1072 + $0xb8] sm:$0xff]
    %v1097 = vld [vmem:[%s1072 + $0xc0] sm:$0xff]
    %v1098 = vld [vmem:[%s1072 + $0xc8] sm:$0xff]
    %v1099 = vld [vmem:[%s1072 + $0xd0] sm:$0xff]
    %v1100 = vld [vmem:[%s1072 + $0xd8] sm:$0xff]
    %v1101 = vld [vmem:[%s1072 + $0xe0] sm:$0xff]
    %v1102 = vld [vmem:[%s1072 + $0xe8] sm:$0xff]
    %v1103 = vld [vmem:[%s1072 + $0xf0] sm:$0xff]
    %v1104 = vld [vmem:[%s1072 + $0xf8] sm:$0xff]
    %v1105 = vld [vmem:[%s1072 + $0x100] sm:$0xff]
    %v1106 = vld [vmem:[%s1072 + $0x108] sm:$0xff]
    %v1107 = vld [vmem:[%s1072 + $0x110] sm:$0xff]
    %v1108 = vld [vmem:[%s1072 + $0x118] sm:$0xff]
    %v1109 = vld [vmem:[%s1072 + $0x120] sm:$0xff]
    %v1110 = vld [vmem:[%s1072 + $0x128] sm:$0xff]
    %v1111 = vld [vmem:[%s1072 + $0x130] sm:$0xff]
    %v1112 = vld [vmem:[%s1072 + $0x138] sm:$0xff]
    %v1113 = vld [vmem:[%s1072 + $0x140] sm:$0xff]
    %v1114 = vld [vmem:[%s1072 + $0x148] sm:$0xff]
    %v1115 = vld [vmem:[%s1072 + $0x150] sm:$0xff]
    %v1116 = vld [vmem:[%s1072 + $0x158] sm:$0xff]
    %v1117 = vld [vmem:[%s1072 + $0x160] sm:$0xff]
    %v1118 = vld [vmem:[%s1072 + $0x168] sm:$0xff]
    %v1119 = vld [vmem:[%s1072 + $0x170] sm:$0xff]
    %v1120 = vld [vmem:[%s1072 + $0x178] sm:$0xff]
    %v1121 = vlaneseq
    %v1122 = vshrl.u32 %v1121, 7
    %v1123 = vsub.s32 1, %v1122
    %v1124 = vrot.slane %v810, %v1123
    %1125 = vmatprep.subr.mxu0 0.0
    %1126 = vmatpush1.msra.mxu0 %v1073
    %1127 = vmatprep.subr.mxu0 0.0
    %1128 = vmatpush1.msra.mxu0 %v1074
    %1129 = vmatprep.subr.mxu0 0.0
    %1130 = vmatpush1.msra.mxu0 %v1075
    %1131 = vmatprep.subr.mxu0 0.0
    %1132 = vmatpush1.msra.mxu0 %v1076
    %1133 = vmatprep.subr.mxu0 0.0
    %1134 = vmatpush1.msra.mxu0 %v1077
    %1135 = vmatprep.subr.mxu0 0.0
    %1136 = vmatpush1.msra.mxu0 %v1078
    %1137 = vmatprep.subr.mxu0 0.0
    %1138 = vmatpush1.msra.mxu0 %v1079
    %1139 = vmatprep.subr.mxu0 0.0
    %1140 = vmatpush1.msra.mxu0 %v1080
    %1141 = vmatprep.subr.mxu0 0.0
    %1142 = vmatpush1.msra.mxu0 %v1081
    %1143 = vmatprep.subr.mxu0 0.0
    %1144 = vmatpush1.msra.mxu0 %v1082
    %1145 = vmatprep.subr.mxu0 0.0
    %1146 = vmatpush1.msra.mxu0 %v1083
    %1147 = vmatprep.subr.mxu0 0.0
    %1148 = vmatpush1.msra.mxu0 %v1084
    %1149 = vmatprep.subr.mxu0 0.0
    %1150 = vmatpush1.msra.mxu0 %v1085
    %1151 = vmatprep.subr.mxu0 0.0
    %1152 = vmatpush1.msra.mxu0 %v1086
    %1153 = vmatprep.subr.mxu0 0.0
    %1154 = vmatpush1.msra.mxu0 %v1087
    %1155 = vmatprep.subr.mxu0 0.0
    %1156 = vmatpush1.msra.mxu0 %v1088
    %1157 = vmatprep.subr.mxu0 0.0
    %1158 = vmatpush1.msra.mxu0 %v1089
    %1159 = vmatprep.subr.mxu0 0.0
    %1160 = vmatpush1.msra.mxu0 %v1090
    %1161 = vmatprep.subr.mxu0 0.0
    %1162 = vmatpush1.msra.mxu0 %v1091
    %1163 = vmatprep.subr.mxu0 0.0
    %1164 = vmatpush1.msra.mxu0 %v1092
    %1165 = vmatprep.subr.mxu0 0.0
    %1166 = vmatpush1.msra.mxu0 %v1093
    %1167 = vmatprep.subr.mxu0 0.0
    %1168 = vmatpush1.msra.mxu0 %v1094
    %1169 = vmatprep.subr.mxu0 0.0
    %1170 = vmatpush1.msra.mxu0 %v1095
    %1171 = vmatprep.subr.mxu0 0.0
    %1172 = vmatpush1.msra.mxu0 %v1096
    %1173 = vmatprep.subr.mxu0 0.0
    %1174 = vmatpush1.msra.mxu0 %v1097
    %1175 = vmatprep.subr.mxu0 0.0
    %1176 = vmatpush1.msra.mxu0 %v1098
    %1177 = vmatprep.subr.mxu0 0.0
    %1178 = vmatpush1.msra.mxu0 %v1099
    %1179 = vmatprep.subr.mxu0 0.0
    %1180 = vmatpush1.msra.mxu0 %v1100
    %1181 = vmatprep.subr.mxu0 0.0
    %1182 = vmatpush1.msra.mxu0 %v1101
    %1183 = vmatprep.subr.mxu0 0.0
    %1184 = vmatpush1.msra.mxu0 %v1102
    %1185 = vmatprep.subr.mxu0 0.0
    %1186 = vmatpush1.msra.mxu0 %v1103
    %1187 = vmatprep.subr.mxu0 0.0
    %1188 = vmatpush1.msra.mxu0 %v1104
    %1189 = vmatprep.mubr.f32.mxu0 %v194
    %1190 = vmatmul.mubr.f32.gmra.mrb[0].mxu0 %v384
    %v1191 = vpop.f32.mrb[0].mxu0
    %v1192 = vadd.f32 %v1124, %v1191
    %v1193 = vpop.f32.mrb[0].mxu0
    %1194 = vmatprep.mubr.f32.mxu0 %v195
    %1195 = vmatmul.mubr.f32.gmra.mrb[0].mxu0 %v389
    %v1196 = vpop.f32.mrb[0].mxu0
    %v1197 = vadd.f32 %v1124, %v1196
    %v1198 = vpop.f32.mrb[0].mxu0
    %1199 = vmatprep.mubr.f32.mxu0 %v196
    %1200 = vmatmul.mubr.f32.gmra.mrb[0].mxu0 %v394
    %v1201 = vpop.f32.mrb[0].mxu0
    %v1202 = vadd.f32 %v1124, %v1201
    %v1203 = vpop.f32.mrb[0].mxu0
    %1204 = vmatprep.mubr.f32.mxu0 %v197
    %1205 = vmatmul.mubr.f32.gmra.mrb[0].mxu0 %v399
    %v1206 = vpop.f32.mrb[0].mxu0
    %v1207 = vadd.f32 %v1124, %v1206
    %v1208 = vpop.f32.mrb[0].mxu0
    %1209 = vdwg.mxu0
    %1210 = vmatprep.subr.mxu0 0.0
    %1211 = vmatpush1.msra.mxu0 %v1105
    %1212 = vmatprep.subr.mxu0 0.0
    %1213 = vmatpush1.msra.mxu0 %v1106
    %1214 = vmatprep.subr.mxu0 0.0
    %1215 = vmatpush1.msra.mxu0 %v1107
    %1216 = vmatprep.subr.mxu0 0.0
    %1217 = vmatpush1.msra.mxu0 %v1108
    %1218 = vmatprep.subr.mxu0 0.0
    %1219 = vmatpush1.msra.mxu0 %v1109
    %1220 = vmatprep.subr.mxu0 0.0
    %1221 = vmatpush1.msra.mxu0 %v1110
    %1222 = vmatprep.subr.mxu0 0.0
    %1223 = vmatpush1.msra.mxu0 %v1111
    %1224 = vmatprep.subr.mxu0 0.0
    %1225 = vmatpush1.msra.mxu0 %v1112
    %1226 = vmatprep.subr.mxu0 0.0
    %1227 = vmatpush1.msra.mxu0 %v1113
    %1228 = vmatprep.subr.mxu0 0.0
    %1229 = vmatpush1.msra.mxu0 %v1114
    %1230 = vmatprep.subr.mxu0 0.0
    %1231 = vmatpush1.msra.mxu0 %v1115
    %1232 = vmatprep.subr.mxu0 0.0
    %1233 = vmatpush1.msra.mxu0 %v1116
    %1234 = vmatprep.subr.mxu0 0.0
    %1235 = vmatpush1.msra.mxu0 %v1117
    %1236 = vmatprep.subr.mxu0 0.0
    %1237 = vmatpush1.msra.mxu0 %v1118
    %1238 = vmatprep.subr.mxu0 0.0
    %1239 = vmatpush1.msra.mxu0 %v1119
    %1240 = vmatprep.subr.mxu0 0.0
    %1241 = vmatpush1.msra.mxu0 %v1120
    %1242 = vmatprep.subr.mxu0 0.0
    %1243 = vmatpush1.msra.mxu0 0.0
    %1244 = vmatprep.subr.mxu0 0.0
    %1245 = vmatpush1.msra.mxu0 0.0
    %1246 = vmatprep.subr.mxu0 0.0
    %1247 = vmatpush1.msra.mxu0 0.0
    %1248 = vmatprep.subr.mxu0 0.0
    %1249 = vmatpush1.msra.mxu0 0.0
    %1250 = vmatprep.subr.mxu0 0.0
    %1251 = vmatpush1.msra.mxu0 0.0
    %1252 = vmatprep.subr.mxu0 0.0
    %1253 = vmatpush1.msra.mxu0 0.0
    %1254 = vmatprep.subr.mxu0 0.0
    %1255 = vmatpush1.msra.mxu0 0.0
    %1256 = vmatprep.subr.mxu0 0.0
    %1257 = vmatpush1.msra.mxu0 0.0
    %1258 = vmatprep.subr.mxu0 0.0
    %1259 = vmatpush1.msra.mxu0 0.0
    %1260 = vmatprep.subr.mxu0 0.0
    %1261 = vmatpush1.msra.mxu0 0.0
    %1262 = vmatprep.subr.mxu0 0.0
    %1263 = vmatpush1.msra.mxu0 0.0
    %1264 = vmatprep.subr.mxu0 0.0
    %1265 = vmatpush1.msra.mxu0 0.0
    %1266 = vmatprep.subr.mxu0 0.0
    %1267 = vmatpush1.msra.mxu0 0.0
    %1268 = vmatprep.subr.mxu0 0.0
    %1269 = vmatpush1.msra.mxu0 0.0
    %1270 = vmatprep.subr.mxu0 0.0
    %1271 = vmatpush1.msra.mxu0 0.0
    %1272 = vmatprep.subr.mxu0 0.0
    %1273 = vmatpush1.msra.mxu0 0.0
    %1274 = vmatprep.mubr.f32.mxu0 0.0
    %1275 = vmatmul.mubr.f32.gmra.mrb[0].mxu0 %v690
    %v1276 = vpop.f32.mrb[0].mxu0
    %v1277 = vadd.f32 %v1192, %v1276
    %v1278 = vpop.f32.mrb[0].mxu0
    %1279 = vmatprep.mubr.f32.mxu0 0.0
    %1280 = vmatmul.mubr.f32.gmra.mrb[0].mxu0 %v695
    %v1281 = vpop.f32.mrb[0].mxu0
    %v1282 = vadd.f32 %v1197, %v1281
    %v1283 = vpop.f32.mrb[0].mxu0
    %1284 = vmatprep.mubr.f32.mxu0 0.0
    %1285 = vmatmul.mubr.f32.gmra.mrb[0].mxu0 %v700
    %v1286 = vpop.f32.mrb[0].mxu0
    %v1287 = vadd.f32 %v1202, %v1286
    %v1288 = vpop.f32.mrb[0].mxu0
    %1289 = vmatprep.mubr.f32.mxu0 0.0
    %1290 = vmatmul.mubr.f32.gmra.mrb[0].mxu0 %v705
    %v1291 = vpop.f32.mrb[0].mxu0
    %v1292 = vadd.f32 %v1207, %v1291
    %v1293 = vpop.f32.mrb[0].mxu0
    %1294 = vdwg.mxu0
    %v1295 = vlaneseq
    %v1296 = vshrl.u32 %v1295, 7
    %v1297 = vsub.s32 1, %v1296
    %v1298 = vrot.slane %v811, %v1297
    %v1299 = vsub.f32 %v1277, %v1298
    %v1300 = vsub.f32 %v1282, %v1298
    %v1301 = vsub.f32 %v1287, %v1298
    %v1302 = vsub.f32 %v1292, %v1298
    %vm1303 = vcmp.ge.f32.partialorder %v1299, 0.0
    %vm1304 = vcmp.ge.f32.partialorder %v1300, 0.0
    %vm1305 = vcmp.ge.f32.partialorder %v1301, 0.0
    %vm1306 = vcmp.ge.f32.partialorder %v1302, 0.0
    %v1307 = vlaneseq
    %v1308 = vshrl.u32 %v1307, 7
    %v1309 = vsub.s32 1, %v1308
    %v1310 = vrot.slane %v812, %v1309
    %v1311 = vmul.f32 %v1299, %v1310
    %v1312 = vmul.f32 %v1300, %v1310
    %v1313 = vmul.f32 %v1301, %v1310
    %v1314 = vmul.f32 %v1302, %v1310
    %v1315 = vsel %vm1303, %v1299, %v1311
    %v1316 = vsel %vm1304, %v1300, %v1312
    %v1317 = vsel %vm1305, %v1301, %v1313
    %v1318 = vsel %vm1306, %v1302, %v1314
    %v1319 = vadd.f32 %v1068, %v1315
    %v1320 = vadd.f32 %v1069, %v1316
    %v1321 = vadd.f32 %v1070, %v1317
    %v1322 = vadd.f32 %v1071, %v1318
    %v1323 = vlaneseq
    %v1324 = vshrl.u32 %v1323, 7
    %v1325 = vsub.s32 1, %v1324
    %v1326 = vrot.slane %v813, %v1325
    %v1327 = vadd.f32 %v1319, %v1326
    %v1328 = vadd.f32 %v1320, %v1326
    %v1329 = vadd.f32 %v1321, %v1326
    %v1330 = vadd.f32 %v1322, %v1326
    %s1331 = scalar_lea.vmem [#allocation8], 768
    %v1332 = vld [vmem:[%s1331] sm:$0xff]
    %v1333 = vld [vmem:[%s1331 + $0x8] sm:$0xff]
    %v1334 = vld [vmem:[%s1331 + $0x10] sm:$0xff]
    %v1335 = vld [vmem:[%s1331 + $0x18] sm:$0xff]
    %v1336 = vld [vmem:[%s1331 + $0x20] sm:$0xff]
    %v1337 = vld [vmem:[%s1331 + $0x28] sm:$0xff]
    %v1338 = vld [vmem:[%s1331 + $0x30] sm:$0xff]
    %v1339 = vld [vmem:[%s1331 + $0x38] sm:$0xff]
    %v1340 = vld [vmem:[%s1331 + $0x40] sm:$0xff]
    %v1341 = vld [vmem:[%s1331 + $0x48] sm:$0xff]
    %v1342 = vld [vmem:[%s1331 + $0x50] sm:$0xff]
    %v1343 = vld [vmem:[%s1331 + $0x58] sm:$0xff]
    %v1344 = vld [vmem:[%s1331 + $0x60] sm:$0xff]
    %v1345 = vld [vmem:[%s1331 + $0x68] sm:$0xff]
    %v1346 = vld [vmem:[%s1331 + $0x70] sm:$0xff]
    %v1347 = vld [vmem:[%s1331 + $0x78] sm:$0xff]
    %v1348 = vld [vmem:[%s1331 + $0x80] sm:$0xff]
    %v1349 = vld [vmem:[%s1331 + $0x88] sm:$0xff]
    %v1350 = vld [vmem:[%s1331 + $0x90] sm:$0xff]
    %v1351 = vld [vmem:[%s1331 + $0x98] sm:$0xff]
    %v1352 = vld [vmem:[%s1331 + $0xa0] sm:$0xff]
    %v1353 = vld [vmem:[%s1331 + $0xa8] sm:$0xff]
    %v1354 = vld [vmem:[%s1331 + $0xb0] sm:$0xff]
    %v1355 = vld [vmem:[%s1331 + $0xb8] sm:$0xff]
    %v1356 = vld [vmem:[%s1331 + $0xc0] sm:$0xff]
    %v1357 = vld [vmem:[%s1331 + $0xc8] sm:$0xff]
    %v1358 = vld [vmem:[%s1331 + $0xd0] sm:$0xff]
    %v1359 = vld [vmem:[%s1331 + $0xd8] sm:$0xff]
    %v1360 = vld [vmem:[%s1331 + $0xe0] sm:$0xff]
    %v1361 = vld [vmem:[%s1331 + $0xe8] sm:$0xff]
    %v1362 = vld [vmem:[%s1331 + $0xf0] sm:$0xff]
    %v1363 = vld [vmem:[%s1331 + $0xf8] sm:$0xff]
    %v1364 = vld [vmem:[%s1331 + $0x100] sm:$0xff]
    %v1365 = vld [vmem:[%s1331 + $0x108] sm:$0xff]
    %v1366 = vld [vmem:[%s1331 + $0x110] sm:$0xff]
    %v1367 = vld [vmem:[%s1331 + $0x118] sm:$0xff]
    %v1368 = vld [vmem:[%s1331 + $0x120] sm:$0xff]
    %v1369 = vld [vmem:[%s1331 + $0x128] sm:$0xff]
    %v1370 = vld [vmem:[%s1331 + $0x130] sm:$0xff]
    %v1371 = vld [vmem:[%s1331 + $0x138] sm:$0xff]
    %v1372 = vld [vmem:[%s1331 + $0x140] sm:$0xff]
    %v1373 = vld [vmem:[%s1331 + $0x148] sm:$0xff]
    %v1374 = vld [vmem:[%s1331 + $0x150] sm:$0xff]
    %v1375 = vld [vmem:[%s1331 + $0x158] sm:$0xff]
    %v1376 = vld [vmem:[%s1331 + $0x160] sm:$0xff]
    %v1377 = vld [vmem:[%s1331 + $0x168] sm:$0xff]
    %v1378 = vld [vmem:[%s1331 + $0x170] sm:$0xff]
    %v1379 = vld [vmem:[%s1331 + $0x178] sm:$0xff]
    %v1380 = vlaneseq
    %v1381 = vshrl.u32 %v1380, 7
    %v1382 = vsub.s32 2, %v1381
    %v1383 = vrot.slane %v810, %v1382
    %1384 = vmatprep.subr.mxu0 0.0
    %1385 = vmatpush1.msra.mxu0 %v1332
    %1386 = vmatprep.subr.mxu0 0.0
    %1387 = vmatpush1.msra.mxu0 %v1333
    %1388 = vmatprep.subr.mxu0 0.0
    %1389 = vmatpush1.msra.mxu0 %v1334
    %1390 = vmatprep.subr.mxu0 0.0
    %1391 = vmatpush1.msra.mxu0 %v1335
    %1392 = vmatprep.subr.mxu0 0.0
    %1393 = vmatpush1.msra.mxu0 %v1336
    %1394 = vmatprep.subr.mxu0 0.0
    %1395 = vmatpush1.msra.mxu0 %v1337
    %1396 = vmatprep.subr.mxu0 0.0
    %1397 = vmatpush1.msra.mxu0 %v1338
    %1398 = vmatprep.subr.mxu0 0.0
    %1399 = vmatpush1.msra.mxu0 %v1339
    %1400 = vmatprep.subr.mxu0 0.0
    %1401 = vmatpush1.msra.mxu0 %v1340
    %1402 = vmatprep.subr.mxu0 0.0
    %1403 = vmatpush1.msra.mxu0 %v1341
    %1404 = vmatprep.subr.mxu0 0.0
    %1405 = vmatpush1.msra.mxu0 %v1342
    %1406 = vmatprep.subr.mxu0 0.0
    %1407 = vmatpush1.msra.mxu0 %v1343
    %1408 = vmatprep.subr.mxu0 0.0
    %1409 = vmatpush1.msra.mxu0 %v1344
    %1410 = vmatprep.subr.mxu0 0.0
    %1411 = vmatpush1.msra.mxu0 %v1345
    %1412 = vmatprep.subr.mxu0 0.0
    %1413 = vmatpush1.msra.mxu0 %v1346
    %1414 = vmatprep.subr.mxu0 0.0
    %1415 = vmatpush1.msra.mxu0 %v1347
    %1416 = vmatprep.subr.mxu0 0.0
    %1417 = vmatpush1.msra.mxu0 %v1348
    %1418 = vmatprep.subr.mxu0 0.0
    %1419 = vmatpush1.msra.mxu0 %v1349
    %1420 = vmatprep.subr.mxu0 0.0
    %1421 = vmatpush1.msra.mxu0 %v1350
    %1422 = vmatprep.subr.mxu0 0.0
    %1423 = vmatpush1.msra.mxu0 %v1351
    %1424 = vmatprep.subr.mxu0 0.0
    %1425 = vmatpush1.msra.mxu0 %v1352
    %1426 = vmatprep.subr.mxu0 0.0
    %1427 = vmatpush1.msra.mxu0 %v1353
    %1428 = vmatprep.subr.mxu0 0.0
    %1429 = vmatpush1.msra.mxu0 %v1354
    %1430 = vmatprep.subr.mxu0 0.0
    %1431 = vmatpush1.msra.mxu0 %v1355
    %1432 = vmatprep.subr.mxu0 0.0
    %1433 = vmatpush1.msra.mxu0 %v1356
    %1434 = vmatprep.subr.mxu0 0.0
    %1435 = vmatpush1.msra.mxu0 %v1357
    %1436 = vmatprep.subr.mxu0 0.0
    %1437 = vmatpush1.msra.mxu0 %v1358
    %1438 = vmatprep.subr.mxu0 0.0
    %1439 = vmatpush1.msra.mxu0 %v1359
    %1440 = vmatprep.subr.mxu0 0.0
    %1441 = vmatpush1.msra.mxu0 %v1360
    %1442 = vmatprep.subr.mxu0 0.0
    %1443 = vmatpush1.msra.mxu0 %v1361
    %1444 = vmatprep.subr.mxu0 0.0
    %1445 = vmatpush1.msra.mxu0 %v1362
    %1446 = vmatprep.subr.mxu0 0.0
    %1447 = vmatpush1.msra.mxu0 %v1363
    %1448 = vmatprep.mubr.f32.mxu0 %v194
    %1449 = vmatmul.mubr.f32.gmra.mrb[0].mxu0 %v282
    %v1450 = vpop.f32.mrb[0].mxu0
    %v1451 = vadd.f32 %v1383, %v1450
    %v1452 = vpop.f32.mrb[0].mxu0
    %1453 = vmatprep.mubr.f32.mxu0 %v195
    %1454 = vmatmul.mubr.f32.gmra.mrb[0].mxu0 %v287
    %v1455 = vpop.f32.mrb[0].mxu0
    %v1456 = vadd.f32 %v1383, %v1455
    %v1457 = vpop.f32.mrb[0].mxu0
    %1458 = vmatprep.mubr.f32.mxu0 %v196
    %1459 = vmatmul.mubr.f32.gmra.mrb[0].mxu0 %v292
    %v1460 = vpop.f32.mrb[0].mxu0
    %v1461 = vadd.f32 %v1383, %v1460
    %v1462 = vpop.f32.mrb[0].mxu0
    %1463 = vmatprep.mubr.f32.mxu0 %v197
    %1464 = vmatmul.mubr.f32.gmra.mrb[0].mxu0 %v297
    %v1465 = vpop.f32.mrb[0].mxu0
    %v1466 = vadd.f32 %v1383, %v1465
    %v1467 = vpop.f32.mrb[0].mxu0
    %1468 = vdwg.mxu0
    %1469 = vmatprep.subr.mxu0 0.0
    %1470 = vmatpush1.msra.mxu0 %v1364
    %1471 = vmatprep.subr.mxu0 0.0
    %1472 = vmatpush1.msra.mxu0 %v1365
    %1473 = vmatprep.subr.mxu0 0.0
    %1474 = vmatpush1.msra.mxu0 %v1366
    %1475 = vmatprep.subr.mxu0 0.0
    %1476 = vmatpush1.msra.mxu0 %v1367
    %1477 = vmatprep.subr.mxu0 0.0
    %1478 = vmatpush1.msra.mxu0 %v1368
    %1479 = vmatprep.subr.mxu0 0.0
    %1480 = vmatpush1.msra.mxu0 %v1369
    %1481 = vmatprep.subr.mxu0 0.0
    %1482 = vmatpush1.msra.mxu0 %v1370
    %1483 = vmatprep.subr.mxu0 0.0
    %1484 = vmatpush1.msra.mxu0 %v1371
    %1485 = vmatprep.subr.mxu0 0.0
    %1486 = vmatpush1.msra.mxu0 %v1372
    %1487 = vmatprep.subr.mxu0 0.0
    %1488 = vmatpush1.msra.mxu0 %v1373
    %1489 = vmatprep.subr.mxu0 0.0
    %1490 = vmatpush1.msra.mxu0 %v1374
    %1491 = vmatprep.subr.mxu0 0.0
    %1492 = vmatpush1.msra.mxu0 %v1375
    %1493 = vmatprep.subr.mxu0 0.0
    %1494 = vmatpush1.msra.mxu0 %v1376
    %1495 = vmatprep.subr.mxu0 0.0
    %1496 = vmatpush1.msra.mxu0 %v1377
    %1497 = vmatprep.subr.mxu0 0.0
    %1498 = vmatpush1.msra.mxu0 %v1378
    %1499 = vmatprep.subr.mxu0 0.0
    %1500 = vmatpush1.msra.mxu0 %v1379
    %1501 = vmatprep.subr.mxu0 0.0
    %1502 = vmatpush1.msra.mxu0 0.0
    %1503 = vmatprep.subr.mxu0 0.0
    %1504 = vmatpush1.msra.mxu0 0.0
    %1505 = vmatprep.subr.mxu0 0.0
    %1506 = vmatpush1.msra.mxu0 0.0
    %1507 = vmatprep.subr.mxu0 0.0
    %1508 = vmatpush1.msra.mxu0 0.0
    %1509 = vmatprep.subr.mxu0 0.0
    %1510 = vmatpush1.msra.mxu0 0.0
    %1511 = vmatprep.subr.mxu0 0.0
    %1512 = vmatpush1.msra.mxu0 0.0
    %1513 = vmatprep.subr.mxu0 0.0
    %1514 = vmatpush1.msra.mxu0 0.0
    %1515 = vmatprep.subr.mxu0 0.0
    %1516 = vmatpush1.msra.mxu0 0.0
    %1517 = vmatprep.subr.mxu0 0.0
    %1518 = vmatpush1.msra.mxu0 0.0
    %1519 = vmatprep.subr.mxu0 0.0
    %1520 = vmatpush1.msra.mxu0 0.0
    %1521 = vmatprep.subr.mxu0 0.0
    %1522 = vmatpush1.msra.mxu0 0.0
    %1523 = vmatprep.subr.mxu0 0.0
    %1524 = vmatpush1.msra.mxu0 0.0
    %1525 = vmatprep.subr.mxu0 0.0
    %1526 = vmatpush1.msra.mxu0 0.0
    %1527 = vmatprep.subr.mxu0 0.0
    %1528 = vmatpush1.msra.mxu0 0.0
    %1529 = vmatprep.subr.mxu0 0.0
    %1530 = vmatpush1.msra.mxu0 0.0
    %1531 = vmatprep.subr.mxu0 0.0
    %1532 = vmatpush1.msra.mxu0 0.0
    %1533 = vmatprep.mubr.f32.mxu0 0.0
    %1534 = vmatmul.mubr.f32.gmra.mrb[0].mxu0 %v792
    %v1535 = vpop.f32.mrb[0].mxu0
    %v1536 = vadd.f32 %v1451, %v1535
    %v1537 = vpop.f32.mrb[0].mxu0
    %1538 = vmatprep.mubr.f32.mxu0 0.0
    %1539 = vmatmul.mubr.f32.gmra.mrb[0].mxu0 %v797
    %v1540 = vpop.f32.mrb[0].mxu0
    %v1541 = vadd.f32 %v1456, %v1540
    %v1542 = vpop.f32.mrb[0].mxu0
    %1543 = vmatprep.mubr.f32.mxu0 0.0
    %1544 = vmatmul.mubr.f32.gmra.mrb[0].mxu0 %v802
    %v1545 = vpop.f32.mrb[0].mxu0
    %v1546 = vadd.f32 %v1461, %v1545
    %v1547 = vpop.f32.mrb[0].mxu0
    %1548 = vmatprep.mubr.f32.mxu0 0.0
    %1549 = vmatmul.mubr.f32.gmra.mrb[0].mxu0 %v807
    %v1550 = vpop.f32.mrb[0].mxu0
    %v1551 = vadd.f32 %v1466, %v1550
    %v1552 = vpop.f32.mrb[0].mxu0
    %1553 = vdwg.mxu0
    %v1554 = vlaneseq
    %v1555 = vshrl.u32 %v1554, 7
    %v1556 = vsub.s32 2, %v1555
    %v1557 = vrot.slane %v811, %v1556
    %v1558 = vsub.f32 %v1536, %v1557
    %v1559 = vsub.f32 %v1541, %v1557
    %v1560 = vsub.f32 %v1546, %v1557
    %v1561 = vsub.f32 %v1551, %v1557
    %vm1562 = vcmp.ge.f32.partialorder %v1558, 0.0
    %vm1563 = vcmp.ge.f32.partialorder %v1559, 0.0
    %vm1564 = vcmp.ge.f32.partialorder %v1560, 0.0
    %vm1565 = vcmp.ge.f32.partialorder %v1561, 0.0
    %v1566 = vlaneseq
    %v1567 = vshrl.u32 %v1566, 7
    %v1568 = vsub.s32 2, %v1567
    %v1569 = vrot.slane %v812, %v1568
    %v1570 = vmul.f32 %v1558, %v1569
    %v1571 = vmul.f32 %v1559, %v1569
    %v1572 = vmul.f32 %v1560, %v1569
    %v1573 = vmul.f32 %v1561, %v1569
    %v1574 = vsel %vm1562, %v1558, %v1570
    %v1575 = vsel %vm1563, %v1559, %v1571
    %v1576 = vsel %vm1564, %v1560, %v1572
    %v1577 = vsel %vm1565, %v1561, %v1573
    %v1578 = vadd.f32 %v1327, %v1574
    %v1579 = vadd.f32 %v1328, %v1575
    %v1580 = vadd.f32 %v1329, %v1576
    %v1581 = vadd.f32 %v1330, %v1577
    %v1582 = vlaneseq
    %v1583 = vshrl.u32 %v1582, 7
    %v1584 = vsub.s32 2, %v1583
    %v1585 = vrot.slane %v813, %v1584
    %v1586 = vadd.f32 %v1578, %v1585
    %v1587 = vadd.f32 %v1579, %v1585
    %v1588 = vadd.f32 %v1580, %v1585
    %v1589 = vadd.f32 %v1581, %v1585
    %v1590 = vld [vmem:[#allocation10] sm:$0xff]
    %v1591 = vld [vmem:[#allocation10 + $0x8] sm:$0xff]
    %v1592 = vld [vmem:[#allocation10 + $0x10] sm:$0xff]
    %v1593 = vld [vmem:[#allocation10 + $0x18] sm:$0xff]
    %v1594 = vld [vmem:[#allocation10 + $0x20] sm:$0xff]
    %v1595 = vld [vmem:[#allocation10 + $0x28] sm:$0xff]
    %v1596 = vld [vmem:[#allocation10 + $0x30] sm:$0xff]
    %v1597 = vld [vmem:[#allocation10 + $0x38] sm:$0xff]
    %v1598 = vld [vmem:[#allocation10 + $0x40] sm:$0xff]
    %v1599 = vld [vmem:[#allocation10 + $0x48] sm:$0xff]
    %v1600 = vld [vmem:[#allocation10 + $0x50] sm:$0xff]
    %v1601 = vld [vmem:[#allocation10 + $0x58] sm:$0xff]
    %v1602 = vld [vmem:[#allocation10 + $0x60] sm:$0xff]
    %v1603 = vld [vmem:[#allocation10 + $0x68] sm:$0xff]
    %v1604 = vld [vmem:[#allocation10 + $0x70] sm:$0xff]
    %v1605 = vld [vmem:[#allocation10 + $0x78] sm:$0xff]
    %1606 = vmatprep.subr.mxu0 0.0
    %1607 = vmatpush1.msra.mxu0 %v1590
    %1608 = vmatprep.subr.mxu0 0.0
    %1609 = vmatpush1.msra.mxu0 %v1591
    %1610 = vmatprep.subr.mxu0 0.0
    %1611 = vmatpush1.msra.mxu0 %v1592
    %1612 = vmatprep.subr.mxu0 0.0
    %1613 = vmatpush1.msra.mxu0 %v1593
    %1614 = vmatprep.subr.mxu0 0.0
    %1615 = vmatpush1.msra.mxu0 %v1594
    %1616 = vmatprep.subr.mxu0 0.0
    %1617 = vmatpush1.msra.mxu0 %v1595
    %1618 = vmatprep.subr.mxu0 0.0
    %1619 = vmatpush1.msra.mxu0 %v1596
    %1620 = vmatprep.subr.mxu0 0.0
    %1621 = vmatpush1.msra.mxu0 %v1597
    %1622 = vmatprep.subr.mxu0 0.0
    %1623 = vmatpush1.msra.mxu0 %v1598
    %1624 = vmatprep.subr.mxu0 0.0
    %1625 = vmatpush1.msra.mxu0 %v1599
    %1626 = vmatprep.subr.mxu0 0.0
    %1627 = vmatpush1.msra.mxu0 %v1600
    %1628 = vmatprep.subr.mxu0 0.0
    %1629 = vmatpush1.msra.mxu0 %v1601
    %1630 = vmatprep.subr.mxu0 0.0
    %1631 = vmatpush1.msra.mxu0 %v1602
    %1632 = vmatprep.subr.mxu0 0.0
    %1633 = vmatpush1.msra.mxu0 %v1603
    %1634 = vmatprep.subr.mxu0 0.0
    %1635 = vmatpush1.msra.mxu0 %v1604
    %1636 = vmatprep.subr.mxu0 0.0
    %1637 = vmatpush1.msra.mxu0 %v1605
    %1638 = vmatprep.subr.mxu0 0.0
    %1639 = vmatpush1.msra.mxu0 0.0
    %1640 = vmatprep.subr.mxu0 0.0
    %1641 = vmatpush1.msra.mxu0 0.0
    %1642 = vmatprep.subr.mxu0 0.0
    %1643 = vmatpush1.msra.mxu0 0.0
    %1644 = vmatprep.subr.mxu0 0.0
    %1645 = vmatpush1.msra.mxu0 0.0
    %1646 = vmatprep.subr.mxu0 0.0
    %1647 = vmatpush1.msra.mxu0 0.0
    %1648 = vmatprep.subr.mxu0 0.0
    %1649 = vmatpush1.msra.mxu0 0.0
    %1650 = vmatprep.subr.mxu0 0.0
    %1651 = vmatpush1.msra.mxu0 0.0
    %1652 = vmatprep.subr.mxu0 0.0
    %1653 = vmatpush1.msra.mxu0 0.0
    %1654 = vmatprep.subr.mxu0 0.0
    %1655 = vmatpush1.msra.mxu0 0.0
    %1656 = vmatprep.subr.mxu0 0.0
    %1657 = vmatpush1.msra.mxu0 0.0
    %1658 = vmatprep.subr.mxu0 0.0
    %1659 = vmatpush1.msra.mxu0 0.0
    %1660 = vmatprep.subr.mxu0 0.0
    %1661 = vmatpush1.msra.mxu0 0.0
    %1662 = vmatprep.subr.mxu0 0.0
    %1663 = vmatpush1.msra.mxu0 0.0
    %1664 = vmatprep.subr.mxu0 0.0
    %1665 = vmatpush1.msra.mxu0 0.0
    %1666 = vmatprep.subr.mxu0 0.0
    %1667 = vmatpush1.msra.mxu0 0.0
    %1668 = vmatprep.subr.mxu0 0.0
    %1669 = vmatpush1.msra.mxu0 0.0
    %1670 = vmatprep.mubr.f32.mxu0 0.0
    %1671 = vmatmul.mubr.f32.gmra.mrb[0].mxu0 %v1586
    %v1672 = vpop.f32.mrb[0].mxu0
    %v1673 = vadd.f32 0.0, %v1672
    %v1674 = vpop.f32.mrb[0].mxu0
    %1675 = vmatprep.mubr.f32.mxu0 0.0
    %1676 = vmatmul.mubr.f32.gmra.mrb[0].mxu0 %v1587
    %v1677 = vpop.f32.mrb[0].mxu0
    %v1678 = vadd.f32 0.0, %v1677
    %v1679 = vpop.f32.mrb[0].mxu0
    %1680 = vmatprep.mubr.f32.mxu0 0.0
    %1681 = vmatmul.mubr.f32.gmra.mrb[0].mxu0 %v1588
    %v1682 = vpop.f32.mrb[0].mxu0
    %v1683 = vadd.f32 0.0, %v1682
    %v1684 = vpop.f32.mrb[0].mxu0
    %1685 = vmatprep.mubr.f32.mxu0 0.0
    %1686 = vmatmul.mubr.f32.gmra.mrb[0].mxu0 %v1589
    %v1687 = vpop.f32.mrb[0].mxu0
    %v1688 = vadd.f32 0.0, %v1687
    %v1689 = vpop.f32.mrb[0].mxu0
    %1690 = vdwg.mxu0
    %v1691 = vmul.f32 %v1673, 0.125
    %v1692 = vmul.f32 %v1678, 0.125
    %v1693 = vmul.f32 %v1683, 0.125
    %v1694 = vmul.f32 %v1688, 0.125
    %v1695 = vsub.f32 %v1586, %v1691
    %v1696 = vsub.f32 %v1587, %v1692
    %v1697 = vsub.f32 %v1588, %v1693
    %v1698 = vsub.f32 %v1589, %v1694
    %v1699 = vmul.f32 %v1695, %v1695
    %v1700 = vmul.f32 %v1696, %v1696
    %v1701 = vmul.f32 %v1697, %v1697
    %v1702 = vmul.f32 %v1698, %v1698
    %1703 = vmatprep.subr.mxu0 0.0
    %1704 = vmatpush1.msra.mxu0 %v1590
    %1705 = vmatprep.subr.mxu0 0.0
    %1706 = vmatpush1.msra.mxu0 %v1591
    %1707 = vmatprep.subr.mxu0 0.0
    %1708 = vmatpush1.msra.mxu0 %v1592
    %1709 = vmatprep.subr.mxu0 0.0
    %1710 = vmatpush1.msra.mxu0 %v1593
    %1711 = vmatprep.subr.mxu0 0.0
    %1712 = vmatpush1.msra.mxu0 %v1594
    %1713 = vmatprep.subr.mxu0 0.0
    %1714 = vmatpush1.msra.mxu0 %v1595
    %1715 = vmatprep.subr.mxu0 0.0
    %1716 = vmatpush1.msra.mxu0 %v1596
    %1717 = vmatprep.subr.mxu0 0.0
    %1718 = vmatpush1.msra.mxu0 %v1597
    %1719 = vmatprep.subr.mxu0 0.0
    %1720 = vmatpush1.msra.mxu0 %v1598
    %1721 = vmatprep.subr.mxu0 0.0
    %1722 = vmatpush1.msra.mxu0 %v1599
    %1723 = vmatprep.subr.mxu0 0.0
    %1724 = vmatpush1.msra.mxu0 %v1600
    %1725 = vmatprep.subr.mxu0 0.0
    %1726 = vmatpush1.msra.mxu0 %v1601
    %1727 = vmatprep.subr.mxu0 0.0
    %1728 = vmatpush1.msra.mxu0 %v1602
    %1729 = vmatprep.subr.mxu0 0.0
    %1730 = vmatpush1.msra.mxu0 %v1603
    %1731 = vmatprep.subr.mxu0 0.0
    %1732 = vmatpush1.msra.mxu0 %v1604
    %1733 = vmatprep.subr.mxu0 0.0
    %1734 = vmatpush1.msra.mxu0 %v1605
    %1735 = vmatprep.subr.mxu0 0.0
    %1736 = vmatpush1.msra.mxu0 0.0
    %1737 = vmatprep.subr.mxu0 0.0
    %1738 = vmatpush1.msra.mxu0 0.0
    %1739 = vmatprep.subr.mxu0 0.0
    %1740 = vmatpush1.msra.mxu0 0.0
    %1741 = vmatprep.subr.mxu0 0.0
    %1742 = vmatpush1.msra.mxu0 0.0
    %1743 = vmatprep.subr.mxu0 0.0
    %1744 = vmatpush1.msra.mxu0 0.0
    %1745 = vmatprep.subr.mxu0 0.0
    %1746 = vmatpush1.msra.mxu0 0.0
    %1747 = vmatprep.subr.mxu0 0.0
    %1748 = vmatpush1.msra.mxu0 0.0
    %1749 = vmatprep.subr.mxu0 0.0
    %1750 = vmatpush1.msra.mxu0 0.0
    %1751 = vmatprep.subr.mxu0 0.0
    %1752 = vmatpush1.msra.mxu0 0.0
    %1753 = vmatprep.subr.mxu0 0.0
    %1754 = vmatpush1.msra.mxu0 0.0
    %1755 = vmatprep.subr.mxu0 0.0
    %1756 = vmatpush1.msra.mxu0 0.0
    %1757 = vmatprep.subr.mxu0 0.0
    %1758 = vmatpush1.msra.mxu0 0.0
    %1759 = vmatprep.subr.mxu0 0.0
    %1760 = vmatpush1.msra.mxu0 0.0
    %1761 = vmatprep.subr.mxu0 0.0
    %1762 = vmatpush1.msra.mxu0 0.0
    %1763 = vmatprep.subr.mxu0 0.0
    %1764 = vmatpush1.msra.mxu0 0.0
    %1765 = vmatprep.subr.mxu0 0.0
    %1766 = vmatpush1.msra.mxu0 0.0
    %1767 = vmatprep.mubr.f32.mxu0 0.0
    %1768 = vmatmul.mubr.f32.gmra.mrb[0].mxu0 %v1699
    %v1769 = vpop.f32.mrb[0].mxu0
    %v1770 = vadd.f32 0.0, %v1769
    %v1771 = vpop.f32.mrb[0].mxu0
    %1772 = vmatprep.mubr.f32.mxu0 0.0
    %1773 = vmatmul.mubr.f32.gmra.mrb[0].mxu0 %v1700
    %v1774 = vpop.f32.mrb[0].mxu0
    %v1775 = vadd.f32 0.0, %v1774
    %v1776 = vpop.f32.mrb[0].mxu0
    %1777 = vmatprep.mubr.f32.mxu0 0.0
    %1778 = vmatmul.mubr.f32.gmra.mrb[0].mxu0 %v1701
    %v1779 = vpop.f32.mrb[0].mxu0
    %v1780 = vadd.f32 0.0, %v1779
    %v1781 = vpop.f32.mrb[0].mxu0
    %1782 = vmatprep.mubr.f32.mxu0 0.0
    %1783 = vmatmul.mubr.f32.gmra.mrb[0].mxu0 %v1702
    %v1784 = vpop.f32.mrb[0].mxu0
    %v1785 = vadd.f32 0.0, %v1784
    %v1786 = vpop.f32.mrb[0].mxu0
    %1787 = vdwg.mxu0
    %v1788 = vmul.f32 %v1770, 0.125
    %v1789 = vmul.f32 %v1775, 0.125
    %v1790 = vmul.f32 %v1780, 0.125
    %v1791 = vmul.f32 %v1785, 0.125
    %v1792 = vadd.f32 %v1788, 1e-06
    %v1793 = vadd.f32 %v1789, 1e-06
    %v1794 = vadd.f32 %v1790, 1e-06
    %v1795 = vadd.f32 %v1791, 1e-06
    %v1796 = vrsqrt.pop %v1792
    %v1797 = vrsqrt.pop %v1793
    %v1798 = vrsqrt.pop %v1794
    %v1799 = vrsqrt.pop %v1795
    %v1800 = vmul.f32 %v1695, %v1796
    %v1801 = vmul.f32 %v1696, %v1797
    %v1802 = vmul.f32 %v1697, %v1798
    %v1803 = vmul.f32 %v1698, %v1799
    %v1804 = vld [vmem:[%s8] sm:$0x1]
    %v1806 = vlaneseq
    %v1807 = vshrl.u32 %v1806, 7
    %v1808 = vsub.s32 0, %v1807
    %v1809 = vrot.slane %v1804, %v1808
    %v1811 = vmul.f32 %v1800, %v1809
    %v1812 = vmul.f32 %v1801, %v1809
    %v1813 = vmul.f32 %v1802, %v1809
    %v1814 = vmul.f32 %v1803, %v1809
    %v1815 = vld [vmem:[%s9] sm:$0x1]
    %v1817 = vlaneseq
    %v1818 = vshrl.u32 %v1817, 7
    %v1819 = vsub.s32 0, %v1818
    %v1820 = vrot.slane %v1815, %v1819
    %v1822 = vadd.f32 %v1811, %v1820
    %v1823 = vadd.f32 %v1812, %v1820
    %v1824 = vadd.f32 %v1813, %v1820
    %v1825 = vadd.f32 %v1814, %v1820
    %1826 = vmatprep.subr.mxu0 0.0
    %1827 = vmatpush1.msra.mxu0 %v1822
    %1828 = vmatprep.subr.mxu0 0.0
    %1829 = vmatpush1.msra.mxu0 %v1823
    %1830 = vmatprep.subr.mxu0 0.0
    %1831 = vmatpush1.msra.mxu0 %v1824
    %1832 = vmatprep.subr.mxu0 0.0
    %1833 = vmatpush1.msra.mxu0 %v1825
    %1834 = vmatprep.subr.mxu0 0.0
    %1835 = vmatpush1.msra.mxu0 0.0
    %1836 = vmatprep.subr.mxu0 0.0
    %1837 = vmatpush1.msra.mxu0 0.0
    %1838 = vmatprep.subr.mxu0 0.0
    %1839 = vmatpush1.msra.mxu0 0.0
    %1840 = vmatprep.subr.mxu0 0.0
    %1841 = vmatpush1.msra.mxu0 0.0
    %1842 = vmatprep.subr.mxu0 0.0
    %1843 = vmatpush1.msra.mxu0 0.0
    %1844 = vmatprep.subr.mxu0 0.0
    %1845 = vmatpush1.msra.mxu0 0.0
    %1846 = vmatprep.subr.mxu0 0.0
    %1847 = vmatpush1.msra.mxu0 0.0
    %1848 = vmatprep.subr.mxu0 0.0
    %1849 = vmatpush1.msra.mxu0 0.0
    %1850 = vmatprep.subr.mxu0 0.0
    %1851 = vmatpush1.msra.mxu0 0.0
    %1852 = vmatprep.subr.mxu0 0.0
    %1853 = vmatpush1.msra.mxu0 0.0
    %1854 = vmatprep.subr.mxu0 0.0
    %1855 = vmatpush1.msra.mxu0 0.0
    %1856 = vmatprep.subr.mxu0 0.0
    %1857 = vmatpush1.msra.mxu0 0.0
    %1858 = vmatprep.subr.mxu0 0.0
    %1859 = vmatpush1.msra.mxu0 0.0
    %1860 = vmatprep.subr.mxu0 0.0
    %1861 = vmatpush1.msra.mxu0 0.0
    %1862 = vmatprep.subr.mxu0 0.0
    %1863 = vmatpush1.msra.mxu0 0.0
    %1864 = vmatprep.subr.mxu0 0.0
    %1865 = vmatpush1.msra.mxu0 0.0
    %1866 = vmatprep.subr.mxu0 0.0
    %1867 = vmatpush1.msra.mxu0 0.0
    %1868 = vmatprep.subr.mxu0 0.0
    %1869 = vmatpush1.msra.mxu0 0.0
    %1870 = vmatprep.subr.mxu0 0.0
    %1871 = vmatpush1.msra.mxu0 0.0
    %1872 = vmatprep.subr.mxu0 0.0
    %1873 = vmatpush1.msra.mxu0 0.0
    %1874 = vmatprep.subr.mxu0 0.0
    %1875 = vmatpush1.msra.mxu0 0.0
    %1876 = vmatprep.subr.mxu0 0.0
    %1877 = vmatpush1.msra.mxu0 0.0
    %1878 = vmatprep.subr.mxu0 0.0
    %1879 = vmatpush1.msra.mxu0 0.0
    %1880 = vmatprep.subr.mxu0 0.0
    %1881 = vmatpush1.msra.mxu0 0.0
    %1882 = vmatprep.subr.mxu0 0.0
    %1883 = vmatpush1.msra.mxu0 0.0
    %1884 = vmatprep.subr.mxu0 0.0
    %1885 = vmatpush1.msra.mxu0 0.0
    %1886 = vmatprep.subr.mxu0 0.0
    %1887 = vmatpush1.msra.mxu0 0.0
    %1888 = vmatprep.subr.mxu0 0.0
    %1889 = vmatpush1.msra.mxu0 0.0
    %1890 = vmatprep.mubr.f32.mxu0 0.0
    %1891 = vmatmul.mubr.f32.gmra.mrb[0].mxu0 %v408
    %v1892 = vpop.f32.mrb[0].mxu0
    %v1893 = vadd.f32 0.0, %v1892
    %v1894 = vpop.f32.mrb[0].mxu0
    %1895 = vmatprep.mubr.f32.mxu0 0.0
    %1896 = vmatmul.mubr.f32.gmra.mrb[0].mxu0 %v411
    %v1897 = vpop.f32.mrb[0].mxu0
    %v1898 = vadd.f32 0.0, %v1897
    %v1899 = vpop.f32.mrb[0].mxu0
    %1900 = vmatprep.mubr.f32.mxu0 0.0
    %1901 = vmatmul.mubr.f32.gmra.mrb[0].mxu0 %v414
    %v1902 = vpop.f32.mrb[0].mxu0
    %v1903 = vadd.f32 0.0, %v1902
    %v1904 = vpop.f32.mrb[0].mxu0
    %1905 = vmatprep.mubr.f32.mxu0 0.0
    %1906 = vmatmul.mubr.f32.gmra.mrb[0].mxu0 %v417
    %v1907 = vpop.f32.mrb[0].mxu0
    %v1908 = vadd.f32 0.0, %v1907
    %v1909 = vpop.f32.mrb[0].mxu0
    %1910 = vdwg.mxu0
    %1911 = vmatprep.subr.mxu0 0.0
    %1912 = vmatpush1.msra.mxu0 %v1822
    %1913 = vmatprep.subr.mxu0 0.0
    %1914 = vmatpush1.msra.mxu0 %v1823
    %1915 = vmatprep.subr.mxu0 0.0
    %1916 = vmatpush1.msra.mxu0 %v1824
    %1917 = vmatprep.subr.mxu0 0.0
    %1918 = vmatpush1.msra.mxu0 %v1825
    %1919 = vmatprep.subr.mxu0 0.0
    %1920 = vmatpush1.msra.mxu0 0.0
    %1921 = vmatprep.subr.mxu0 0.0
    %1922 = vmatpush1.msra.mxu0 0.0
    %1923 = vmatprep.subr.mxu0 0.0
    %1924 = vmatpush1.msra.mxu0 0.0
    %1925 = vmatprep.subr.mxu0 0.0
    %1926 = vmatpush1.msra.mxu0 0.0
    %1927 = vmatprep.subr.mxu0 0.0
    %1928 = vmatpush1.msra.mxu0 0.0
    %1929 = vmatprep.subr.mxu0 0.0
    %1930 = vmatpush1.msra.mxu0 0.0
    %1931 = vmatprep.subr.mxu0 0.0
    %1932 = vmatpush1.msra.mxu0 0.0
    %1933 = vmatprep.subr.mxu0 0.0
    %1934 = vmatpush1.msra.mxu0 0.0
    %1935 = vmatprep.subr.mxu0 0.0
    %1936 = vmatpush1.msra.mxu0 0.0
    %1937 = vmatprep.subr.mxu0 0.0
    %1938 = vmatpush1.msra.mxu0 0.0
    %1939 = vmatprep.subr.mxu0 0.0
    %1940 = vmatpush1.msra.mxu0 0.0
    %1941 = vmatprep.subr.mxu0 0.0
    %1942 = vmatpush1.msra.mxu0 0.0
    %1943 = vmatprep.subr.mxu0 0.0
    %1944 = vmatpush1.msra.mxu0 0.0
    %1945 = vmatprep.subr.mxu0 0.0
    %1946 = vmatpush1.msra.mxu0 0.0
    %1947 = vmatprep.subr.mxu0 0.0
    %1948 = vmatpush1.msra.mxu0 0.0
    %1949 = vmatprep.subr.mxu0 0.0
    %1950 = vmatpush1.msra.mxu0 0.0
    %1951 = vmatprep.subr.mxu0 0.0
    %1952 = vmatpush1.msra.mxu0 0.0
    %1953 = vmatprep.subr.mxu0 0.0
    %1954 = vmatpush1.msra.mxu0 0.0
    %1955 = vmatprep.subr.mxu0 0.0
    %1956 = vmatpush1.msra.mxu0 0.0
    %1957 = vmatprep.subr.mxu0 0.0
    %1958 = vmatpush1.msra.mxu0 0.0
    %1959 = vmatprep.subr.mxu0 0.0
    %1960 = vmatpush1.msra.mxu0 0.0
    %1961 = vmatprep.subr.mxu0 0.0
    %1962 = vmatpush1.msra.mxu0 0.0
    %1963 = vmatprep.subr.mxu0 0.0
    %1964 = vmatpush1.msra.mxu0 0.0
    %1965 = vmatprep.subr.mxu0 0.0
    %1966 = vmatpush1.msra.mxu0 0.0
    %1967 = vmatprep.subr.mxu0 0.0
    %1968 = vmatpush1.msra.mxu0 0.0
    %1969 = vmatprep.subr.mxu0 0.0
    %1970 = vmatpush1.msra.mxu0 0.0
    %1971 = vmatprep.subr.mxu0 0.0
    %1972 = vmatpush1.msra.mxu0 0.0
    %1973 = vmatprep.subr.mxu0 0.0
    %1974 = vmatpush1.msra.mxu0 0.0
    %1975 = vmatprep.mubr.f32.mxu0 0.0
    %1976 = vmatmul.mubr.f32.gmra.mrb[0].mxu0 %v510
    %v1977 = vpop.f32.mrb[0].mxu0
    %v1978 = vadd.f32 0.0, %v1977
    %v1979 = vpop.f32.mrb[0].mxu0
    %1980 = vmatprep.mubr.f32.mxu0 0.0
    %1981 = vmatmul.mubr.f32.gmra.mrb[0].mxu0 %v513
    %v1982 = vpop.f32.mrb[0].mxu0
    %v1983 = vadd.f32 0.0, %v1982
    %v1984 = vpop.f32.mrb[0].mxu0
    %1985 = vmatprep.mubr.f32.mxu0 0.0
    %1986 = vmatmul.mubr.f32.gmra.mrb[0].mxu0 %v516
    %v1987 = vpop.f32.mrb[0].mxu0
    %v1988 = vadd.f32 0.0, %v1987
    %v1989 = vpop.f32.mrb[0].mxu0
    %1990 = vmatprep.mubr.f32.mxu0 0.0
    %1991 = vmatmul.mubr.f32.gmra.mrb[0].mxu0 %v519
    %v1992 = vpop.f32.mrb[0].mxu0
    %v1993 = vadd.f32 0.0, %v1992
    %v1994 = vpop.f32.mrb[0].mxu0
    %1995 = vdwg.mxu0
    %v1996 = vld [vmem:[#allocation11] sm:$0xff]
    %v1997 = vld [vmem:[#allocation11 + $0x8] sm:$0xff]
    %v1998 = vld [vmem:[#allocation11 + $0x10] sm:$0xff]
    %v1999 = vld [vmem:[#allocation11 + $0x18] sm:$0xff]
    %v2000 = vld [vmem:[#allocation11 + $0x20] sm:$0xff]
    %v2001 = vld [vmem:[#allocation11 + $0x28] sm:$0xff]
    %v2002 = vld [vmem:[#allocation11 + $0x30] sm:$0xff]
    %v2003 = vld [vmem:[#allocation11 + $0x38] sm:$0xff]
    %v2004 = vld [vmem:[#allocation11 + $0x40] sm:$0xff]
    %v2005 = vld [vmem:[#allocation11 + $0x48] sm:$0xff]
    %v2006 = vld [vmem:[#allocation11 + $0x50] sm:$0xff]
    %v2007 = vld [vmem:[#allocation11 + $0x58] sm:$0xff]
    %v2008 = vld [vmem:[#allocation11 + $0x60] sm:$0xff]
    %v2009 = vld [vmem:[#allocation11 + $0x68] sm:$0xff]
    %v2010 = vld [vmem:[#allocation11 + $0x70] sm:$0xff]
    %v2011 = vld [vmem:[#allocation11 + $0x78] sm:$0xff]
    %v2012 = vld [vmem:[#allocation11 + $0x80] sm:$0xff]
    %v2013 = vld [vmem:[#allocation11 + $0x88] sm:$0xff]
    %v2014 = vld [vmem:[#allocation11 + $0x90] sm:$0xff]
    %v2015 = vld [vmem:[#allocation11 + $0x98] sm:$0xff]
    %v2016 = vld [vmem:[#allocation11 + $0xa0] sm:$0xff]
    %v2017 = vld [vmem:[#allocation11 + $0xa8] sm:$0xff]
    %v2018 = vld [vmem:[#allocation11 + $0xb0] sm:$0xff]
    %v2019 = vld [vmem:[#allocation11 + $0xb8] sm:$0xff]
    %v2020 = vld [vmem:[#allocation11 + $0xc0] sm:$0xff]
    %v2021 = vld [vmem:[#allocation11 + $0xc8] sm:$0xff]
    %v2022 = vld [vmem:[#allocation11 + $0xd0] sm:$0xff]
    %v2023 = vld [vmem:[#allocation11 + $0xd8] sm:$0xff]
    %v2024 = vld [vmem:[#allocation11 + $0xe0] sm:$0xff]
    %v2025 = vld [vmem:[#allocation11 + $0xe8] sm:$0xff]
    %v2026 = vld [vmem:[#allocation11 + $0xf0] sm:$0xff]
    %v2027 = vld [vmem:[#allocation11 + $0xf8] sm:$0xff]
    %v2028 = vld [vmem:[#allocation11 + $0x100] sm:$0xff]
    %v2029 = vld [vmem:[#allocation11 + $0x108] sm:$0xff]
    %v2030 = vld [vmem:[#allocation11 + $0x110] sm:$0xff]
    %v2031 = vld [vmem:[#allocation11 + $0x118] sm:$0xff]
    %v2032 = vld [vmem:[#allocation11 + $0x120] sm:$0xff]
    %v2033 = vld [vmem:[#allocation11 + $0x128] sm:$0xff]
    %v2034 = vld [vmem:[#allocation11 + $0x130] sm:$0xff]
    %v2035 = vld [vmem:[#allocation11 + $0x138] sm:$0xff]
    %v2036 = vld [vmem:[#allocation11 + $0x140] sm:$0xff]
    %v2037 = vld [vmem:[#allocation11 + $0x148] sm:$0xff]
    %v2038 = vld [vmem:[#allocation11 + $0x150] sm:$0xff]
    %v2039 = vld [vmem:[#allocation11 + $0x158] sm:$0xff]
    %v2040 = vld [vmem:[#allocation11 + $0x160] sm:$0xff]
    %v2041 = vld [vmem:[#allocation11 + $0x168] sm:$0xff]
    %v2042 = vld [vmem:[#allocation11 + $0x170] sm:$0xff]
    %v2043 = vld [vmem:[#allocation11 + $0x178] sm:$0xff]
    %v2044 = vld [vmem:[#allocation11 + $0x180] sm:$0xff]
    %v2045 = vld [vmem:[#allocation11 + $0x188] sm:$0xff]
    %v2046 = vld [vmem:[#allocation11 + $0x190] sm:$0xff]
    %v2047 = vld [vmem:[#allocation11 + $0x198] sm:$0xff]
    %v2048 = vld [vmem:[#allocation11 + $0x1a0] sm:$0xff]
    %v2049 = vld [vmem:[#allocation11 + $0x1a8] sm:$0xff]
    %v2050 = vld [vmem:[#allocation11 + $0x1b0] sm:$0xff]
    %v2051 = vld [vmem:[#allocation11 + $0x1b8] sm:$0xff]
    %v2052 = vld [vmem:[#allocation11 + $0x1c0] sm:$0xff]
    %v2053 = vld [vmem:[#allocation11 + $0x1c8] sm:$0xff]
    %v2054 = vld [vmem:[#allocation11 + $0x1d0] sm:$0xff]
    %v2055 = vld [vmem:[#allocation11 + $0x1d8] sm:$0xff]
    %v2056 = vld [vmem:[#allocation11 + $0x1e0] sm:$0xff]
    %v2057 = vld [vmem:[#allocation11 + $0x1e8] sm:$0xff]
    %v2058 = vld [vmem:[#allocation11 + $0x1f0] sm:$0xff]
    %v2059 = vld [vmem:[#allocation11 + $0x1f8] sm:$0xff]
    %v2060 = vld [vmem:[#allocation11 + $0x200] sm:$0xff]
    %v2061 = vld [vmem:[#allocation11 + $0x208] sm:$0xff]
    %v2062 = vld [vmem:[#allocation11 + $0x210] sm:$0xff]
    %v2063 = vld [vmem:[#allocation11 + $0x218] sm:$0xff]
    %v2064 = vld [vmem:[#allocation11 + $0x220] sm:$0xff]
    %v2065 = vld [vmem:[#allocation11 + $0x228] sm:$0xff]
    %v2066 = vld [vmem:[#allocation11 + $0x230] sm:$0xff]
    %v2067 = vld [vmem:[#allocation11 + $0x238] sm:$0xff]
    %v2068 = vld [vmem:[#allocation11 + $0x240] sm:$0xff]
    %v2069 = vld [vmem:[#allocation11 + $0x248] sm:$0xff]
    %v2070 = vld [vmem:[#allocation11 + $0x250] sm:$0xff]
    %v2071 = vld [vmem:[#allocation11 + $0x258] sm:$0xff]
    %v2072 = vld [vmem:[#allocation11 + $0x260] sm:$0xff]
    %v2073 = vld [vmem:[#allocation11 + $0x268] sm:$0xff]
    %v2074 = vld [vmem:[#allocation11 + $0x270] sm:$0xff]
    %v2075 = vld [vmem:[#allocation11 + $0x278] sm:$0xff]
    %v2076 = vld [vmem:[#allocation11 + $0x280] sm:$0xff]
    %v2077 = vld [vmem:[#allocation11 + $0x288] sm:$0xff]
    %v2078 = vld [vmem:[#allocation11 + $0x290] sm:$0xff]
    %v2079 = vld [vmem:[#allocation11 + $0x298] sm:$0xff]
    %v2080 = vld [vmem:[#allocation11 + $0x2a0] sm:$0xff]
    %v2081 = vld [vmem:[#allocation11 + $0x2a8] sm:$0xff]
    %v2082 = vld [vmem:[#allocation11 + $0x2b0] sm:$0xff]
    %v2083 = vld [vmem:[#allocation11 + $0x2b8] sm:$0xff]
    %v2084 = vld [vmem:[#allocation11 + $0x2c0] sm:$0xff]
    %v2085 = vld [vmem:[#allocation11 + $0x2c8] sm:$0xff]
    %v2086 = vld [vmem:[#allocation11 + $0x2d0] sm:$0xff]
    %v2087 = vld [vmem:[#allocation11 + $0x2d8] sm:$0xff]
    %v2088 = vld [vmem:[#allocation11 + $0x2e0] sm:$0xff]
    %v2089 = vld [vmem:[#allocation11 + $0x2e8] sm:$0xff]
    %v2090 = vld [vmem:[#allocation11 + $0x2f0] sm:$0xff]
    %v2091 = vld [vmem:[#allocation11 + $0x2f8] sm:$0xff]
    %2092 = vmatprep.subr.mxu0 %v1997
    %2093 = vmatpush1.msra.mxu0 %v1996
    %2094 = vmatprep.subr.mxu0 %v1999
    %2095 = vmatpush1.msra.mxu0 %v1998
    %2096 = vmatprep.subr.mxu0 %v2001
    %2097 = vmatpush1.msra.mxu0 %v2000
    %2098 = vmatprep.subr.mxu0 %v2003
    %2099 = vmatpush1.msra.mxu0 %v2002
    %2100 = vmatprep.subr.mxu0 %v2005
    %2101 = vmatpush1.msra.mxu0 %v2004
    %2102 = vmatprep.subr.mxu0 %v2007
    %2103 = vmatpush1.msra.mxu0 %v2006
    %2104 = vmatprep.subr.mxu0 %v2009
    %2105 = vmatpush1.msra.mxu0 %v2008
    %2106 = vmatprep.subr.mxu0 %v2011
    %2107 = vmatpush1.msra.mxu0 %v2010
    %2108 = vmatprep.subr.mxu0 %v2013
    %2109 = vmatpush1.msra.mxu0 %v2012
    %2110 = vmatprep.subr.mxu0 %v2015
    %2111 = vmatpush1.msra.mxu0 %v2014
    %2112 = vmatprep.subr.mxu0 %v2017
    %2113 = vmatpush1.msra.mxu0 %v2016
    %2114 = vmatprep.subr.mxu0 %v2019
    %2115 = vmatpush1.msra.mxu0 %v2018
    %2116 = vmatprep.subr.mxu0 %v2021
    %2117 = vmatpush1.msra.mxu0 %v2020
    %2118 = vmatprep.subr.mxu0 %v2023
    %2119 = vmatpush1.msra.mxu0 %v2022
    %2120 = vmatprep.subr.mxu0 %v2025
    %2121 = vmatpush1.msra.mxu0 %v2024
    %2122 = vmatprep.subr.mxu0 %v2027
    %2123 = vmatpush1.msra.mxu0 %v2026
    %2124 = vmatprep.subr.mxu0 %v2029
    %2125 = vmatpush1.msra.mxu0 %v2028
    %2126 = vmatprep.subr.mxu0 %v2031
    %2127 = vmatpush1.msra.mxu0 %v2030
    %2128 = vmatprep.subr.mxu0 %v2033
    %2129 = vmatpush1.msra.mxu0 %v2032
    %2130 = vmatprep.subr.mxu0 %v2035
    %2131 = vmatpush1.msra.mxu0 %v2034
    %2132 = vmatprep.subr.mxu0 %v2037
    %2133 = vmatpush1.msra.mxu0 %v2036
    %2134 = vmatprep.subr.mxu0 %v2039
    %2135 = vmatpush1.msra.mxu0 %v2038
    %2136 = vmatprep.subr.mxu0 %v2041
    %2137 = vmatpush1.msra.mxu0 %v2040
    %2138 = vmatprep.subr.mxu0 %v2043
    %2139 = vmatpush1.msra.mxu0 %v2042
    %2140 = vmatprep.subr.mxu0 %v2045
    %2141 = vmatpush1.msra.mxu0 %v2044
    %2142 = vmatprep.subr.mxu0 %v2047
    %2143 = vmatpush1.msra.mxu0 %v2046
    %2144 = vmatprep.subr.mxu0 %v2049
    %2145 = vmatpush1.msra.mxu0 %v2048
    %2146 = vmatprep.subr.mxu0 %v2051
    %2147 = vmatpush1.msra.mxu0 %v2050
    %2148 = vmatprep.subr.mxu0 %v2053
    %2149 = vmatpush1.msra.mxu0 %v2052
    %2150 = vmatprep.subr.mxu0 %v2055
    %2151 = vmatpush1.msra.mxu0 %v2054
    %2152 = vmatprep.subr.mxu0 %v2057
    %2153 = vmatpush1.msra.mxu0 %v2056
    %2154 = vmatprep.subr.mxu0 %v2059
    %2155 = vmatpush1.msra.mxu0 %v2058
    %2156 = vmatprep.mubr.f32.mxu0 %v1822
    %2157 = vmatmul.mubr.f32.gmra.mrb[0].mxu0 %v1893
    %v2158 = vpop.f32.mrb[0].mxu0
    %v2159 = vadd.f32 0.0, %v2158
    %v2160 = vpop.f32.mrb[0].mxu0
    %v2161 = vadd.f32 0.0, %v2160
    %2162 = vmatprep.mubr.f32.mxu0 %v1823
    %2163 = vmatmul.mubr.f32.gmra.mrb[0].mxu0 %v1898
    %v2164 = vpop.f32.mrb[0].mxu0
    %v2165 = vadd.f32 0.0, %v2164
    %v2166 = vpop.f32.mrb[0].mxu0
    %v2167 = vadd.f32 0.0, %v2166
    %2168 = vmatprep.mubr.f32.mxu0 %v1824
    %2169 = vmatmul.mubr.f32.gmra.mrb[0].mxu0 %v1903
    %v2170 = vpop.f32.mrb[0].mxu0
    %v2171 = vadd.f32 0.0, %v2170
    %v2172 = vpop.f32.mrb[0].mxu0
    %v2173 = vadd.f32 0.0, %v2172
    %2174 = vmatprep.mubr.f32.mxu0 %v1825
    %2175 = vmatmul.mubr.f32.gmra.mrb[0].mxu0 %v1908
    %v2176 = vpop.f32.mrb[0].mxu0
    %v2177 = vadd.f32 0.0, %v2176
    %v2178 = vpop.f32.mrb[0].mxu0
    %v2179 = vadd.f32 0.0, %v2178
    %2180 = vdwg.mxu0
    %2181 = vmatprep.subr.mxu0 %v2061
    %2182 = vmatpush1.msra.mxu0 %v2060
    %2183 = vmatprep.subr.mxu0 %v2063
    %2184 = vmatpush1.msra.mxu0 %v2062
    %2185 = vmatprep.subr.mxu0 %v2065
    %2186 = vmatpush1.msra.mxu0 %v2064
    %2187 = vmatprep.subr.mxu0 %v2067
    %2188 = vmatpush1.msra.mxu0 %v2066
    %2189 = vmatprep.subr.mxu0 %v2069
    %2190 = vmatpush1.msra.mxu0 %v2068
    %2191 = vmatprep.subr.mxu0 %v2071
    %2192 = vmatpush1.msra.mxu0 %v2070
    %2193 = vmatprep.subr.mxu0 %v2073
    %2194 = vmatpush1.msra.mxu0 %v2072
    %2195 = vmatprep.subr.mxu0 %v2075
    %2196 = vmatpush1.msra.mxu0 %v2074
    %2197 = vmatprep.subr.mxu0 %v2077
    %2198 = vmatpush1.msra.mxu0 %v2076
    %2199 = vmatprep.subr.mxu0 %v2079
    %2200 = vmatpush1.msra.mxu0 %v2078
    %2201 = vmatprep.subr.mxu0 %v2081
    %2202 = vmatpush1.msra.mxu0 %v2080
    %2203 = vmatprep.subr.mxu0 %v2083
    %2204 = vmatpush1.msra.mxu0 %v2082
    %2205 = vmatprep.subr.mxu0 %v2085
    %2206 = vmatpush1.msra.mxu0 %v2084
    %2207 = vmatprep.subr.mxu0 %v2087
    %2208 = vmatpush1.msra.mxu0 %v2086
    %2209 = vmatprep.subr.mxu0 %v2089
    %2210 = vmatpush1.msra.mxu0 %v2088
    %2211 = vmatprep.subr.mxu0 %v2091
    %2212 = vmatpush1.msra.mxu0 %v2090
    %2213 = vmatprep.subr.mxu0 0.0
    %2214 = vmatpush1.msra.mxu0 0.0
    %2215 = vmatprep.subr.mxu0 0.0
    %2216 = vmatpush1.msra.mxu0 0.0
    %2217 = vmatprep.subr.mxu0 0.0
    %2218 = vmatpush1.msra.mxu0 0.0
    %2219 = vmatprep.subr.mxu0 0.0
    %2220 = vmatpush1.msra.mxu0 0.0
    %2221 = vmatprep.subr.mxu0 0.0
    %2222 = vmatpush1.msra.mxu0 0.0
    %2223 = vmatprep.subr.mxu0 0.0
    %2224 = vmatpush1.msra.mxu0 0.0
    %2225 = vmatprep.subr.mxu0 0.0
    %2226 = vmatpush1.msra.mxu0 0.0
    %2227 = vmatprep.subr.mxu0 0.0
    %2228 = vmatpush1.msra.mxu0 0.0
    %2229 = vmatprep.subr.mxu0 0.0
    %2230 = vmatpush1.msra.mxu0 0.0
    %2231 = vmatprep.subr.mxu0 0.0
    %2232 = vmatpush1.msra.mxu0 0.0
    %2233 = vmatprep.subr.mxu0 0.0
    %2234 = vmatpush1.msra.mxu0 0.0
    %2235 = vmatprep.subr.mxu0 0.0
    %2236 = vmatpush1.msra.mxu0 0.0
    %2237 = vmatprep.subr.mxu0 0.0
    %2238 = vmatpush1.msra.mxu0 0.0
    %2239 = vmatprep.subr.mxu0 0.0
    %2240 = vmatpush1.msra.mxu0 0.0
    %2241 = vmatprep.subr.mxu0 0.0
    %2242 = vmatpush1.msra.mxu0 0.0
    %2243 = vmatprep.subr.mxu0 0.0
    %2244 = vmatpush1.msra.mxu0 0.0
    %2245 = vmatprep.mubr.f32.mxu0 0.0
    %2246 = vmatmul.mubr.f32.gmra.mrb[0].mxu0 %v1978
    %v2247 = vpop.f32.mrb[0].mxu0
    %v2248 = vadd.f32 %v2159, %v2247
    %v2249 = vpop.f32.mrb[0].mxu0
    %v2250 = vadd.f32 %v2161, %v2249
    %2251 = vmatprep.mubr.f32.mxu0 0.0
    %2252 = vmatmul.mubr.f32.gmra.mrb[0].mxu0 %v1983
    %v2253 = vpop.f32.mrb[0].mxu0
    %v2254 = vadd.f32 %v2165, %v2253
    %v2255 = vpop.f32.mrb[0].mxu0
    %v2256 = vadd.f32 %v2167, %v2255
    %2257 = vmatprep.mubr.f32.mxu0 0.0
    %2258 = vmatmul.mubr.f32.gmra.mrb[0].mxu0 %v1988
    %v2259 = vpop.f32.mrb[0].mxu0
    %v2260 = vadd.f32 %v2171, %v2259
    %v2261 = vpop.f32.mrb[0].mxu0
    %v2262 = vadd.f32 %v2173, %v2261
    %2263 = vmatprep.mubr.f32.mxu0 0.0
    %2264 = vmatmul.mubr.f32.gmra.mrb[0].mxu0 %v1993
    %v2265 = vpop.f32.mrb[0].mxu0
    %v2266 = vadd.f32 %v2177, %v2265
    %v2267 = vpop.f32.mrb[0].mxu0
    %v2268 = vadd.f32 %v2179, %v2267
    %2269 = vdwg.mxu0
    %v2270 = vld [vmem:[#allocation13] sm:$0xff]
    %v2271 = vld [vmem:[#allocation13 + $0x8] sm:$0xff]
    %v2272 = vld [vmem:[#allocation13 + $0x10] sm:$0xff]
    %v2273 = vld [vmem:[#allocation13 + $0x18] sm:$0xff]
    %v2274 = vld [vmem:[#allocation13 + $0x20] sm:$0xff]
    %v2275 = vld [vmem:[#allocation13 + $0x28] sm:$0xff]
    %v2276 = vld [vmem:[#allocation13 + $0x30] sm:$0xff]
    %v2277 = vld [vmem:[#allocation13 + $0x38] sm:$0xff]
    %v2278 = vld [vmem:[#allocation13 + $0x40] sm:$0xff]
    %v2279 = vld [vmem:[#allocation13 + $0x48] sm:$0xff]
    %v2280 = vld [vmem:[#allocation13 + $0x50] sm:$0xff]
    %v2281 = vld [vmem:[#allocation13 + $0x58] sm:$0xff]
    %v2282 = vld [vmem:[#allocation13 + $0x60] sm:$0xff]
    %v2283 = vld [vmem:[#allocation13 + $0x68] sm:$0xff]
    %v2284 = vld [vmem:[#allocation13 + $0x70] sm:$0xff]
    %v2285 = vld [vmem:[#allocation13 + $0x78] sm:$0xff]
    %v2286 = vld [vmem:[#allocation13 + $0x80] sm:$0xff]
    %v2287 = vld [vmem:[#allocation13 + $0x88] sm:$0xff]
    %v2288 = vld [vmem:[#allocation13 + $0x90] sm:$0xff]
    %v2289 = vld [vmem:[#allocation13 + $0x98] sm:$0xff]
    %v2290 = vld [vmem:[#allocation13 + $0xa0] sm:$0xff]
    %v2291 = vld [vmem:[#allocation13 + $0xa8] sm:$0xff]
    %v2292 = vld [vmem:[#allocation13 + $0xb0] sm:$0xff]
    %v2293 = vld [vmem:[#allocation13 + $0xb8] sm:$0xff]
    %v2294 = vld [vmem:[#allocation13 + $0xc0] sm:$0xff]
    %v2295 = vld [vmem:[#allocation13 + $0xc8] sm:$0xff]
    %v2296 = vld [vmem:[#allocation13 + $0xd0] sm:$0xff]
    %v2297 = vld [vmem:[#allocation13 + $0xd8] sm:$0xff]
    %v2298 = vld [vmem:[#allocation13 + $0xe0] sm:$0xff]
    %v2299 = vld [vmem:[#allocation13 + $0xe8] sm:$0xff]
    %v2300 = vld [vmem:[#allocation13 + $0xf0] sm:$0xff]
    %v2301 = vld [vmem:[#allocation13 + $0xf8] sm:$0xff]
    %v2302 = vld [vmem:[#allocation13 + $0x100] sm:$0xff]
    %v2303 = vld [vmem:[#allocation13 + $0x108] sm:$0xff]
    %v2304 = vld [vmem:[#allocation13 + $0x110] sm:$0xff]
    %v2305 = vld [vmem:[#allocation13 + $0x118] sm:$0xff]
    %v2306 = vld [vmem:[#allocation13 + $0x120] sm:$0xff]
    %v2307 = vld [vmem:[#allocation13 + $0x128] sm:$0xff]
    %v2308 = vld [vmem:[#allocation13 + $0x130] sm:$0xff]
    %v2309 = vld [vmem:[#allocation13 + $0x138] sm:$0xff]
    %v2310 = vld [vmem:[#allocation13 + $0x140] sm:$0xff]
    %v2311 = vld [vmem:[#allocation13 + $0x148] sm:$0xff]
    %v2312 = vld [vmem:[#allocation13 + $0x150] sm:$0xff]
    %v2313 = vld [vmem:[#allocation13 + $0x158] sm:$0xff]
    %v2314 = vld [vmem:[#allocation13 + $0x160] sm:$0xff]
    %v2315 = vld [vmem:[#allocation13 + $0x168] sm:$0xff]
    %v2316 = vld [vmem:[#allocation13 + $0x170] sm:$0xff]
    %v2317 = vld [vmem:[#allocation13 + $0x178] sm:$0xff]
    %v2318 = vld [vmem:[#allocation13 + $0x180] sm:$0xff]
    %v2319 = vld [vmem:[#allocation13 + $0x188] sm:$0xff]
    %v2320 = vld [vmem:[#allocation13 + $0x190] sm:$0xff]
    %v2321 = vld [vmem:[#allocation13 + $0x198] sm:$0xff]
    %v2322 = vld [vmem:[#allocation13 + $0x1a0] sm:$0xff]
    %v2323 = vld [vmem:[#allocation13 + $0x1a8] sm:$0xff]
    %v2324 = vld [vmem:[#allocation13 + $0x1b0] sm:$0xff]
    %v2325 = vld [vmem:[#allocation13 + $0x1b8] sm:$0xff]
    %v2326 = vld [vmem:[#allocation13 + $0x1c0] sm:$0xff]
    %v2327 = vld [vmem:[#allocation13 + $0x1c8] sm:$0xff]
    %v2328 = vld [vmem:[#allocation13 + $0x1d0] sm:$0xff]
    %v2329 = vld [vmem:[#allocation13 + $0x1d8] sm:$0xff]
    %v2330 = vld [vmem:[#allocation13 + $0x1e0] sm:$0xff]
    %v2331 = vld [vmem:[#allocation13 + $0x1e8] sm:$0xff]
    %v2332 = vld [vmem:[#allocation13 + $0x1f0] sm:$0xff]
    %v2333 = vld [vmem:[#allocation13 + $0x1f8] sm:$0xff]
    %2334 = vmatprep.subr.mxu0 %v2271
    %2335 = vmatpush1.msra.mxu0 %v2270
    %2336 = vmatprep.subr.mxu0 %v2273
    %2337 = vmatpush1.msra.mxu0 %v2272
    %2338 = vmatprep.subr.mxu0 %v2275
    %2339 = vmatpush1.msra.mxu0 %v2274
    %2340 = vmatprep.subr.mxu0 %v2277
    %2341 = vmatpush1.msra.mxu0 %v2276
    %2342 = vmatprep.subr.mxu0 %v2279
    %2343 = vmatpush1.msra.mxu0 %v2278
    %2344 = vmatprep.subr.mxu0 %v2281
    %2345 = vmatpush1.msra.mxu0 %v2280
    %2346 = vmatprep.subr.mxu0 %v2283
    %2347 = vmatpush1.msra.mxu0 %v2282
    %2348 = vmatprep.subr.mxu0 %v2285
    %2349 = vmatpush1.msra.mxu0 %v2284
    %2350 = vmatprep.subr.mxu0 %v2287
    %2351 = vmatpush1.msra.mxu0 %v2286
    %2352 = vmatprep.subr.mxu0 %v2289
    %2353 = vmatpush1.msra.mxu0 %v2288
    %2354 = vmatprep.subr.mxu0 %v2291
    %2355 = vmatpush1.msra.mxu0 %v2290
    %2356 = vmatprep.subr.mxu0 %v2293
    %2357 = vmatpush1.msra.mxu0 %v2292
    %2358 = vmatprep.subr.mxu0 %v2295
    %2359 = vmatpush1.msra.mxu0 %v2294
    %2360 = vmatprep.subr.mxu0 %v2297
    %2361 = vmatpush1.msra.mxu0 %v2296
    %2362 = vmatprep.subr.mxu0 %v2299
    %2363 = vmatpush1.msra.mxu0 %v2298
    %2364 = vmatprep.subr.mxu0 %v2301
    %2365 = vmatpush1.msra.mxu0 %v2300
    %2366 = vmatprep.subr.mxu0 %v2303
    %2367 = vmatpush1.msra.mxu0 %v2302
    %2368 = vmatprep.subr.mxu0 %v2305
    %2369 = vmatpush1.msra.mxu0 %v2304
    %2370 = vmatprep.subr.mxu0 %v2307
    %2371 = vmatpush1.msra.mxu0 %v2306
    %2372 = vmatprep.subr.mxu0 %v2309
    %2373 = vmatpush1.msra.mxu0 %v2308
    %2374 = vmatprep.subr.mxu0 %v2311
    %2375 = vmatpush1.msra.mxu0 %v2310
    %2376 = vmatprep.subr.mxu0 %v2313
    %2377 = vmatpush1.msra.mxu0 %v2312
    %2378 = vmatprep.subr.mxu0 %v2315
    %2379 = vmatpush1.msra.mxu0 %v2314
    %2380 = vmatprep.subr.mxu0 %v2317
    %2381 = vmatpush1.msra.mxu0 %v2316
    %2382 = vmatprep.subr.mxu0 %v2319
    %2383 = vmatpush1.msra.mxu0 %v2318
    %2384 = vmatprep.subr.mxu0 %v2321
    %2385 = vmatpush1.msra.mxu0 %v2320
    %2386 = vmatprep.subr.mxu0 %v2323
    %2387 = vmatpush1.msra.mxu0 %v2322
    %2388 = vmatprep.subr.mxu0 %v2325
    %2389 = vmatpush1.msra.mxu0 %v2324
    %2390 = vmatprep.subr.mxu0 %v2327
    %2391 = vmatpush1.msra.mxu0 %v2326
    %2392 = vmatprep.subr.mxu0 %v2329
    %2393 = vmatpush1.msra.mxu0 %v2328
    %2394 = vmatprep.subr.mxu0 %v2331
    %2395 = vmatpush1.msra.mxu0 %v2330
    %2396 = vmatprep.subr.mxu0 %v2333
    %2397 = vmatpush1.msra.mxu0 %v2332
    %2398 = vmatprep.mubr.f32.mxu0 %v2250
    %2399 = vmatmul.mubr.f32.gmra.mrb[0].mxu0 %v2248
    %v2400 = vpop.f32.mrb[0].mxu0
    %v2401 = vadd.f32 0.0, %v2400
    %v2402 = vpop.f32.mrb[0].mxu0
    %v2403 = vadd.f32 0.0, %v2402
    %2404 = vmatprep.mubr.f32.mxu0 %v2256
    %2405 = vmatmul.mubr.f32.gmra.mrb[0].mxu0 %v2254
    %v2406 = vpop.f32.mrb[0].mxu0
    %v2407 = vadd.f32 0.0, %v2406
    %v2408 = vpop.f32.mrb[0].mxu0
    %v2409 = vadd.f32 0.0, %v2408
    %2410 = vmatprep.mubr.f32.mxu0 %v2262
    %2411 = vmatmul.mubr.f32.gmra.mrb[0].mxu0 %v2260
    %v2412 = vpop.f32.mrb[0].mxu0
    %v2413 = vadd.f32 0.0, %v2412
    %v2414 = vpop.f32.mrb[0].mxu0
    %v2415 = vadd.f32 0.0, %v2414
    %2416 = vmatprep.mubr.f32.mxu0 %v2268
    %2417 = vmatmul.mubr.f32.gmra.mrb[0].mxu0 %v2266
    %v2418 = vpop.f32.mrb[0].mxu0
    %v2419 = vadd.f32 0.0, %v2418
    %v2420 = vpop.f32.mrb[0].mxu0
    %v2421 = vadd.f32 0.0, %v2420
    %2422 = vdwg.mxu0
    %v2423 = vadd.f32 %v2401, %v2407
    %v2424 = vadd.f32 %v2423, %v2413
    %v2425 = vadd.f32 %v2424, %v2419
    %v2426 = vrot.slane %v2425, 4
    %v2427 = vadd.f32 %v2425, %v2426
    %v2428 = vrot.slane %v2427, 2
    %v2429 = vadd.f32 %v2427, %v2428
    %v2430 = vrot.slane %v2429, 1
    %v2431 = vadd.f32 %v2429, %v2430
    %v2432 = vadd.f32 %v2403, %v2409
    %v2433 = vadd.f32 %v2432, %v2415
    %v2434 = vadd.f32 %v2433, %v2421
    %v2435 = vrot.slane %v2434, 4
    %v2436 = vadd.f32 %v2434, %v2435
    %v2437 = vrot.slane %v2436, 2
    %v2438 = vadd.f32 %v2436, %v2437
    %v2439 = vrot.slane %v2438, 1
    %v2440 = vadd.f32 %v2438, %v2439
    %v2441 = vmul.f32 %v2431, 0.001953125
    %v2442 = vmul.f32 %v2440, 0.001953125
    %v2443 = vsub.f32 %v2248, %v2441
    %v2444 = vsub.f32 %v2250, %v2442
    %v2445 = vsub.f32 %v2254, %v2441
    %v2446 = vsub.f32 %v2256, %v2442
    %v2447 = vsub.f32 %v2260, %v2441
    %v2448 = vsub.f32 %v2262, %v2442
    %v2449 = vsub.f32 %v2266, %v2441
    %v2450 = vsub.f32 %v2268, %v2442
    %v2451 = vmul.f32 %v2443, %v2443
    %v2452 = vmul.f32 %v2444, %v2444
    %v2453 = vmul.f32 %v2445, %v2445
    %v2454 = vmul.f32 %v2446, %v2446
    %v2455 = vmul.f32 %v2447, %v2447
    %v2456 = vmul.f32 %v2448, %v2448
    %v2457 = vmul.f32 %v2449, %v2449
    %v2458 = vmul.f32 %v2450, %v2450
    %2459 = vmatprep.subr.mxu0 %v2271
    %2460 = vmatpush1.msra.mxu0 %v2270
    %2461 = vmatprep.subr.mxu0 %v2273
    %2462 = vmatpush1.msra.mxu0 %v2272
    %2463 = vmatprep.subr.mxu0 %v2275
    %2464 = vmatpush1.msra.mxu0 %v2274
    %2465 = vmatprep.subr.mxu0 %v2277
    %2466 = vmatpush1.msra.mxu0 %v2276
    %2467 = vmatprep.subr.mxu0 %v2279
    %2468 = vmatpush1.msra.mxu0 %v2278
    %2469 = vmatprep.subr.mxu0 %v2281
    %2470 = vmatpush1.msra.mxu0 %v2280
    %2471 = vmatprep.subr.mxu0 %v2283
    %2472 = vmatpush1.msra.mxu0 %v2282
    %2473 = vmatprep.subr.mxu0 %v2285
    %2474 = vmatpush1.msra.mxu0 %v2284
    %2475 = vmatprep.subr.mxu0 %v2287
    %2476 = vmatpush1.msra.mxu0 %v2286
    %2477 = vmatprep.subr.mxu0 %v2289
    %2478 = vmatpush1.msra.mxu0 %v2288
    %2479 = vmatprep.subr.mxu0 %v2291
    %2480 = vmatpush1.msra.mxu0 %v2290
    %2481 = vmatprep.subr.mxu0 %v2293
    %2482 = vmatpush1.msra.mxu0 %v2292
    %2483 = vmatprep.subr.mxu0 %v2295
    %2484 = vmatpush1.msra.mxu0 %v2294
    %2485 = vmatprep.subr.mxu0 %v2297
    %2486 = vmatpush1.msra.mxu0 %v2296
    %2487 = vmatprep.subr.mxu0 %v2299
    %2488 = vmatpush1.msra.mxu0 %v2298
    %2489 = vmatprep.subr.mxu0 %v2301
    %2490 = vmatpush1.msra.mxu0 %v2300
    %2491 = vmatprep.subr.mxu0 %v2303
    %2492 = vmatpush1.msra.mxu0 %v2302
    %2493 = vmatprep.subr.mxu0 %v2305
    %2494 = vmatpush1.msra.mxu0 %v2304
    %2495 = vmatprep.subr.mxu0 %v2307
    %2496 = vmatpush1.msra.mxu0 %v2306
    %2497 = vmatprep.subr.mxu0 %v2309
    %2498 = vmatpush1.msra.mxu0 %v2308
    %2499 = vmatprep.subr.mxu0 %v2311
    %2500 = vmatpush1.msra.mxu0 %v2310
    %2501 = vmatprep.subr.mxu0 %v2313
    %2502 = vmatpush1.msra.mxu0 %v2312
    %2503 = vmatprep.subr.mxu0 %v2315
    %2504 = vmatpush1.msra.mxu0 %v2314
    %2505 = vmatprep.subr.mxu0 %v2317
    %2506 = vmatpush1.msra.mxu0 %v2316
    %2507 = vmatprep.subr.mxu0 %v2319
    %2508 = vmatpush1.msra.mxu0 %v2318
    %2509 = vmatprep.subr.mxu0 %v2321
    %2510 = vmatpush1.msra.mxu0 %v2320
    %2511 = vmatprep.subr.mxu0 %v2323
    %2512 = vmatpush1.msra.mxu0 %v2322
    %2513 = vmatprep.subr.mxu0 %v2325
    %2514 = vmatpush1.msra.mxu0 %v2324
    %2515 = vmatprep.subr.mxu0 %v2327
    %2516 = vmatpush1.msra.mxu0 %v2326
    %2517 = vmatprep.subr.mxu0 %v2329
    %2518 = vmatpush1.msra.mxu0 %v2328
    %2519 = vmatprep.subr.mxu0 %v2331
    %2520 = vmatpush1.msra.mxu0 %v2330
    %2521 = vmatprep.subr.mxu0 %v2333
    %2522 = vmatpush1.msra.mxu0 %v2332
    %2523 = vmatprep.mubr.f32.mxu0 %v2452
    %2524 = vmatmul.mubr.f32.gmra.mrb[0].mxu0 %v2451
    %v2525 = vpop.f32.mrb[0].mxu0
    %v2526 = vadd.f32 0.0, %v2525
    %v2527 = vpop.f32.mrb[0].mxu0
    %v2528 = vadd.f32 0.0, %v2527
    %2529 = vmatprep.mubr.f32.mxu0 %v2454
    %2530 = vmatmul.mubr.f32.gmra.mrb[0].mxu0 %v2453
    %v2531 = vpop.f32.mrb[0].mxu0
    %v2532 = vadd.f32 0.0, %v2531
    %v2533 = vpop.f32.mrb[0].mxu0
    %v2534 = vadd.f32 0.0, %v2533
    %2535 = vmatprep.mubr.f32.mxu0 %v2456
    %2536 = vmatmul.mubr.f32.gmra.mrb[0].mxu0 %v2455
    %v2537 = vpop.f32.mrb[0].mxu0
    %v2538 = vadd.f32 0.0, %v2537
    %v2539 = vpop.f32.mrb[0].mxu0
    %v2540 = vadd.f32 0.0, %v2539
    %2541 = vmatprep.mubr.f32.mxu0 %v2458
    %2542 = vmatmul.mubr.f32.gmra.mrb[0].mxu0 %v2457
    %v2543 = vpop.f32.mrb[0].mxu0
    %v2544 = vadd.f32 0.0, %v2543
    %v2545 = vpop.f32.mrb[0].mxu0
    %v2546 = vadd.f32 0.0, %v2545
    %2547 = vdwg.mxu0
    %v2548 = vadd.f32 %v2526, %v2532
    %v2549 = vadd.f32 %v2548, %v2538
    %v2550 = vadd.f32 %v2549, %v2544
    %v2551 = vrot.slane %v2550, 4
    %v2552 = vadd.f32 %v2550, %v2551
    %v2553 = vrot.slane %v2552, 2
    %v2554 = vadd.f32 %v2552, %v2553
    %v2555 = vrot.slane %v2554, 1
    %v2556 = vadd.f32 %v2554, %v2555
    %v2557 = vadd.f32 %v2528, %v2534
    %v2558 = vadd.f32 %v2557, %v2540
    %v2559 = vadd.f32 %v2558, %v2546
    %v2560 = vrot.slane %v2559, 4
    %v2561 = vadd.f32 %v2559, %v2560
    %v2562 = vrot.slane %v2561, 2
    %v2563 = vadd.f32 %v2561, %v2562
    %v2564 = vrot.slane %v2563, 1
    %v2565 = vadd.f32 %v2563, %v2564
    %v2566 = vmul.f32 %v2556, 0.001953125
    %v2567 = vmul.f32 %v2565, 0.001953125
    %v2568 = vadd.f32 %v2566, 1e-05
    %v2569 = vadd.f32 %v2567, 1e-05
    %v2570 = vrsqrt.pop %v2568
    %v2571 = vrsqrt.pop %v2569
    %v2572 = vmul.f32 %v2443, %v2570
    %v2573 = vmul.f32 %v2444, %v2571
    %v2574 = vmul.f32 %v2445, %v2570
    %v2575 = vmul.f32 %v2446, %v2571
    %v2576 = vmul.f32 %v2447, %v2570
    %v2577 = vmul.f32 %v2448, %v2571
    %v2578 = vmul.f32 %v2449, %v2570
    %v2579 = vmul.f32 %v2450, %v2571
    %v2580 = vld [vmem:[%s12] sm:$0x3]
    %v2582 = vlaneseq
    %v2583 = vshrl.u32 %v2582, 7
    %v2584 = vsub.s32 0, %v2583
    %v2585 = vrot.slane %v2580, %v2584
    %v2586 = vlaneseq
    %v2587 = vshrl.u32 %v2586, 7
    %v2588 = vsub.s32 1, %v2587
    %v2589 = vrot.slane %v2580, %v2588
    %v2592 = vmul.f32 %v2572, %v2585
    %v2593 = vmul.f32 %v2573, %v2589
    %v2594 = vmul.f32 %v2574, %v2585
    %v2595 = vmul.f32 %v2575, %v2589
    %v2596 = vmul.f32 %v2576, %v2585
    %v2597 = vmul.f32 %v2577, %v2589
    %v2598 = vmul.f32 %v2578, %v2585
    %v2599 = vmul.f32 %v2579, %v2589
    %v2600 = vld [vmem:[%s13] sm:$0x3]
    %v2602 = vlaneseq
    %v2603 = vshrl.u32 %v2602, 7
    %v2604 = vsub.s32 0, %v2603
    %v2605 = vrot.slane %v2600, %v2604
    %v2606 = vlaneseq
    %v2607 = vshrl.u32 %v2606, 7
    %v2608 = vsub.s32 1, %v2607
    %v2609 = vrot.slane %v2600, %v2608
    %v2612 = vadd.f32 %v2592, %v2605
    %v2613 = vadd.f32 %v2593, %v2609
    %v2614 = vadd.f32 %v2594, %v2605
    %v2615 = vadd.f32 %v2595, %v2609
    %v2616 = vadd.f32 %v2596, %v2605
    %v2617 = vadd.f32 %v2597, %v2609
    %v2618 = vadd.f32 %v2598, %v2605
    %v2619 = vadd.f32 %v2599, %v2609
    %v2620 = vsub.f32 0.0, %v2612
    %v2621 = vsub.f32 0.0, %v2613
    %v2622 = vsub.f32 0.0, %v2614
    %v2623 = vsub.f32 0.0, %v2615
    %v2624 = vsub.f32 0.0, %v2616
    %v2625 = vsub.f32 0.0, %v2617
    %v2626 = vsub.f32 0.0, %v2618
    %v2627 = vsub.f32 0.0, %v2619
    %v2628 = vmul.f32 %v2620, 1.442695
    %v2629 = vpow.pop %v2628
    %v2630 = vmul.f32 %v2621, 1.442695
    %v2631 = vpow.pop %v2630
    %v2632 = vmul.f32 %v2622, 1.442695
    %v2633 = vpow.pop %v2632
    %v2634 = vmul.f32 %v2623, 1.442695
    %v2635 = vpow.pop %v2634
    %v2636 = vmul.f32 %v2624, 1.442695
    %v2637 = vpow.pop %v2636
    %v2638 = vmul.f32 %v2625, 1.442695
    %v2639 = vpow.pop %v2638
    %v2640 = vmul.f32 %v2626, 1.442695
    %v2641 = vpow.pop %v2640
    %v2642 = vmul.f32 %v2627, 1.442695
    %v2643 = vpow.pop %v2642
    %v2644 = vadd.f32 %v2629, 1.0
    %v2645 = vadd.f32 %v2631, 1.0
    %v2646 = vadd.f32 %v2633, 1.0
    %v2647 = vadd.f32 %v2635, 1.0
    %v2648 = vadd.f32 %v2637, 1.0
    %v2649 = vadd.f32 %v2639, 1.0
    %v2650 = vadd.f32 %v2641, 1.0
    %v2651 = vadd.f32 %v2643, 1.0
    %v2652 = vrcp.pop %v2644
    %v2653 = vmul.f32 1.0, %v2652
    %v2654 = vrcp.pop %v2645
    %v2655 = vmul.f32 1.0, %v2654
    %v2656 = vrcp.pop %v2646
    %v2657 = vmul.f32 1.0, %v2656
    %v2658 = vrcp.pop %v2647
    %v2659 = vmul.f32 1.0, %v2658
    %v2660 = vrcp.pop %v2648
    %v2661 = vmul.f32 1.0, %v2660
    %v2662 = vrcp.pop %v2649
    %v2663 = vmul.f32 1.0, %v2662
    %v2664 = vrcp.pop %v2650
    %v2665 = vmul.f32 1.0, %v2664
    %v2666 = vrcp.pop %v2651
    %v2667 = vmul.f32 1.0, %v2666
    %v2668 = vmul.f32 %v2612, %v2653
    %v2669 = vmul.f32 %v2613, %v2655
    %v2670 = vmul.f32 %v2614, %v2657
    %v2671 = vmul.f32 %v2615, %v2659
    %v2672 = vmul.f32 %v2616, %v2661
    %v2673 = vmul.f32 %v2617, %v2663
    %v2674 = vmul.f32 %v2618, %v2665
    %v2675 = vmul.f32 %v2619, %v2667
    %2676 = vmatprep.subr.mxu0 %v2271
    %2677 = vmatpush1.msra.mxu0 %v2270
    %2678 = vmatprep.subr.mxu0 %v2273
    %2679 = vmatpush1.msra.mxu0 %v2272
    %2680 = vmatprep.subr.mxu0 %v2275
    %2681 = vmatpush1.msra.mxu0 %v2274
    %2682 = vmatprep.subr.mxu0 %v2277
    %2683 = vmatpush1.msra.mxu0 %v2276
    %2684 = vmatprep.subr.mxu0 %v2279
    %2685 = vmatpush1.msra.mxu0 %v2278
    %2686 = vmatprep.subr.mxu0 %v2281
    %2687 = vmatpush1.msra.mxu0 %v2280
    %2688 = vmatprep.subr.mxu0 %v2283
    %2689 = vmatpush1.msra.mxu0 %v2282
    %2690 = vmatprep.subr.mxu0 %v2285
    %2691 = vmatpush1.msra.mxu0 %v2284
    %2692 = vmatprep.subr.mxu0 %v2287
    %2693 = vmatpush1.msra.mxu0 %v2286
    %2694 = vmatprep.subr.mxu0 %v2289
    %2695 = vmatpush1.msra.mxu0 %v2288
    %2696 = vmatprep.subr.mxu0 %v2291
    %2697 = vmatpush1.msra.mxu0 %v2290
    %2698 = vmatprep.subr.mxu0 %v2293
    %2699 = vmatpush1.msra.mxu0 %v2292
    %2700 = vmatprep.subr.mxu0 %v2295
    %2701 = vmatpush1.msra.mxu0 %v2294
    %2702 = vmatprep.subr.mxu0 %v2297
    %2703 = vmatpush1.msra.mxu0 %v2296
    %2704 = vmatprep.subr.mxu0 %v2299
    %2705 = vmatpush1.msra.mxu0 %v2298
    %2706 = vmatprep.subr.mxu0 %v2301
    %2707 = vmatpush1.msra.mxu0 %v2300
    %2708 = vmatprep.subr.mxu0 %v2303
    %2709 = vmatpush1.msra.mxu0 %v2302
    %2710 = vmatprep.subr.mxu0 %v2305
    %2711 = vmatpush1.msra.mxu0 %v2304
    %2712 = vmatprep.subr.mxu0 %v2307
    %2713 = vmatpush1.msra.mxu0 %v2306
    %2714 = vmatprep.subr.mxu0 %v2309
    %2715 = vmatpush1.msra.mxu0 %v2308
    %2716 = vmatprep.subr.mxu0 %v2311
    %2717 = vmatpush1.msra.mxu0 %v2310
    %2718 = vmatprep.subr.mxu0 %v2313
    %2719 = vmatpush1.msra.mxu0 %v2312
    %2720 = vmatprep.subr.mxu0 %v2315
    %2721 = vmatpush1.msra.mxu0 %v2314
    %2722 = vmatprep.subr.mxu0 %v2317
    %2723 = vmatpush1.msra.mxu0 %v2316
    %2724 = vmatprep.subr.mxu0 %v2319
    %2725 = vmatpush1.msra.mxu0 %v2318
    %2726 = vmatprep.subr.mxu0 %v2321
    %2727 = vmatpush1.msra.mxu0 %v2320
    %2728 = vmatprep.subr.mxu0 %v2323
    %2729 = vmatpush1.msra.mxu0 %v2322
    %2730 = vmatprep.subr.mxu0 %v2325
    %2731 = vmatpush1.msra.mxu0 %v2324
    %2732 = vmatprep.subr.mxu0 %v2327
    %2733 = vmatpush1.msra.mxu0 %v2326
    %2734 = vmatprep.subr.mxu0 %v2329
    %2735 = vmatpush1.msra.mxu0 %v2328
    %2736 = vmatprep.subr.mxu0 %v2331
    %2737 = vmatpush1.msra.mxu0 %v2330
    %2738 = vmatprep.subr.mxu0 %v2333
    %2739 = vmatpush1.msra.mxu0 %v2332
    %2740 = vmatprep.mubr.f32.mxu0 %v2669
    %2741 = vmatmul.mubr.f32.gmra.mrb[0].mxu0 %v2668
    %v2742 = vpop.f32.mrb[0].mxu0
    %v2743 = vadd.f32 0.0, %v2742
    %v2744 = vpop.f32.mrb[0].mxu0
    %v2745 = vadd.f32 0.0, %v2744
    %2746 = vmatprep.mubr.f32.mxu0 %v2671
    %2747 = vmatmul.mubr.f32.gmra.mrb[0].mxu0 %v2670
    %v2748 = vpop.f32.mrb[0].mxu0
    %v2749 = vadd.f32 0.0, %v2748
    %v2750 = vpop.f32.mrb[0].mxu0
    %v2751 = vadd.f32 0.0, %v2750
    %2752 = vmatprep.mubr.f32.mxu0 %v2673
    %2753 = vmatmul.mubr.f32.gmra.mrb[0].mxu0 %v2672
    %v2754 = vpop.f32.mrb[0].mxu0
    %v2755 = vadd.f32 0.0, %v2754
    %v2756 = vpop.f32.mrb[0].mxu0
    %v2757 = vadd.f32 0.0, %v2756
    %2758 = vmatprep.mubr.f32.mxu0 %v2675
    %2759 = vmatmul.mubr.f32.gmra.mrb[0].mxu0 %v2674
    %v2760 = vpop.f32.mrb[0].mxu0
    %v2761 = vadd.f32 0.0, %v2760
    %v2762 = vpop.f32.mrb[0].mxu0
    %v2763 = vadd.f32 0.0, %v2762
    %2764 = vdwg.mxu0
    %v2765 = vld [vmem:[%s15] sm:$0xff]
    %v2766 = vld [vmem:[%s15 + $0x8] sm:$0xff]
    %v2767 = vld [vmem:[%s15 + $0x10] sm:$0xff]
    %v2768 = vld [vmem:[%s15 + $0x18] sm:$0xff]
    %v2770 = vsel %vm202, %v2765, 0
    %v2773 = vsel %vm202, %v2766, 0
    %v2776 = vsel %vm202, %v2767, 0
    %v2779 = vsel %vm202, %v2768, 0
    %2781 = vmatprep.subr.mxu0 %v2745
    %2782 = vmatpush1.msra.mxu0 %v2743
    %2783 = vmatprep.subr.mxu0 %v2751
    %2784 = vmatpush1.msra.mxu0 %v2749
    %2785 = vmatprep.subr.mxu0 %v2757
    %2786 = vmatpush1.msra.mxu0 %v2755
    %2787 = vmatprep.subr.mxu0 %v2763
    %2788 = vmatpush1.msra.mxu0 %v2761
    %2789 = vmatprep.subr.mxu0 0.0
    %2790 = vmatpush1.msra.mxu0 0.0
    %2791 = vmatprep.subr.mxu0 0.0
    %2792 = vmatpush1.msra.mxu0 0.0
    %2793 = vmatprep.subr.mxu0 0.0
    %2794 = vmatpush1.msra.mxu0 0.0
    %2795 = vmatprep.subr.mxu0 0.0
    %2796 = vmatpush1.msra.mxu0 0.0
    %2797 = vmatprep.subr.mxu0 0.0
    %2798 = vmatpush1.msra.mxu0 0.0
    %2799 = vmatprep.subr.mxu0 0.0
    %2800 = vmatpush1.msra.mxu0 0.0
    %2801 = vmatprep.subr.mxu0 0.0
    %2802 = vmatpush1.msra.mxu0 0.0
    %2803 = vmatprep.subr.mxu0 0.0
    %2804 = vmatpush1.msra.mxu0 0.0
    %2805 = vmatprep.subr.mxu0 0.0
    %2806 = vmatpush1.msra.mxu0 0.0
    %2807 = vmatprep.subr.mxu0 0.0
    %2808 = vmatpush1.msra.mxu0 0.0
    %2809 = vmatprep.subr.mxu0 0.0
    %2810 = vmatpush1.msra.mxu0 0.0
    %2811 = vmatprep.subr.mxu0 0.0
    %2812 = vmatpush1.msra.mxu0 0.0
    %2813 = vmatprep.subr.mxu0 0.0
    %2814 = vmatpush1.msra.mxu0 0.0
    %2815 = vmatprep.subr.mxu0 0.0
    %2816 = vmatpush1.msra.mxu0 0.0
    %2817 = vmatprep.subr.mxu0 0.0
    %2818 = vmatpush1.msra.mxu0 0.0
    %2819 = vmatprep.subr.mxu0 0.0
    %2820 = vmatpush1.msra.mxu0 0.0
    %2821 = vmatprep.subr.mxu0 0.0
    %2822 = vmatpush1.msra.mxu0 0.0
    %2823 = vmatprep.subr.mxu0 0.0
    %2824 = vmatpush1.msra.mxu0 0.0
    %2825 = vmatprep.subr.mxu0 0.0
    %2826 = vmatpush1.msra.mxu0 0.0
    %2827 = vmatprep.subr.mxu0 0.0
    %2828 = vmatpush1.msra.mxu0 0.0
    %2829 = vmatprep.subr.mxu0 0.0
    %2830 = vmatpush1.msra.mxu0 0.0
    %2831 = vmatprep.subr.mxu0 0.0
    %2832 = vmatpush1.msra.mxu0 0.0
    %2833 = vmatprep.subr.mxu0 0.0
    %2834 = vmatpush1.msra.mxu0 0.0
    %2835 = vmatprep.subr.mxu0 0.0
    %2836 = vmatpush1.msra.mxu0 0.0
    %2837 = vmatprep.subr.mxu0 0.0
    %2838 = vmatpush1.msra.mxu0 0.0
    %2839 = vmatprep.subr.mxu0 0.0
    %2840 = vmatpush1.msra.mxu0 0.0
    %2841 = vmatprep.subr.mxu0 0.0
    %2842 = vmatpush1.msra.mxu0 0.0
    %2843 = vmatprep.subr.mxu0 0.0
    %2844 = vmatpush1.msra.mxu0 0.0
    %2845 = vmatprep.mubr.f32.mxu0 0.0
    %2846 = vmatmul.mubr.f32.gmra.mrb[0].mxu0 %v2770
    %v2847 = vpop.f32.mrb[0].mxu0
    %v2848 = vadd.f32 0.0, %v2847
    %v2849 = vpop.f32.mrb[0].mxu0
    %v2850 = vadd.f32 0.0, %v2849
    %2851 = vmatprep.mubr.f32.mxu0 0.0
    %2852 = vmatmul.mubr.f32.gmra.mrb[0].mxu0 %v2773
    %v2853 = vpop.f32.mrb[0].mxu0
    %v2854 = vadd.f32 0.0, %v2853
    %v2855 = vpop.f32.mrb[0].mxu0
    %v2856 = vadd.f32 0.0, %v2855
    %2857 = vmatprep.mubr.f32.mxu0 0.0
    %2858 = vmatmul.mubr.f32.gmra.mrb[0].mxu0 %v2776
    %v2859 = vpop.f32.mrb[0].mxu0
    %v2860 = vadd.f32 0.0, %v2859
    %v2861 = vpop.f32.mrb[0].mxu0
    %v2862 = vadd.f32 0.0, %v2861
    %2863 = vmatprep.mubr.f32.mxu0 0.0
    %2864 = vmatmul.mubr.f32.gmra.mrb[0].mxu0 %v2779
    %v2865 = vpop.f32.mrb[0].mxu0
    %v2866 = vadd.f32 0.0, %v2865
    %v2867 = vpop.f32.mrb[0].mxu0
    %v2868 = vadd.f32 0.0, %v2867
    %2869 = vdwg.mxu0
    %v2870 = vld [vmem:[#allocation14] sm:$0xff]
    %v2871 = vld [vmem:[#allocation14 + $0x8] sm:$0xff]
    %v2872 = vld [vmem:[#allocation14 + $0x10] sm:$0xff]
    %v2873 = vld [vmem:[#allocation14 + $0x18] sm:$0xff]
    %v2874 = vld [vmem:[#allocation14 + $0x20] sm:$0xff]
    %v2875 = vld [vmem:[#allocation14 + $0x28] sm:$0xff]
    %v2876 = vld [vmem:[#allocation14 + $0x30] sm:$0xff]
    %v2877 = vld [vmem:[#allocation14 + $0x38] sm:$0xff]
    %v2878 = vld [vmem:[#allocation14 + $0x40] sm:$0xff]
    %v2879 = vld [vmem:[#allocation14 + $0x48] sm:$0xff]
    %v2880 = vld [vmem:[#allocation14 + $0x50] sm:$0xff]
    %v2881 = vld [vmem:[#allocation14 + $0x58] sm:$0xff]
    %v2882 = vld [vmem:[#allocation14 + $0x60] sm:$0xff]
    %v2883 = vld [vmem:[#allocation14 + $0x68] sm:$0xff]
    %v2884 = vld [vmem:[#allocation14 + $0x70] sm:$0xff]
    %v2885 = vld [vmem:[#allocation14 + $0x78] sm:$0xff]
    %v2886 = vld [vmem:[#allocation14 + $0x80] sm:$0xff]
    %v2887 = vld [vmem:[#allocation14 + $0x88] sm:$0xff]
    %v2888 = vld [vmem:[#allocation14 + $0x90] sm:$0xff]
    %v2889 = vld [vmem:[#allocation14 + $0x98] sm:$0xff]
    %v2890 = vld [vmem:[#allocation14 + $0xa0] sm:$0xff]
    %v2891 = vld [vmem:[#allocation14 + $0xa8] sm:$0xff]
    %v2892 = vld [vmem:[#allocation14 + $0xb0] sm:$0xff]
    %v2893 = vld [vmem:[#allocation14 + $0xb8] sm:$0xff]
    %v2894 = vld [vmem:[#allocation14 + $0xc0] sm:$0xff]
    %v2895 = vld [vmem:[#allocation14 + $0xc8] sm:$0xff]
    %v2896 = vld [vmem:[#allocation14 + $0xd0] sm:$0xff]
    %v2897 = vld [vmem:[#allocation14 + $0xd8] sm:$0xff]
    %v2898 = vld [vmem:[#allocation14 + $0xe0] sm:$0xff]
    %v2899 = vld [vmem:[#allocation14 + $0xe8] sm:$0xff]
    %v2900 = vld [vmem:[#allocation14 + $0xf0] sm:$0xff]
    %v2901 = vld [vmem:[#allocation14 + $0xf8] sm:$0xff]
    %v2902 = vld [vmem:[#allocation14 + $0x100] sm:$0xff]
    %v2903 = vld [vmem:[#allocation14 + $0x108] sm:$0xff]
    %v2904 = vld [vmem:[#allocation14 + $0x110] sm:$0xff]
    %v2905 = vld [vmem:[#allocation14 + $0x118] sm:$0xff]
    %v2906 = vld [vmem:[#allocation14 + $0x120] sm:$0xff]
    %v2907 = vld [vmem:[#allocation14 + $0x128] sm:$0xff]
    %v2908 = vld [vmem:[#allocation14 + $0x130] sm:$0xff]
    %v2909 = vld [vmem:[#allocation14 + $0x138] sm:$0xff]
    %v2910 = vld [vmem:[#allocation14 + $0x140] sm:$0xff]
    %v2911 = vld [vmem:[#allocation14 + $0x148] sm:$0xff]
    %v2912 = vld [vmem:[#allocation14 + $0x150] sm:$0xff]
    %v2913 = vld [vmem:[#allocation14 + $0x158] sm:$0xff]
    %v2914 = vld [vmem:[#allocation14 + $0x160] sm:$0xff]
    %v2915 = vld [vmem:[#allocation14 + $0x168] sm:$0xff]
    %v2916 = vld [vmem:[#allocation14 + $0x170] sm:$0xff]
    %v2917 = vld [vmem:[#allocation14 + $0x178] sm:$0xff]
    %v2918 = vld [vmem:[#allocation14 + $0x180] sm:$0xff]
    %v2919 = vld [vmem:[#allocation14 + $0x188] sm:$0xff]
    %v2920 = vld [vmem:[#allocation14 + $0x190] sm:$0xff]
    %v2921 = vld [vmem:[#allocation14 + $0x198] sm:$0xff]
    %v2922 = vld [vmem:[#allocation14 + $0x1a0] sm:$0xff]
    %v2923 = vld [vmem:[#allocation14 + $0x1a8] sm:$0xff]
    %v2924 = vld [vmem:[#allocation14 + $0x1b0] sm:$0xff]
    %v2925 = vld [vmem:[#allocation14 + $0x1b8] sm:$0xff]
    %v2926 = vld [vmem:[#allocation14 + $0x1c0] sm:$0xff]
    %v2927 = vld [vmem:[#allocation14 + $0x1c8] sm:$0xff]
    %v2928 = vld [vmem:[#allocation14 + $0x1d0] sm:$0xff]
    %v2929 = vld [vmem:[#allocation14 + $0x1d8] sm:$0xff]
    %v2930 = vld [vmem:[#allocation14 + $0x1e0] sm:$0xff]
    %v2931 = vld [vmem:[#allocation14 + $0x1e8] sm:$0xff]
    %v2932 = vld [vmem:[#allocation14 + $0x1f0] sm:$0xff]
    %v2933 = vld [vmem:[#allocation14 + $0x1f8] sm:$0xff]
    %v2934 = vld [vmem:[%s17] sm:$0x3]
    %v2936 = vlaneseq
    %v2937 = vshrl.u32 %v2936, 7
    %v2938 = vsub.s32 0, %v2937
    %v2939 = vrot.slane %v2934, %v2938
    %v2940 = vlaneseq
    %v2941 = vshrl.u32 %v2940, 7
    %v2942 = vsub.s32 1, %v2941
    %v2943 = vrot.slane %v2934, %v2942
    %2946 = vmatprep.subr.mxu0 %v2871
    %2947 = vmatpush1.msra.mxu0 %v2870
    %2948 = vmatprep.subr.mxu0 %v2873
    %2949 = vmatpush1.msra.mxu0 %v2872
    %2950 = vmatprep.subr.mxu0 %v2875
    %2951 = vmatpush1.msra.mxu0 %v2874
    %2952 = vmatprep.subr.mxu0 %v2877
    %2953 = vmatpush1.msra.mxu0 %v2876
    %2954 = vmatprep.subr.mxu0 %v2879
    %2955 = vmatpush1.msra.mxu0 %v2878
    %2956 = vmatprep.subr.mxu0 %v2881
    %2957 = vmatpush1.msra.mxu0 %v2880
    %2958 = vmatprep.subr.mxu0 %v2883
    %2959 = vmatpush1.msra.mxu0 %v2882
    %2960 = vmatprep.subr.mxu0 %v2885
    %2961 = vmatpush1.msra.mxu0 %v2884
    %2962 = vmatprep.subr.mxu0 %v2887
    %2963 = vmatpush1.msra.mxu0 %v2886
    %2964 = vmatprep.subr.mxu0 %v2889
    %2965 = vmatpush1.msra.mxu0 %v2888
    %2966 = vmatprep.subr.mxu0 %v2891
    %2967 = vmatpush1.msra.mxu0 %v2890
    %2968 = vmatprep.subr.mxu0 %v2893
    %2969 = vmatpush1.msra.mxu0 %v2892
    %2970 = vmatprep.subr.mxu0 %v2895
    %2971 = vmatpush1.msra.mxu0 %v2894
    %2972 = vmatprep.subr.mxu0 %v2897
    %2973 = vmatpush1.msra.mxu0 %v2896
    %2974 = vmatprep.subr.mxu0 %v2899
    %2975 = vmatpush1.msra.mxu0 %v2898
    %2976 = vmatprep.subr.mxu0 %v2901
    %2977 = vmatpush1.msra.mxu0 %v2900
    %2978 = vmatprep.subr.mxu0 %v2903
    %2979 = vmatpush1.msra.mxu0 %v2902
    %2980 = vmatprep.subr.mxu0 %v2905
    %2981 = vmatpush1.msra.mxu0 %v2904
    %2982 = vmatprep.subr.mxu0 %v2907
    %2983 = vmatpush1.msra.mxu0 %v2906
    %2984 = vmatprep.subr.mxu0 %v2909
    %2985 = vmatpush1.msra.mxu0 %v2908
    %2986 = vmatprep.subr.mxu0 %v2911
    %2987 = vmatpush1.msra.mxu0 %v2910
    %2988 = vmatprep.subr.mxu0 %v2913
    %2989 = vmatpush1.msra.mxu0 %v2912
    %2990 = vmatprep.subr.mxu0 %v2915
    %2991 = vmatpush1.msra.mxu0 %v2914
    %2992 = vmatprep.subr.mxu0 %v2917
    %2993 = vmatpush1.msra.mxu0 %v2916
    %2994 = vmatprep.subr.mxu0 %v2919
    %2995 = vmatpush1.msra.mxu0 %v2918
    %2996 = vmatprep.subr.mxu0 %v2921
    %2997 = vmatpush1.msra.mxu0 %v2920
    %2998 = vmatprep.subr.mxu0 %v2923
    %2999 = vmatpush1.msra.mxu0 %v2922
    %3000 = vmatprep.subr.mxu0 %v2925
    %3001 = vmatpush1.msra.mxu0 %v2924
    %3002 = vmatprep.subr.mxu0 %v2927
    %3003 = vmatpush1.msra.mxu0 %v2926
    %3004 = vmatprep.subr.mxu0 %v2929
    %3005 = vmatpush1.msra.mxu0 %v2928
    %3006 = vmatprep.subr.mxu0 %v2931
    %3007 = vmatpush1.msra.mxu0 %v2930
    %3008 = vmatprep.subr.mxu0 %v2933
    %3009 = vmatpush1.msra.mxu0 %v2932
    %3010 = vmatprep.mubr.f32.mxu0 %v2850
    %3011 = vmatmul.mubr.f32.gmra.mrb[0].mxu0 %v2848
    %v3012 = vpop.f32.mrb[0].mxu0
    %v3013 = vadd.f32 %v2939, %v3012
    %v3014 = vpop.f32.mrb[0].mxu0
    %v3015 = vadd.f32 %v2943, %v3014
    %3016 = vmatprep.mubr.f32.mxu0 %v2856
    %3017 = vmatmul.mubr.f32.gmra.mrb[0].mxu0 %v2854
    %v3018 = vpop.f32.mrb[0].mxu0
    %v3019 = vadd.f32 %v2939, %v3018
    %v3020 = vpop.f32.mrb[0].mxu0
    %v3021 = vadd.f32 %v2943, %v3020
    %3022 = vmatprep.mubr.f32.mxu0 %v2862
    %3023 = vmatmul.mubr.f32.gmra.mrb[0].mxu0 %v2860
    %v3024 = vpop.f32.mrb[0].mxu0
    %v3025 = vadd.f32 %v2939, %v3024
    %v3026 = vpop.f32.mrb[0].mxu0
    %v3027 = vadd.f32 %v2943, %v3026
    %3028 = vmatprep.mubr.f32.mxu0 %v2868
    %3029 = vmatmul.mubr.f32.gmra.mrb[0].mxu0 %v2866
    %v3030 = vpop.f32.mrb[0].mxu0
    %v3031 = vadd.f32 %v2939, %v3030
    %v3032 = vpop.f32.mrb[0].mxu0
    %v3033 = vadd.f32 %v2943, %v3032
    %3034 = vdwg.mxu0
    %v3035 = vsub.f32 0.0, %v3013
    %v3036 = vsub.f32 0.0, %v3015
    %v3037 = vsub.f32 0.0, %v3019
    %v3038 = vsub.f32 0.0, %v3021
    %v3039 = vsub.f32 0.0, %v3025
    %v3040 = vsub.f32 0.0, %v3027
    %v3041 = vsub.f32 0.0, %v3031
    %v3042 = vsub.f32 0.0, %v3033
    %v3043 = vmul.f32 %v3035, 1.442695
    %v3044 = vpow.pop %v3043
    %v3045 = vmul.f32 %v3036, 1.442695
    %v3046 = vpow.pop %v3045
    %v3047 = vmul.f32 %v3037, 1.442695
    %v3048 = vpow.pop %v3047
    %v3049 = vmul.f32 %v3038, 1.442695
    %v3050 = vpow.pop %v3049
    %v3051 = vmul.f32 %v3039, 1.442695
    %v3052 = vpow.pop %v3051
    %v3053 = vmul.f32 %v3040, 1.442695
    %v3054 = vpow.pop %v3053
    %v3055 = vmul.f32 %v3041, 1.442695
    %v3056 = vpow.pop %v3055
    %v3057 = vmul.f32 %v3042, 1.442695
    %v3058 = vpow.pop %v3057
    %v3059 = vadd.f32 %v3044, 1.0
    %v3060 = vadd.f32 %v3046, 1.0
    %v3061 = vadd.f32 %v3048, 1.0
    %v3062 = vadd.f32 %v3050, 1.0
    %v3063 = vadd.f32 %v3052, 1.0
    %v3064 = vadd.f32 %v3054, 1.0
    %v3065 = vadd.f32 %v3056, 1.0
    %v3066 = vadd.f32 %v3058, 1.0
    %v3067 = vrcp.pop %v3059
    %v3068 = vmul.f32 1.0, %v3067
    %v3069 = vrcp.pop %v3060
    %v3070 = vmul.f32 1.0, %v3069
    %v3071 = vrcp.pop %v3061
    %v3072 = vmul.f32 1.0, %v3071
    %v3073 = vrcp.pop %v3062
    %v3074 = vmul.f32 1.0, %v3073
    %v3075 = vrcp.pop %v3063
    %v3076 = vmul.f32 1.0, %v3075
    %v3077 = vrcp.pop %v3064
    %v3078 = vmul.f32 1.0, %v3077
    %v3079 = vrcp.pop %v3065
    %v3080 = vmul.f32 1.0, %v3079
    %v3081 = vrcp.pop %v3066
    %v3082 = vmul.f32 1.0, %v3081
    %v3083 = vmul.f32 %v2668, %v3068
    %v3084 = vmul.f32 %v2669, %v3070
    %v3085 = vmul.f32 %v2670, %v3072
    %v3086 = vmul.f32 %v2671, %v3074
    %v3087 = vmul.f32 %v2672, %v3076
    %v3088 = vmul.f32 %v2673, %v3078
    %v3089 = vmul.f32 %v2674, %v3080
    %v3090 = vmul.f32 %v2675, %v3082
    %3091 = vst [vmem:[#allocation16] sm:$0xff] %v3083
    %3092 = vst [vmem:[#allocation16 + $0x8] sm:$0xff] %v3084
    %3093 = vst [vmem:[#allocation16 + $0x10] sm:$0xff] %v3085
    %3094 = vst [vmem:[#allocation16 + $0x18] sm:$0xff] %v3086
    %3095 = vst [vmem:[#allocation16 + $0x20] sm:$0xff] %v3087
    %3096 = vst [vmem:[#allocation16 + $0x28] sm:$0xff] %v3088
    %3097 = vst [vmem:[#allocation16 + $0x30] sm:$0xff] %v3089
    %3098 = vst [vmem:[#allocation16 + $0x38] sm:$0xff] %v3090
    // Predicated region
    $region106: #{tpu_custom_call.1} parent=1 // pred_check
      _
    $region107: #{tpu_custom_call.1} parent=1 // pred_check_branch
      %3100 = sbr.rel (0) target = $region109
    $region108: #{tpu_custom_call.1} parent=1 // pred_region
      %s3102 = ssub.s32 1024, 1024
      %3103 = vsyncadd [#allocation4], %s3102
      %s3104 = sshll.u32 [#allocation16], 4
      %s3105 = int_to_ptr.vmem [resolvable:$true] %s3104
      %3110 = dma.vmem_to_hbm [thread:$0]  %s3105, 1024, %s18, [#allocation4], 256, 256, 16
    $region109: #{tpu_custom_call.1} parent=1 // pred_fallthru
      _
    // Predicated region
    $region110: #{tpu_custom_call.1} parent=1 // pred_check
      _
    $region111: #{tpu_custom_call.1} parent=1 // pred_check_branch
      %3112 = sbr.rel (0) target = $region113
    $region112: #{tpu_custom_call.1} parent=1 // pred_region
      %3113 = dma.done [#allocation4], 1024
    $region113: #{tpu_custom_call.1} parent=1 // pred_fallthru
      _
    %3114 = vsyncpa [#allocation3], 1
    %3115 = vsyncpa [#allocation6], 1
    %3116 = vsyncpa [#allocation9], 1
    %3117 = vsyncpa [#allocation12], 1
    %3118 = vsyncpa [#allocation15], 1
    %3119 = vsyncpa [#allocation4], 1

</llo_original>
